<compile_context>
chip_gen: v5e
topology: v5e:2x2
jax: 0.10.0
libtpu: 0.0.40
codegen_flags: <defaults>
</compile_context>

<pallas_src>
import functools
import math

import jax
import jax.numpy as jnp
from jax import lax
from jax.experimental import pallas as pl
from jax.experimental.pallas import tpu as pltpu


# ----------------------------- config ---------------------------------------
class ModelConfig:
    vocab_size = 128          # lane-dense head output (V = 128)
    context_length = 16
    emb_dim = 32
    n_heads = 4
    n_layers = 2
    drop_rate = 0.0           # dropout is identity in this implementation
    qkv_bias = False


_KERNEL_PARAM_ORDER = (
    "ln1_s", "ln1_b", "wq", "wk", "wv", "wo", "bo", "ln2_s", "ln2_b",
    "w1", "b1", "w2", "b2", "final_ln_s", "final_ln_b", "w_head",
)


# --------------------------- kernel helpers ----------------------------------
def _layer_norm(x, scale, shift, eps=1e-5):
    # matches torch: mean / biased var over last dim
    mean = jnp.mean(x, axis=-1, keepdims=True)
    var = jnp.mean((x - mean) ** 2, axis=-1, keepdims=True)
    return scale * ((x - mean) * lax.rsqrt(var + eps)) + shift


def _gelu_tanh(x):
    c = jnp.float32(math.sqrt(2.0 / math.pi))
    return 0.5 * x * (1.0 + jnp.tanh(c * (x + 0.044715 * x * x * x)))


def _dot(a, b):
    return jnp.dot(a, b, preferred_element_type=jnp.float32)


def _dot_nt(a, b):
    # a: (M, K), b: (N, K) -> (M, N), contracting last dims (avoids explicit .T)
    return lax.dot_general(a, b, (((1,), (1,)), ((), ())),
                           preferred_element_type=jnp.float32)


# --------------------------- fused forward kernel -----------------------------
def _fused_gpt_kernel(x_ref,
                      ln1s_ref, ln1b_ref, wq_ref, wk_ref, wv_ref,
                      wo_ref, bo_ref, ln2s_ref, ln2b_ref,
                      w1_ref, b1_ref, w2_ref, b2_ref,
                      flns_ref, flnb_ref, whead_ref,
                      o_ref, *, n_layers, n_heads):
    x = x_ref[0].astype(jnp.float32)                      # (T, D) residual (f32)
    T = x.shape[0]
    hd = wq_ref.shape[-1]
    scale = 1.0 / math.sqrt(hd)

    row = lax.broadcasted_iota(jnp.int32, (T, T), 0)
    col = lax.broadcasted_iota(jnp.int32, (T, T), 1)
    causal_mask = col > row                               # True above diagonal

    for l in range(n_layers):                             # static unroll (L=2)
        # ---- pre-norm 1 + multi-head causal self-attention ----
        h1 = _layer_norm(x, ln1s_ref[l], ln1b_ref[l])
        h1b = h1.astype(jnp.bfloat16)

        # per-layer weight loads (leading-axis ref index), head split is in the
        # weight layout so no lane slicing / concat of activations is needed.
        wq_l, wk_l, wv_l, wo_l = wq_ref[l], wk_ref[l], wv_ref[l], wo_ref[l]

        attn = jnp.zeros_like(x)                          # (T, D) f32 accumulator
        for h in range(n_heads):                          # static unroll (H=4)
            q = _dot(h1b, wq_l[h]) * scale                # (T, hd), scale folded in
            k = _dot(h1b, wk_l[h])                        # (T, hd)
            v = _dot(h1b, wv_l[h])                        # (T, hd)
            s = _dot_nt(q.astype(jnp.bfloat16), k.astype(jnp.bfloat16))   # (T, T)
            s = jnp.where(causal_mask, jnp.float32(-1e30), s)
            s = s - jnp.max(s, axis=-1, keepdims=True)
            p = jnp.exp(s)
            p = p * pl.reciprocal(jnp.sum(p, axis=-1, keepdims=True), approx=True)
            ctx = _dot(p.astype(jnp.bfloat16), v.astype(jnp.bfloat16))    # (T, hd)
            attn = attn + _dot(ctx.astype(jnp.bfloat16), wo_l[h])         # (T, D)
        x = x + attn + bo_ref[l]                          # residual (dropout = id)

        # ---- pre-norm 2 + feed-forward (GELU tanh approx) ----
        h2 = _layer_norm(x, ln2s_ref[l], ln2b_ref[l])
        ff = _dot(h2.astype(jnp.bfloat16), w1_ref[l]) + b1_ref[l]         # (T, 4D)
        ff = _gelu_tanh(ff)
        ff = _dot(ff.astype(jnp.bfloat16), w2_ref[l]) + b2_ref[l]         # (T, D)
        x = x + ff                                        # residual (dropout = id)

    # ---- final LayerNorm + LM head (lane-dense V=128 output store) ----
    hf = _layer_norm(x, flns_ref[0], flnb_ref[0])
    o_ref[0] = _dot(hf.astype(jnp.bfloat16), whead_ref[...]).astype(o_ref.dtype)


def _full_spec(shape):
    n = len(shape)
    return pl.BlockSpec(shape, lambda b, _n=n: (0,) * _n)


def gpt_forward(params, kparams, in_idx, cfg):
    """Embedding gather (plain JAX glue) + one fused Pallas kernel."""
    B, T = in_idx.shape
    D, V = cfg.emb_dim, cfg.vocab_size
    # token + positional embedding: data-dependent gather stays outside the kernel
    x = jnp.take(params["tok_emb"], in_idx, axis=0) + params["pos_emb"][:T][None]
    weights = [kparams[name] for name in _KERNEL_PARAM_ORDER]

    in_specs = [pl.BlockSpec((1, T, D), lambda b: (b, 0, 0))]
    in_specs += [_full_spec(w.shape) for w in weights]

    kernel = functools.partial(_fused_gpt_kernel,
                               n_layers=cfg.n_layers, n_heads=cfg.n_heads)
    return pl.pallas_call(
        kernel,
        out_shape=jax.ShapeDtypeStruct((B, T, V), jnp.float32),
        grid=(B,),
        in_specs=in_specs,
        out_specs=pl.BlockSpec((1, T, V), lambda b: (b, 0, 0)),
        compiler_params=pltpu.CompilerParams(
            dimension_semantics=("parallel",)),      # v7x: one batch elem per TC
    )(x, *weights)


# ------------------------------ parameters ------------------------------------
def init_params(key, cfg):
    """Canonical (PyTorch-layout-equivalent) f32 parameters."""
    D, V, C = cfg.emb_dim, cfg.vocab_size, cfg.context_length
    keys = iter(jax.random.split(key, 8 + 8 * cfg.n_layers))

    def n(shape, s=0.02):
        return (s * jax.random.normal(next(keys), shape)).astype(jnp.float32)

    p = {
        "tok_emb": n((V, D), 1.0),
        "pos_emb": n((C, D), 1.0),
        "final_ln_s": jnp.ones((D,), jnp.float32),
        "final_ln_b": jnp.zeros((D,), jnp.float32),
        "w_head": n((D, V)),
        "blocks": [],
    }
    for _ in range(cfg.n_layers):
        p["blocks"].append({
            "ln1_s": jnp.ones((D,), jnp.float32), "ln1_b": jnp.zeros((D,), jnp.float32),
            "wq": n((D, D)), "wk": n((D, D)), "wv": n((D, D)),
            "wo": n((D, D)), "bo": jnp.zeros((D,), jnp.float32),
            "ln2_s": jnp.ones((D,), jnp.float32), "ln2_b": jnp.zeros((D,), jnp.float32),
            "w1": n((D, 4 * D)), "b1": jnp.zeros((4 * D,), jnp.float32),
            "w2": n((4 * D, D)), "b2": jnp.zeros((D,), jnp.float32),
        })
    return p


def prepare_kernel_params(p, cfg):
    """One-time conversion to kernel layout: stack over layers, split heads,
    cast matmul weights to bf16 (f32 accumulation happens in the kernel)."""
    D, H, L = cfg.emb_dim, cfg.n_heads, cfg.n_layers
    hd = D // H

    def stack(name):
        return jnp.stack([blk[name] for blk in p["blocks"]])

    def split_cols(w):   # (L, D, D) -> (L, H, D, hd): head h gets cols [h*hd,(h+1)*hd)
        return jnp.transpose(w.reshape(L, D, H, hd), (0, 2, 1, 3))

    bf16 = jnp.bfloat16
    return {
        "ln1_s": stack("ln1_s"), "ln1_b": stack("ln1_b"),
        "wq": split_cols(stack("wq")).astype(bf16),
        "wk": split_cols(stack("wk")).astype(bf16),
        "wv": split_cols(stack("wv")).astype(bf16),
        "wo": stack("wo").reshape(L, H, hd, D).astype(bf16),
        "bo": stack("bo"),
        "ln2_s": stack("ln2_s"), "ln2_b": stack("ln2_b"),
        "w1": stack("w1").astype(bf16), "b1": stack("b1"),
        "w2": stack("w2").astype(bf16), "b2": stack("b2"),
        "final_ln_s": p["final_ln_s"][None], "final_ln_b": p["final_ln_b"][None],
        "w_head": p["w_head"].astype(bf16),
    }


# ----------------------- pure-JAX f32 reference (for checking) ----------------
def ref_forward(p, in_idx, cfg):
    def ln(x, s, b, eps=1e-5):
        m = x.mean(-1, keepdims=True)
        v = ((x - m) ** 2).mean(-1, keepdims=True)
        return s * (x - m) / jnp.sqrt(v + eps) + b

    def gelu(x):
        return 0.5 * x * (1 + jnp.tanh(jnp.sqrt(2.0 / jnp.pi)
                                       * (x + 0.044715 * x ** 3)))

    B, T = in_idx.shape
    D, H = cfg.emb_dim, cfg.n_heads
    hd = D // H
    x = jnp.take(p["tok_emb"], in_idx, axis=0) + p["pos_emb"][:T][None]
    mask = jnp.triu(jnp.ones((T, T), bool), k=1)
    for blk in p["blocks"]:
        h = ln(x, blk["ln1_s"], blk["ln1_b"])
        q = (h @ blk["wq"]).reshape(B, T, H, hd).transpose(0, 2, 1, 3)
        k = (h @ blk["wk"]).reshape(B, T, H, hd).transpose(0, 2, 1, 3)
        v = (h @ blk["wv"]).reshape(B, T, H, hd).transpose(0, 2, 1, 3)
        s = jnp.einsum("bhtd,bhsd->bhts", q, k) / math.sqrt(hd)
        s = jnp.where(mask, -jnp.inf, s)
        a = jax.nn.softmax(s, axis=-1)
        ctx = jnp.einsum("bhts,bhsd->bhtd", a, v).transpose(0, 2, 1, 3).reshape(B, T, D)
        x = x + (ctx @ blk["wo"] + blk["bo"])
        h = ln(x, blk["ln2_s"], blk["ln2_b"])
        x = x + (gelu(h @ blk["w1"] + blk["b1"]) @ blk["w2"] + blk["b2"])
    x = ln(x, p["final_ln_s"], p["final_ln_b"])
    return x @ p["w_head"]


# ---------------------------------- main --------------------------------------
if __name__ == "__main__":
    cfg = ModelConfig()
    key = jax.random.PRNGKey(0)
    pkey, ikey = jax.random.split(key)
    params = init_params(pkey, cfg)
    kparams = prepare_kernel_params(params, cfg)

    B, T = 2, 8
    in_idx = jax.random.randint(ikey, (B, T), 0, cfg.vocab_size, dtype=jnp.int32)

    logits = gpt_forward(params, kparams, in_idx, cfg)
    logits = jax.block_until_ready(logits)
    assert logits.shape == (B, T, cfg.vocab_size)

    # bf16 matmul inputs + approx softmax reciprocal -> compare with a modest
    # tolerance against the exact f32 reference.
    ref = ref_forward(params, in_idx, cfg)
    err = float(jnp.max(jnp.abs(logits - ref)))
    assert err < 5e-3, f"mismatch vs reference: max abs err {err}"

    print("KERNEL_OK")
</pallas_src>

<mosaic_0001>
module attributes {stable_mosaic.version = 11 : i64} {
  func.func @_fused_gpt_kernel(%arg0: i32, %arg1: memref<1x8x32xf32, #tpu.memory_space<vmem>>, %arg2: memref<2x32xf32, #tpu.memory_space<vmem>>, %arg3: memref<2x32xf32, #tpu.memory_space<vmem>>, %arg4: memref<2x4x32x8xbf16, #tpu.memory_space<vmem>>, %arg5: memref<2x4x32x8xbf16, #tpu.memory_space<vmem>>, %arg6: memref<2x4x32x8xbf16, #tpu.memory_space<vmem>>, %arg7: memref<2x4x8x32xbf16, #tpu.memory_space<vmem>>, %arg8: memref<2x32xf32, #tpu.memory_space<vmem>>, %arg9: memref<2x32xf32, #tpu.memory_space<vmem>>, %arg10: memref<2x32xf32, #tpu.memory_space<vmem>>, %arg11: memref<2x32x128xbf16, #tpu.memory_space<vmem>>, %arg12: memref<2x128xf32, #tpu.memory_space<vmem>>, %arg13: memref<2x128x32xbf16, #tpu.memory_space<vmem>>, %arg14: memref<2x32xf32, #tpu.memory_space<vmem>>, %arg15: memref<1x32xf32, #tpu.memory_space<vmem>>, %arg16: memref<1x32xf32, #tpu.memory_space<vmem>>, %arg17: memref<32x128xbf16, #tpu.memory_space<vmem>>, %arg18: memref<1x8x128xf32, #tpu.memory_space<vmem>>) attributes {dimension_semantics = [#tpu.dimension_semantics<parallel>], iteration_bounds = array<i64: 2>, scalar_prefetch = 0 : i64, scratch_operands = 0 : i64, tpu.core_type = #tpu.core_type<tc>, window_params = [{transform_indices = @transform_0, window_bounds = array<i64: 1, 8, 32>}, {pipeline_mode = #tpu.pipeline_mode<synchronous>, transform_indices = @transform_1, window_bounds = array<i64: 2, 32>}, {pipeline_mode = #tpu.pipeline_mode<synchronous>, transform_indices = @transform_2, window_bounds = array<i64: 2, 32>}, {pipeline_mode = #tpu.pipeline_mode<synchronous>, transform_indices = @transform_3, window_bounds = array<i64: 2, 4, 32, 8>}, {pipeline_mode = #tpu.pipeline_mode<synchronous>, transform_indices = @transform_4, window_bounds = array<i64: 2, 4, 32, 8>}, {pipeline_mode = #tpu.pipeline_mode<synchronous>, transform_indices = @transform_5, window_bounds = array<i64: 2, 4, 32, 8>}, {pipeline_mode = #tpu.pipeline_mode<synchronous>, transform_indices = @transform_6, window_bounds = array<i64: 2, 4, 8, 32>}, {pipeline_mode = #tpu.pipeline_mode<synchronous>, transform_indices = @transform_7, window_bounds = array<i64: 2, 32>}, {pipeline_mode = #tpu.pipeline_mode<synchronous>, transform_indices = @transform_8, window_bounds = array<i64: 2, 32>}, {pipeline_mode = #tpu.pipeline_mode<synchronous>, transform_indices = @transform_9, window_bounds = array<i64: 2, 32>}, {pipeline_mode = #tpu.pipeline_mode<synchronous>, transform_indices = @transform_10, window_bounds = array<i64: 2, 32, 128>}, {pipeline_mode = #tpu.pipeline_mode<synchronous>, transform_indices = @transform_11, window_bounds = array<i64: 2, 128>}, {pipeline_mode = #tpu.pipeline_mode<synchronous>, transform_indices = @transform_12, window_bounds = array<i64: 2, 128, 32>}, {pipeline_mode = #tpu.pipeline_mode<synchronous>, transform_indices = @transform_13, window_bounds = array<i64: 2, 32>}, {pipeline_mode = #tpu.pipeline_mode<synchronous>, transform_indices = @transform_14, window_bounds = array<i64: 1, 32>}, {pipeline_mode = #tpu.pipeline_mode<synchronous>, transform_indices = @transform_15, window_bounds = array<i64: 1, 32>}, {pipeline_mode = #tpu.pipeline_mode<synchronous>, transform_indices = @transform_16, window_bounds = array<i64: 32, 128>}, {transform_indices = @transform_17, window_bounds = array<i64: 1, 8, 128>}]} {
    %c0 = arith.constant 0 : index
    %c0_0 = arith.constant 0 : index
    %c0_1 = arith.constant 0 : index
    %0 = vector.load %arg1[%c0, %c0_0, %c0_1] : memref<1x8x32xf32, #tpu.memory_space<vmem>>, vector<1x8x32xf32>
    %1 = vector.shape_cast %0 : vector<1x8x32xf32> to vector<8x32xf32>
    %2 = tpu.iota {dimensions = array<i32: 0>} : vector<8x8xi32>
    %3 = tpu.iota {dimensions = array<i32: 1>} : vector<8x8xi32>
    %4 = arith.cmpi sgt, %3, %2 : vector<8x8xi32>
    %c0_2 = arith.constant 0 : index
    %c0_3 = arith.constant 0 : index
    %5 = vector.load %arg2[%c0_2, %c0_3] : memref<2x32xf32, #tpu.memory_space<vmem>>, vector<1x32xf32>
    %6 = vector.shape_cast %5 : vector<1x32xf32> to vector<32xf32>
    %c0_4 = arith.constant 0 : index
    %c0_5 = arith.constant 0 : index
    %7 = vector.load %arg3[%c0_4, %c0_5] : memref<2x32xf32, #tpu.memory_space<vmem>>, vector<1x32xf32>
    %8 = vector.shape_cast %7 : vector<1x32xf32> to vector<32xf32>
    %cst = arith.constant dense<0.000000e+00> : vector<8xf32>
    %9 = vector.multi_reduction <add>, %1, %cst [1] : vector<8x32xf32> to vector<8xf32>
    %10 = vector.shape_cast %9 : vector<8xf32> to vector<8x1xf32>
    %cst_6 = arith.constant 3.200000e+01 : f32
    %11 = vector.broadcast %cst_6 : f32 to vector<8x1xf32>
    %12 = arith.divf %10, %11 : vector<8x1xf32>
    %13 = vector.broadcast %12 : vector<8x1xf32> to vector<8x32xf32>
    %14 = arith.subf %1, %13 : vector<8x32xf32>
    %15 = arith.mulf %14, %14 : vector<8x32xf32>
    %cst_7 = arith.constant dense<0.000000e+00> : vector<8xf32>
    %16 = vector.multi_reduction <add>, %15, %cst_7 [1] : vector<8x32xf32> to vector<8xf32>
    %17 = vector.shape_cast %16 : vector<8xf32> to vector<8x1xf32>
    %cst_8 = arith.constant 3.200000e+01 : f32
    %18 = vector.broadcast %cst_8 : f32 to vector<8x1xf32>
    %19 = arith.divf %17, %18 : vector<8x1xf32>
    %20 = vector.broadcast %12 : vector<8x1xf32> to vector<8x32xf32>
    %21 = arith.subf %1, %20 : vector<8x32xf32>
    %cst_9 = arith.constant 9.99999974E-6 : f32
    %22 = vector.broadcast %cst_9 : f32 to vector<8x1xf32>
    %23 = arith.addf %19, %22 : vector<8x1xf32>
    %24 = math.rsqrt %23 : vector<8x1xf32>
    %25 = vector.broadcast %24 : vector<8x1xf32> to vector<8x32xf32>
    %26 = arith.mulf %21, %25 : vector<8x32xf32>
    %27 = vector.shape_cast %6 : vector<32xf32> to vector<1x32xf32>
    %28 = vector.broadcast %27 : vector<1x32xf32> to vector<8x32xf32>
    %29 = arith.mulf %28, %26 : vector<8x32xf32>
    %30 = vector.shape_cast %8 : vector<32xf32> to vector<1x32xf32>
    %31 = vector.broadcast %30 : vector<1x32xf32> to vector<8x32xf32>
    %32 = arith.addf %29, %31 : vector<8x32xf32>
    %33 = arith.truncf %32 : vector<8x32xf32> to vector<8x32xbf16>
    %c0_10 = arith.constant 0 : index
    %c0_11 = arith.constant 0 : index
    %c0_12 = arith.constant 0 : index
    %c0_13 = arith.constant 0 : index
    %34 = vector.load %arg4[%c0_10, %c0_11, %c0_12, %c0_13] : memref<2x4x32x8xbf16, #tpu.memory_space<vmem>>, vector<1x4x32x8xbf16>
    %35 = vector.shape_cast %34 : vector<1x4x32x8xbf16> to vector<4x32x8xbf16>
    %c0_14 = arith.constant 0 : index
    %c0_15 = arith.constant 0 : index
    %c0_16 = arith.constant 0 : index
    %c0_17 = arith.constant 0 : index
    %36 = vector.load %arg5[%c0_14, %c0_15, %c0_16, %c0_17] : memref<2x4x32x8xbf16, #tpu.memory_space<vmem>>, vector<1x4x32x8xbf16>
    %37 = vector.shape_cast %36 : vector<1x4x32x8xbf16> to vector<4x32x8xbf16>
    %c0_18 = arith.constant 0 : index
    %c0_19 = arith.constant 0 : index
    %c0_20 = arith.constant 0 : index
    %c0_21 = arith.constant 0 : index
    %38 = vector.load %arg6[%c0_18, %c0_19, %c0_20, %c0_21] : memref<2x4x32x8xbf16, #tpu.memory_space<vmem>>, vector<1x4x32x8xbf16>
    %39 = vector.shape_cast %38 : vector<1x4x32x8xbf16> to vector<4x32x8xbf16>
    %c0_22 = arith.constant 0 : index
    %c0_23 = arith.constant 0 : index
    %c0_24 = arith.constant 0 : index
    %c0_25 = arith.constant 0 : index
    %40 = vector.load %arg7[%c0_22, %c0_23, %c0_24, %c0_25] : memref<2x4x8x32xbf16, #tpu.memory_space<vmem>>, vector<1x4x8x32xbf16>
    %41 = vector.shape_cast %40 : vector<1x4x8x32xbf16> to vector<4x8x32xbf16>
    %cst_26 = arith.constant 0.000000e+00 : f32
    %42 = vector.broadcast %cst_26 : f32 to vector<8x32xf32>
    %43 = vector.extract_strided_slice %35 {offsets = [0, 0, 0], sizes = [1, 32, 8], strides = [1, 1, 1]} : vector<4x32x8xbf16> to vector<1x32x8xbf16>
    %44 = vector.shape_cast %43 : vector<1x32x8xbf16> to vector<32x8xbf16>
    %cst_27 = arith.constant dense<0.000000e+00> : vector<8x8xf32>
    %45 = tpu.matmul %33, %44, %cst_27 {dimension_numbers = #tpu.dot_dimension_numbers<[1], [0], [0], [1], [0, 0, 1, 1], [], []>} : vector<8x32xbf16>, vector<32x8xbf16>, vector<8x8xf32> -> vector<8x8xf32>
    %cst_28 = arith.constant 0.353553385 : f32
    %46 = vector.broadcast %cst_28 : f32 to vector<8x8xf32>
    %47 = arith.mulf %45, %46 : vector<8x8xf32>
    %48 = vector.extract_strided_slice %37 {offsets = [0, 0, 0], sizes = [1, 32, 8], strides = [1, 1, 1]} : vector<4x32x8xbf16> to vector<1x32x8xbf16>
    %49 = vector.shape_cast %48 : vector<1x32x8xbf16> to vector<32x8xbf16>
    %cst_29 = arith.constant dense<0.000000e+00> : vector<8x8xf32>
    %50 = tpu.matmul %33, %49, %cst_29 {dimension_numbers = #tpu.dot_dimension_numbers<[1], [0], [0], [1], [0, 0, 1, 1], [], []>} : vector<8x32xbf16>, vector<32x8xbf16>, vector<8x8xf32> -> vector<8x8xf32>
    %51 = vector.extract_strided_slice %39 {offsets = [0, 0, 0], sizes = [1, 32, 8], strides = [1, 1, 1]} : vector<4x32x8xbf16> to vector<1x32x8xbf16>
    %52 = vector.shape_cast %51 : vector<1x32x8xbf16> to vector<32x8xbf16>
    %cst_30 = arith.constant dense<0.000000e+00> : vector<8x8xf32>
    %53 = tpu.matmul %33, %52, %cst_30 {dimension_numbers = #tpu.dot_dimension_numbers<[1], [0], [0], [1], [0, 0, 1, 1], [], []>} : vector<8x32xbf16>, vector<32x8xbf16>, vector<8x8xf32> -> vector<8x8xf32>
    %54 = arith.truncf %47 : vector<8x8xf32> to vector<8x8xbf16>
    %55 = arith.truncf %50 : vector<8x8xf32> to vector<8x8xbf16>
    %cst_31 = arith.constant dense<0.000000e+00> : vector<8x8xf32>
    %56 = tpu.matmul %54, %55, %cst_31 {dimension_numbers = #tpu.dot_dimension_numbers<[1], [1], [0], [0], [0, 0, 1, 0], [], []>} : vector<8x8xbf16>, vector<8x8xbf16>, vector<8x8xf32> -> vector<8x8xf32>
    %cst_32 = arith.constant -1.000000e+30 : f32
    %57 = vector.broadcast %cst_32 : f32 to vector<8x8xf32>
    %58 = arith.select %4, %57, %56 : vector<8x8xi1>, vector<8x8xf32>
    %cst_33 = arith.constant dense<0xFF800000> : vector<8xf32>
    %59 = vector.multi_reduction <maximumf>, %58, %cst_33 [1] : vector<8x8xf32> to vector<8xf32>
    %60 = vector.shape_cast %59 : vector<8xf32> to vector<8x1xf32>
    %61 = vector.broadcast %60 : vector<8x1xf32> to vector<8x8xf32>
    %62 = arith.subf %58, %61 : vector<8x8xf32>
    %63 = math.exp %62 : vector<8x8xf32>
    %cst_34 = arith.constant dense<0.000000e+00> : vector<8xf32>
    %64 = vector.multi_reduction <add>, %63, %cst_34 [1] : vector<8x8xf32> to vector<8xf32>
    %65 = vector.shape_cast %64 : vector<8xf32> to vector<8x1xf32>
    %66 = tpu.reciprocal %65 {approx = true} : vector<8x1xf32> -> vector<8x1xf32>
    %67 = vector.broadcast %66 : vector<8x1xf32> to vector<8x8xf32>
    %68 = arith.mulf %63, %67 : vector<8x8xf32>
    %69 = arith.truncf %68 : vector<8x8xf32> to vector<8x8xbf16>
    %70 = arith.truncf %53 : vector<8x8xf32> to vector<8x8xbf16>
    %cst_35 = arith.constant dense<0.000000e+00> : vector<8x8xf32>
    %71 = tpu.matmul %69, %70, %cst_35 {dimension_numbers = #tpu.dot_dimension_numbers<[1], [0], [0], [1], [0, 0, 1, 1], [], []>} : vector<8x8xbf16>, vector<8x8xbf16>, vector<8x8xf32> -> vector<8x8xf32>
    %72 = arith.truncf %71 : vector<8x8xf32> to vector<8x8xbf16>
    %73 = vector.extract_strided_slice %41 {offsets = [0, 0, 0], sizes = [1, 8, 32], strides = [1, 1, 1]} : vector<4x8x32xbf16> to vector<1x8x32xbf16>
    %74 = vector.shape_cast %73 : vector<1x8x32xbf16> to vector<8x32xbf16>
    %cst_36 = arith.constant dense<0.000000e+00> : vector<8x32xf32>
    %75 = tpu.matmul %72, %74, %cst_36 {dimension_numbers = #tpu.dot_dimension_numbers<[1], [0], [0], [1], [0, 0, 1, 1], [], []>} : vector<8x8xbf16>, vector<8x32xbf16>, vector<8x32xf32> -> vector<8x32xf32>
    %76 = arith.addf %42, %75 : vector<8x32xf32>
    %77 = vector.extract_strided_slice %35 {offsets = [1, 0, 0], sizes = [1, 32, 8], strides = [1, 1, 1]} : vector<4x32x8xbf16> to vector<1x32x8xbf16>
    %78 = vector.shape_cast %77 : vector<1x32x8xbf16> to vector<32x8xbf16>
    %cst_37 = arith.constant dense<0.000000e+00> : vector<8x8xf32>
    %79 = tpu.matmul %33, %78, %cst_37 {dimension_numbers = #tpu.dot_dimension_numbers<[1], [0], [0], [1], [0, 0, 1, 1], [], []>} : vector<8x32xbf16>, vector<32x8xbf16>, vector<8x8xf32> -> vector<8x8xf32>
    %cst_38 = arith.constant 0.353553385 : f32
    %80 = vector.broadcast %cst_38 : f32 to vector<8x8xf32>
    %81 = arith.mulf %79, %80 : vector<8x8xf32>
    %82 = vector.extract_strided_slice %37 {offsets = [1, 0, 0], sizes = [1, 32, 8], strides = [1, 1, 1]} : vector<4x32x8xbf16> to vector<1x32x8xbf16>
    %83 = vector.shape_cast %82 : vector<1x32x8xbf16> to vector<32x8xbf16>
    %cst_39 = arith.constant dense<0.000000e+00> : vector<8x8xf32>
    %84 = tpu.matmul %33, %83, %cst_39 {dimension_numbers = #tpu.dot_dimension_numbers<[1], [0], [0], [1], [0, 0, 1, 1], [], []>} : vector<8x32xbf16>, vector<32x8xbf16>, vector<8x8xf32> -> vector<8x8xf32>
    %85 = vector.extract_strided_slice %39 {offsets = [1, 0, 0], sizes = [1, 32, 8], strides = [1, 1, 1]} : vector<4x32x8xbf16> to vector<1x32x8xbf16>
    %86 = vector.shape_cast %85 : vector<1x32x8xbf16> to vector<32x8xbf16>
    %cst_40 = arith.constant dense<0.000000e+00> : vector<8x8xf32>
    %87 = tpu.matmul %33, %86, %cst_40 {dimension_numbers = #tpu.dot_dimension_numbers<[1], [0], [0], [1], [0, 0, 1, 1], [], []>} : vector<8x32xbf16>, vector<32x8xbf16>, vector<8x8xf32> -> vector<8x8xf32>
    %88 = arith.truncf %81 : vector<8x8xf32> to vector<8x8xbf16>
    %89 = arith.truncf %84 : vector<8x8xf32> to vector<8x8xbf16>
    %cst_41 = arith.constant dense<0.000000e+00> : vector<8x8xf32>
    %90 = tpu.matmul %88, %89, %cst_41 {dimension_numbers = #tpu.dot_dimension_numbers<[1], [1], [0], [0], [0, 0, 1, 0], [], []>} : vector<8x8xbf16>, vector<8x8xbf16>, vector<8x8xf32> -> vector<8x8xf32>
    %cst_42 = arith.constant -1.000000e+30 : f32
    %91 = vector.broadcast %cst_42 : f32 to vector<8x8xf32>
    %92 = arith.select %4, %91, %90 : vector<8x8xi1>, vector<8x8xf32>
    %cst_43 = arith.constant dense<0xFF800000> : vector<8xf32>
    %93 = vector.multi_reduction <maximumf>, %92, %cst_43 [1] : vector<8x8xf32> to vector<8xf32>
    %94 = vector.shape_cast %93 : vector<8xf32> to vector<8x1xf32>
    %95 = vector.broadcast %94 : vector<8x1xf32> to vector<8x8xf32>
    %96 = arith.subf %92, %95 : vector<8x8xf32>
    %97 = math.exp %96 : vector<8x8xf32>
    %cst_44 = arith.constant dense<0.000000e+00> : vector<8xf32>
    %98 = vector.multi_reduction <add>, %97, %cst_44 [1] : vector<8x8xf32> to vector<8xf32>
    %99 = vector.shape_cast %98 : vector<8xf32> to vector<8x1xf32>
    %100 = tpu.reciprocal %99 {approx = true} : vector<8x1xf32> -> vector<8x1xf32>
    %101 = vector.broadcast %100 : vector<8x1xf32> to vector<8x8xf32>
    %102 = arith.mulf %97, %101 : vector<8x8xf32>
    %103 = arith.truncf %102 : vector<8x8xf32> to vector<8x8xbf16>
    %104 = arith.truncf %87 : vector<8x8xf32> to vector<8x8xbf16>
    %cst_45 = arith.constant dense<0.000000e+00> : vector<8x8xf32>
    %105 = tpu.matmul %103, %104, %cst_45 {dimension_numbers = #tpu.dot_dimension_numbers<[1], [0], [0], [1], [0, 0, 1, 1], [], []>} : vector<8x8xbf16>, vector<8x8xbf16>, vector<8x8xf32> -> vector<8x8xf32>
    %106 = arith.truncf %105 : vector<8x8xf32> to vector<8x8xbf16>
    %107 = vector.extract_strided_slice %41 {offsets = [1, 0, 0], sizes = [1, 8, 32], strides = [1, 1, 1]} : vector<4x8x32xbf16> to vector<1x8x32xbf16>
    %108 = vector.shape_cast %107 : vector<1x8x32xbf16> to vector<8x32xbf16>
    %cst_46 = arith.constant dense<0.000000e+00> : vector<8x32xf32>
    %109 = tpu.matmul %106, %108, %cst_46 {dimension_numbers = #tpu.dot_dimension_numbers<[1], [0], [0], [1], [0, 0, 1, 1], [], []>} : vector<8x8xbf16>, vector<8x32xbf16>, vector<8x32xf32> -> vector<8x32xf32>
    %110 = arith.addf %76, %109 : vector<8x32xf32>
    %111 = vector.extract_strided_slice %35 {offsets = [2, 0, 0], sizes = [1, 32, 8], strides = [1, 1, 1]} : vector<4x32x8xbf16> to vector<1x32x8xbf16>
    %112 = vector.shape_cast %111 : vector<1x32x8xbf16> to vector<32x8xbf16>
    %cst_47 = arith.constant dense<0.000000e+00> : vector<8x8xf32>
    %113 = tpu.matmul %33, %112, %cst_47 {dimension_numbers = #tpu.dot_dimension_numbers<[1], [0], [0], [1], [0, 0, 1, 1], [], []>} : vector<8x32xbf16>, vector<32x8xbf16>, vector<8x8xf32> -> vector<8x8xf32>
    %cst_48 = arith.constant 0.353553385 : f32
    %114 = vector.broadcast %cst_48 : f32 to vector<8x8xf32>
    %115 = arith.mulf %113, %114 : vector<8x8xf32>
    %116 = vector.extract_strided_slice %37 {offsets = [2, 0, 0], sizes = [1, 32, 8], strides = [1, 1, 1]} : vector<4x32x8xbf16> to vector<1x32x8xbf16>
    %117 = vector.shape_cast %116 : vector<1x32x8xbf16> to vector<32x8xbf16>
    %cst_49 = arith.constant dense<0.000000e+00> : vector<8x8xf32>
    %118 = tpu.matmul %33, %117, %cst_49 {dimension_numbers = #tpu.dot_dimension_numbers<[1], [0], [0], [1], [0, 0, 1, 1], [], []>} : vector<8x32xbf16>, vector<32x8xbf16>, vector<8x8xf32> -> vector<8x8xf32>
    %119 = vector.extract_strided_slice %39 {offsets = [2, 0, 0], sizes = [1, 32, 8], strides = [1, 1, 1]} : vector<4x32x8xbf16> to vector<1x32x8xbf16>
    %120 = vector.shape_cast %119 : vector<1x32x8xbf16> to vector<32x8xbf16>
    %cst_50 = arith.constant dense<0.000000e+00> : vector<8x8xf32>
    %121 = tpu.matmul %33, %120, %cst_50 {dimension_numbers = #tpu.dot_dimension_numbers<[1], [0], [0], [1], [0, 0, 1, 1], [], []>} : vector<8x32xbf16>, vector<32x8xbf16>, vector<8x8xf32> -> vector<8x8xf32>
    %122 = arith.truncf %115 : vector<8x8xf32> to vector<8x8xbf16>
    %123 = arith.truncf %118 : vector<8x8xf32> to vector<8x8xbf16>
    %cst_51 = arith.constant dense<0.000000e+00> : vector<8x8xf32>
    %124 = tpu.matmul %122, %123, %cst_51 {dimension_numbers = #tpu.dot_dimension_numbers<[1], [1], [0], [0], [0, 0, 1, 0], [], []>} : vector<8x8xbf16>, vector<8x8xbf16>, vector<8x8xf32> -> vector<8x8xf32>
    %cst_52 = arith.constant -1.000000e+30 : f32
    %125 = vector.broadcast %cst_52 : f32 to vector<8x8xf32>
    %126 = arith.select %4, %125, %124 : vector<8x8xi1>, vector<8x8xf32>
    %cst_53 = arith.constant dense<0xFF800000> : vector<8xf32>
    %127 = vector.multi_reduction <maximumf>, %126, %cst_53 [1] : vector<8x8xf32> to vector<8xf32>
    %128 = vector.shape_cast %127 : vector<8xf32> to vector<8x1xf32>
    %129 = vector.broadcast %128 : vector<8x1xf32> to vector<8x8xf32>
    %130 = arith.subf %126, %129 : vector<8x8xf32>
    %131 = math.exp %130 : vector<8x8xf32>
    %cst_54 = arith.constant dense<0.000000e+00> : vector<8xf32>
    %132 = vector.multi_reduction <add>, %131, %cst_54 [1] : vector<8x8xf32> to vector<8xf32>
    %133 = vector.shape_cast %132 : vector<8xf32> to vector<8x1xf32>
    %134 = tpu.reciprocal %133 {approx = true} : vector<8x1xf32> -> vector<8x1xf32>
    %135 = vector.broadcast %134 : vector<8x1xf32> to vector<8x8xf32>
    %136 = arith.mulf %131, %135 : vector<8x8xf32>
    %137 = arith.truncf %136 : vector<8x8xf32> to vector<8x8xbf16>
    %138 = arith.truncf %121 : vector<8x8xf32> to vector<8x8xbf16>
    %cst_55 = arith.constant dense<0.000000e+00> : vector<8x8xf32>
    %139 = tpu.matmul %137, %138, %cst_55 {dimension_numbers = #tpu.dot_dimension_numbers<[1], [0], [0], [1], [0, 0, 1, 1], [], []>} : vector<8x8xbf16>, vector<8x8xbf16>, vector<8x8xf32> -> vector<8x8xf32>
    %140 = arith.truncf %139 : vector<8x8xf32> to vector<8x8xbf16>
    %141 = vector.extract_strided_slice %41 {offsets = [2, 0, 0], sizes = [1, 8, 32], strides = [1, 1, 1]} : vector<4x8x32xbf16> to vector<1x8x32xbf16>
    %142 = vector.shape_cast %141 : vector<1x8x32xbf16> to vector<8x32xbf16>
    %cst_56 = arith.constant dense<0.000000e+00> : vector<8x32xf32>
    %143 = tpu.matmul %140, %142, %cst_56 {dimension_numbers = #tpu.dot_dimension_numbers<[1], [0], [0], [1], [0, 0, 1, 1], [], []>} : vector<8x8xbf16>, vector<8x32xbf16>, vector<8x32xf32> -> vector<8x32xf32>
    %144 = arith.addf %110, %143 : vector<8x32xf32>
    %145 = vector.extract_strided_slice %35 {offsets = [3, 0, 0], sizes = [1, 32, 8], strides = [1, 1, 1]} : vector<4x32x8xbf16> to vector<1x32x8xbf16>
    %146 = vector.shape_cast %145 : vector<1x32x8xbf16> to vector<32x8xbf16>
    %cst_57 = arith.constant dense<0.000000e+00> : vector<8x8xf32>
    %147 = tpu.matmul %33, %146, %cst_57 {dimension_numbers = #tpu.dot_dimension_numbers<[1], [0], [0], [1], [0, 0, 1, 1], [], []>} : vector<8x32xbf16>, vector<32x8xbf16>, vector<8x8xf32> -> vector<8x8xf32>
    %cst_58 = arith.constant 0.353553385 : f32
    %148 = vector.broadcast %cst_58 : f32 to vector<8x8xf32>
    %149 = arith.mulf %147, %148 : vector<8x8xf32>
    %150 = vector.extract_strided_slice %37 {offsets = [3, 0, 0], sizes = [1, 32, 8], strides = [1, 1, 1]} : vector<4x32x8xbf16> to vector<1x32x8xbf16>
    %151 = vector.shape_cast %150 : vector<1x32x8xbf16> to vector<32x8xbf16>
    %cst_59 = arith.constant dense<0.000000e+00> : vector<8x8xf32>
    %152 = tpu.matmul %33, %151, %cst_59 {dimension_numbers = #tpu.dot_dimension_numbers<[1], [0], [0], [1], [0, 0, 1, 1], [], []>} : vector<8x32xbf16>, vector<32x8xbf16>, vector<8x8xf32> -> vector<8x8xf32>
    %153 = vector.extract_strided_slice %39 {offsets = [3, 0, 0], sizes = [1, 32, 8], strides = [1, 1, 1]} : vector<4x32x8xbf16> to vector<1x32x8xbf16>
    %154 = vector.shape_cast %153 : vector<1x32x8xbf16> to vector<32x8xbf16>
    %cst_60 = arith.constant dense<0.000000e+00> : vector<8x8xf32>
    %155 = tpu.matmul %33, %154, %cst_60 {dimension_numbers = #tpu.dot_dimension_numbers<[1], [0], [0], [1], [0, 0, 1, 1], [], []>} : vector<8x32xbf16>, vector<32x8xbf16>, vector<8x8xf32> -> vector<8x8xf32>
    %156 = arith.truncf %149 : vector<8x8xf32> to vector<8x8xbf16>
    %157 = arith.truncf %152 : vector<8x8xf32> to vector<8x8xbf16>
    %cst_61 = arith.constant dense<0.000000e+00> : vector<8x8xf32>
    %158 = tpu.matmul %156, %157, %cst_61 {dimension_numbers = #tpu.dot_dimension_numbers<[1], [1], [0], [0], [0, 0, 1, 0], [], []>} : vector<8x8xbf16>, vector<8x8xbf16>, vector<8x8xf32> -> vector<8x8xf32>
    %cst_62 = arith.constant -1.000000e+30 : f32
    %159 = vector.broadcast %cst_62 : f32 to vector<8x8xf32>
    %160 = arith.select %4, %159, %158 : vector<8x8xi1>, vector<8x8xf32>
    %cst_63 = arith.constant dense<0xFF800000> : vector<8xf32>
    %161 = vector.multi_reduction <maximumf>, %160, %cst_63 [1] : vector<8x8xf32> to vector<8xf32>
    %162 = vector.shape_cast %161 : vector<8xf32> to vector<8x1xf32>
    %163 = vector.broadcast %162 : vector<8x1xf32> to vector<8x8xf32>
    %164 = arith.subf %160, %163 : vector<8x8xf32>
    %165 = math.exp %164 : vector<8x8xf32>
    %cst_64 = arith.constant dense<0.000000e+00> : vector<8xf32>
    %166 = vector.multi_reduction <add>, %165, %cst_64 [1] : vector<8x8xf32> to vector<8xf32>
    %167 = vector.shape_cast %166 : vector<8xf32> to vector<8x1xf32>
    %168 = tpu.reciprocal %167 {approx = true} : vector<8x1xf32> -> vector<8x1xf32>
    %169 = vector.broadcast %168 : vector<8x1xf32> to vector<8x8xf32>
    %170 = arith.mulf %165, %169 : vector<8x8xf32>
    %171 = arith.truncf %170 : vector<8x8xf32> to vector<8x8xbf16>
    %172 = arith.truncf %155 : vector<8x8xf32> to vector<8x8xbf16>
    %cst_65 = arith.constant dense<0.000000e+00> : vector<8x8xf32>
    %173 = tpu.matmul %171, %172, %cst_65 {dimension_numbers = #tpu.dot_dimension_numbers<[1], [0], [0], [1], [0, 0, 1, 1], [], []>} : vector<8x8xbf16>, vector<8x8xbf16>, vector<8x8xf32> -> vector<8x8xf32>
    %174 = arith.truncf %173 : vector<8x8xf32> to vector<8x8xbf16>
    %175 = vector.extract_strided_slice %41 {offsets = [3, 0, 0], sizes = [1, 8, 32], strides = [1, 1, 1]} : vector<4x8x32xbf16> to vector<1x8x32xbf16>
    %176 = vector.shape_cast %175 : vector<1x8x32xbf16> to vector<8x32xbf16>
    %cst_66 = arith.constant dense<0.000000e+00> : vector<8x32xf32>
    %177 = tpu.matmul %174, %176, %cst_66 {dimension_numbers = #tpu.dot_dimension_numbers<[1], [0], [0], [1], [0, 0, 1, 1], [], []>} : vector<8x8xbf16>, vector<8x32xbf16>, vector<8x32xf32> -> vector<8x32xf32>
    %178 = arith.addf %144, %177 : vector<8x32xf32>
    %179 = arith.addf %1, %178 : vector<8x32xf32>
    %c0_67 = arith.constant 0 : index
    %c0_68 = arith.constant 0 : index
    %180 = vector.load %arg8[%c0_67, %c0_68] : memref<2x32xf32, #tpu.memory_space<vmem>>, vector<1x32xf32>
    %181 = vector.shape_cast %180 : vector<1x32xf32> to vector<32xf32>
    %182 = vector.shape_cast %181 : vector<32xf32> to vector<1x32xf32>
    %183 = vector.broadcast %182 : vector<1x32xf32> to vector<8x32xf32>
    %184 = arith.addf %179, %183 : vector<8x32xf32>
    %c0_69 = arith.constant 0 : index
    %c0_70 = arith.constant 0 : index
    %185 = vector.load %arg9[%c0_69, %c0_70] : memref<2x32xf32, #tpu.memory_space<vmem>>, vector<1x32xf32>
    %186 = vector.shape_cast %185 : vector<1x32xf32> to vector<32xf32>
    %c0_71 = arith.constant 0 : index
    %c0_72 = arith.constant 0 : index
    %187 = vector.load %arg10[%c0_71, %c0_72] : memref<2x32xf32, #tpu.memory_space<vmem>>, vector<1x32xf32>
    %188 = vector.shape_cast %187 : vector<1x32xf32> to vector<32xf32>
    %cst_73 = arith.constant dense<0.000000e+00> : vector<8xf32>
    %189 = vector.multi_reduction <add>, %184, %cst_73 [1] : vector<8x32xf32> to vector<8xf32>
    %190 = vector.shape_cast %189 : vector<8xf32> to vector<8x1xf32>
    %cst_74 = arith.constant 3.200000e+01 : f32
    %191 = vector.broadcast %cst_74 : f32 to vector<8x1xf32>
    %192 = arith.divf %190, %191 : vector<8x1xf32>
    %193 = vector.broadcast %192 : vector<8x1xf32> to vector<8x32xf32>
    %194 = arith.subf %184, %193 : vector<8x32xf32>
    %195 = arith.mulf %194, %194 : vector<8x32xf32>
    %cst_75 = arith.constant dense<0.000000e+00> : vector<8xf32>
    %196 = vector.multi_reduction <add>, %195, %cst_75 [1] : vector<8x32xf32> to vector<8xf32>
    %197 = vector.shape_cast %196 : vector<8xf32> to vector<8x1xf32>
    %cst_76 = arith.constant 3.200000e+01 : f32
    %198 = vector.broadcast %cst_76 : f32 to vector<8x1xf32>
    %199 = arith.divf %197, %198 : vector<8x1xf32>
    %200 = vector.broadcast %192 : vector<8x1xf32> to vector<8x32xf32>
    %201 = arith.subf %184, %200 : vector<8x32xf32>
    %cst_77 = arith.constant 9.99999974E-6 : f32
    %202 = vector.broadcast %cst_77 : f32 to vector<8x1xf32>
    %203 = arith.addf %199, %202 : vector<8x1xf32>
    %204 = math.rsqrt %203 : vector<8x1xf32>
    %205 = vector.broadcast %204 : vector<8x1xf32> to vector<8x32xf32>
    %206 = arith.mulf %201, %205 : vector<8x32xf32>
    %207 = vector.shape_cast %186 : vector<32xf32> to vector<1x32xf32>
    %208 = vector.broadcast %207 : vector<1x32xf32> to vector<8x32xf32>
    %209 = arith.mulf %208, %206 : vector<8x32xf32>
    %210 = vector.shape_cast %188 : vector<32xf32> to vector<1x32xf32>
    %211 = vector.broadcast %210 : vector<1x32xf32> to vector<8x32xf32>
    %212 = arith.addf %209, %211 : vector<8x32xf32>
    %213 = arith.truncf %212 : vector<8x32xf32> to vector<8x32xbf16>
    %c0_78 = arith.constant 0 : index
    %c0_79 = arith.constant 0 : index
    %c0_80 = arith.constant 0 : index
    %214 = vector.load %arg11[%c0_78, %c0_79, %c0_80] : memref<2x32x128xbf16, #tpu.memory_space<vmem>>, vector<1x32x128xbf16>
    %215 = vector.shape_cast %214 : vector<1x32x128xbf16> to vector<32x128xbf16>
    %cst_81 = arith.constant dense<0.000000e+00> : vector<8x128xf32>
    %216 = tpu.matmul %213, %215, %cst_81 {dimension_numbers = #tpu.dot_dimension_numbers<[1], [0], [0], [1], [0, 0, 1, 1], [], []>} : vector<8x32xbf16>, vector<32x128xbf16>, vector<8x128xf32> -> vector<8x128xf32>
    %c0_82 = arith.constant 0 : index
    %c0_83 = arith.constant 0 : index
    %217 = vector.load %arg12[%c0_82, %c0_83] : memref<2x128xf32, #tpu.memory_space<vmem>>, vector<1x128xf32>
    %218 = vector.shape_cast %217 : vector<1x128xf32> to vector<128xf32>
    %219 = vector.shape_cast %218 : vector<128xf32> to vector<1x128xf32>
    %220 = vector.broadcast %219 : vector<1x128xf32> to vector<8x128xf32>
    %221 = arith.addf %216, %220 : vector<8x128xf32>
    %cst_84 = arith.constant 5.000000e-01 : f32
    %222 = vector.broadcast %cst_84 : f32 to vector<8x128xf32>
    %223 = arith.mulf %222, %221 : vector<8x128xf32>
    %cst_85 = arith.constant 4.471500e-02 : f32
    %224 = vector.broadcast %cst_85 : f32 to vector<8x128xf32>
    %225 = arith.mulf %224, %221 : vector<8x128xf32>
    %226 = arith.mulf %225, %221 : vector<8x128xf32>
    %227 = arith.mulf %226, %221 : vector<8x128xf32>
    %228 = arith.addf %221, %227 : vector<8x128xf32>
    %cst_86 = arith.constant 0.797884583 : f32
    %229 = vector.broadcast %cst_86 : f32 to vector<8x128xf32>
    %230 = arith.mulf %229, %228 : vector<8x128xf32>
    %231 = math.tanh %230 : vector<8x128xf32>
    %cst_87 = arith.constant 1.000000e+00 : f32
    %232 = vector.broadcast %cst_87 : f32 to vector<8x128xf32>
    %233 = arith.addf %232, %231 : vector<8x128xf32>
    %234 = arith.mulf %223, %233 : vector<8x128xf32>
    %235 = arith.truncf %234 : vector<8x128xf32> to vector<8x128xbf16>
    %c0_88 = arith.constant 0 : index
    %c0_89 = arith.constant 0 : index
    %c0_90 = arith.constant 0 : index
    %236 = vector.load %arg13[%c0_88, %c0_89, %c0_90] : memref<2x128x32xbf16, #tpu.memory_space<vmem>>, vector<1x128x32xbf16>
    %237 = vector.shape_cast %236 : vector<1x128x32xbf16> to vector<128x32xbf16>
    %cst_91 = arith.constant dense<0.000000e+00> : vector<8x32xf32>
    %238 = tpu.matmul %235, %237, %cst_91 {dimension_numbers = #tpu.dot_dimension_numbers<[1], [0], [0], [1], [0, 0, 1, 1], [], []>} : vector<8x128xbf16>, vector<128x32xbf16>, vector<8x32xf32> -> vector<8x32xf32>
    %c0_92 = arith.constant 0 : index
    %c0_93 = arith.constant 0 : index
    %239 = vector.load %arg14[%c0_92, %c0_93] : memref<2x32xf32, #tpu.memory_space<vmem>>, vector<1x32xf32>
    %240 = vector.shape_cast %239 : vector<1x32xf32> to vector<32xf32>
    %241 = vector.shape_cast %240 : vector<32xf32> to vector<1x32xf32>
    %242 = vector.broadcast %241 : vector<1x32xf32> to vector<8x32xf32>
    %243 = arith.addf %238, %242 : vector<8x32xf32>
    %244 = arith.addf %184, %243 : vector<8x32xf32>
    %c1 = arith.constant 1 : index
    %c0_94 = arith.constant 0 : index
    %245 = vector.load %arg2[%c1, %c0_94] : memref<2x32xf32, #tpu.memory_space<vmem>>, vector<1x32xf32>
    %246 = vector.shape_cast %245 : vector<1x32xf32> to vector<32xf32>
    %c1_95 = arith.constant 1 : index
    %c0_96 = arith.constant 0 : index
    %247 = vector.load %arg3[%c1_95, %c0_96] : memref<2x32xf32, #tpu.memory_space<vmem>>, vector<1x32xf32>
    %248 = vector.shape_cast %247 : vector<1x32xf32> to vector<32xf32>
    %cst_97 = arith.constant dense<0.000000e+00> : vector<8xf32>
    %249 = vector.multi_reduction <add>, %244, %cst_97 [1] : vector<8x32xf32> to vector<8xf32>
    %250 = vector.shape_cast %249 : vector<8xf32> to vector<8x1xf32>
    %cst_98 = arith.constant 3.200000e+01 : f32
    %251 = vector.broadcast %cst_98 : f32 to vector<8x1xf32>
    %252 = arith.divf %250, %251 : vector<8x1xf32>
    %253 = vector.broadcast %252 : vector<8x1xf32> to vector<8x32xf32>
    %254 = arith.subf %244, %253 : vector<8x32xf32>
    %255 = arith.mulf %254, %254 : vector<8x32xf32>
    %cst_99 = arith.constant dense<0.000000e+00> : vector<8xf32>
    %256 = vector.multi_reduction <add>, %255, %cst_99 [1] : vector<8x32xf32> to vector<8xf32>
    %257 = vector.shape_cast %256 : vector<8xf32> to vector<8x1xf32>
    %cst_100 = arith.constant 3.200000e+01 : f32
    %258 = vector.broadcast %cst_100 : f32 to vector<8x1xf32>
    %259 = arith.divf %257, %258 : vector<8x1xf32>
    %260 = vector.broadcast %252 : vector<8x1xf32> to vector<8x32xf32>
    %261 = arith.subf %244, %260 : vector<8x32xf32>
    %cst_101 = arith.constant 9.99999974E-6 : f32
    %262 = vector.broadcast %cst_101 : f32 to vector<8x1xf32>
    %263 = arith.addf %259, %262 : vector<8x1xf32>
    %264 = math.rsqrt %263 : vector<8x1xf32>
    %265 = vector.broadcast %264 : vector<8x1xf32> to vector<8x32xf32>
    %266 = arith.mulf %261, %265 : vector<8x32xf32>
    %267 = vector.shape_cast %246 : vector<32xf32> to vector<1x32xf32>
    %268 = vector.broadcast %267 : vector<1x32xf32> to vector<8x32xf32>
    %269 = arith.mulf %268, %266 : vector<8x32xf32>
    %270 = vector.shape_cast %248 : vector<32xf32> to vector<1x32xf32>
    %271 = vector.broadcast %270 : vector<1x32xf32> to vector<8x32xf32>
    %272 = arith.addf %269, %271 : vector<8x32xf32>
    %273 = arith.truncf %272 : vector<8x32xf32> to vector<8x32xbf16>
    %c1_102 = arith.constant 1 : index
    %c0_103 = arith.constant 0 : index
    %c0_104 = arith.constant 0 : index
    %c0_105 = arith.constant 0 : index
    %274 = vector.load %arg4[%c1_102, %c0_103, %c0_104, %c0_105] : memref<2x4x32x8xbf16, #tpu.memory_space<vmem>>, vector<1x4x32x8xbf16>
    %275 = vector.shape_cast %274 : vector<1x4x32x8xbf16> to vector<4x32x8xbf16>
    %c1_106 = arith.constant 1 : index
    %c0_107 = arith.constant 0 : index
    %c0_108 = arith.constant 0 : index
    %c0_109 = arith.constant 0 : index
    %276 = vector.load %arg5[%c1_106, %c0_107, %c0_108, %c0_109] : memref<2x4x32x8xbf16, #tpu.memory_space<vmem>>, vector<1x4x32x8xbf16>
    %277 = vector.shape_cast %276 : vector<1x4x32x8xbf16> to vector<4x32x8xbf16>
    %c1_110 = arith.constant 1 : index
    %c0_111 = arith.constant 0 : index
    %c0_112 = arith.constant 0 : index
    %c0_113 = arith.constant 0 : index
    %278 = vector.load %arg6[%c1_110, %c0_111, %c0_112, %c0_113] : memref<2x4x32x8xbf16, #tpu.memory_space<vmem>>, vector<1x4x32x8xbf16>
    %279 = vector.shape_cast %278 : vector<1x4x32x8xbf16> to vector<4x32x8xbf16>
    %c1_114 = arith.constant 1 : index
    %c0_115 = arith.constant 0 : index
    %c0_116 = arith.constant 0 : index
    %c0_117 = arith.constant 0 : index
    %280 = vector.load %arg7[%c1_114, %c0_115, %c0_116, %c0_117] : memref<2x4x8x32xbf16, #tpu.memory_space<vmem>>, vector<1x4x8x32xbf16>
    %281 = vector.shape_cast %280 : vector<1x4x8x32xbf16> to vector<4x8x32xbf16>
    %cst_118 = arith.constant 0.000000e+00 : f32
    %282 = vector.broadcast %cst_118 : f32 to vector<8x32xf32>
    %283 = vector.extract_strided_slice %275 {offsets = [0, 0, 0], sizes = [1, 32, 8], strides = [1, 1, 1]} : vector<4x32x8xbf16> to vector<1x32x8xbf16>
    %284 = vector.shape_cast %283 : vector<1x32x8xbf16> to vector<32x8xbf16>
    %cst_119 = arith.constant dense<0.000000e+00> : vector<8x8xf32>
    %285 = tpu.matmul %273, %284, %cst_119 {dimension_numbers = #tpu.dot_dimension_numbers<[1], [0], [0], [1], [0, 0, 1, 1], [], []>} : vector<8x32xbf16>, vector<32x8xbf16>, vector<8x8xf32> -> vector<8x8xf32>
    %cst_120 = arith.constant 0.353553385 : f32
    %286 = vector.broadcast %cst_120 : f32 to vector<8x8xf32>
    %287 = arith.mulf %285, %286 : vector<8x8xf32>
    %288 = vector.extract_strided_slice %277 {offsets = [0, 0, 0], sizes = [1, 32, 8], strides = [1, 1, 1]} : vector<4x32x8xbf16> to vector<1x32x8xbf16>
    %289 = vector.shape_cast %288 : vector<1x32x8xbf16> to vector<32x8xbf16>
    %cst_121 = arith.constant dense<0.000000e+00> : vector<8x8xf32>
    %290 = tpu.matmul %273, %289, %cst_121 {dimension_numbers = #tpu.dot_dimension_numbers<[1], [0], [0], [1], [0, 0, 1, 1], [], []>} : vector<8x32xbf16>, vector<32x8xbf16>, vector<8x8xf32> -> vector<8x8xf32>
    %291 = vector.extract_strided_slice %279 {offsets = [0, 0, 0], sizes = [1, 32, 8], strides = [1, 1, 1]} : vector<4x32x8xbf16> to vector<1x32x8xbf16>
    %292 = vector.shape_cast %291 : vector<1x32x8xbf16> to vector<32x8xbf16>
    %cst_122 = arith.constant dense<0.000000e+00> : vector<8x8xf32>
    %293 = tpu.matmul %273, %292, %cst_122 {dimension_numbers = #tpu.dot_dimension_numbers<[1], [0], [0], [1], [0, 0, 1, 1], [], []>} : vector<8x32xbf16>, vector<32x8xbf16>, vector<8x8xf32> -> vector<8x8xf32>
    %294 = arith.truncf %287 : vector<8x8xf32> to vector<8x8xbf16>
    %295 = arith.truncf %290 : vector<8x8xf32> to vector<8x8xbf16>
    %cst_123 = arith.constant dense<0.000000e+00> : vector<8x8xf32>
    %296 = tpu.matmul %294, %295, %cst_123 {dimension_numbers = #tpu.dot_dimension_numbers<[1], [1], [0], [0], [0, 0, 1, 0], [], []>} : vector<8x8xbf16>, vector<8x8xbf16>, vector<8x8xf32> -> vector<8x8xf32>
    %cst_124 = arith.constant -1.000000e+30 : f32
    %297 = vector.broadcast %cst_124 : f32 to vector<8x8xf32>
    %298 = arith.select %4, %297, %296 : vector<8x8xi1>, vector<8x8xf32>
    %cst_125 = arith.constant dense<0xFF800000> : vector<8xf32>
    %299 = vector.multi_reduction <maximumf>, %298, %cst_125 [1] : vector<8x8xf32> to vector<8xf32>
    %300 = vector.shape_cast %299 : vector<8xf32> to vector<8x1xf32>
    %301 = vector.broadcast %300 : vector<8x1xf32> to vector<8x8xf32>
    %302 = arith.subf %298, %301 : vector<8x8xf32>
    %303 = math.exp %302 : vector<8x8xf32>
    %cst_126 = arith.constant dense<0.000000e+00> : vector<8xf32>
    %304 = vector.multi_reduction <add>, %303, %cst_126 [1] : vector<8x8xf32> to vector<8xf32>
    %305 = vector.shape_cast %304 : vector<8xf32> to vector<8x1xf32>
    %306 = tpu.reciprocal %305 {approx = true} : vector<8x1xf32> -> vector<8x1xf32>
    %307 = vector.broadcast %306 : vector<8x1xf32> to vector<8x8xf32>
    %308 = arith.mulf %303, %307 : vector<8x8xf32>
    %309 = arith.truncf %308 : vector<8x8xf32> to vector<8x8xbf16>
    %310 = arith.truncf %293 : vector<8x8xf32> to vector<8x8xbf16>
    %cst_127 = arith.constant dense<0.000000e+00> : vector<8x8xf32>
    %311 = tpu.matmul %309, %310, %cst_127 {dimension_numbers = #tpu.dot_dimension_numbers<[1], [0], [0], [1], [0, 0, 1, 1], [], []>} : vector<8x8xbf16>, vector<8x8xbf16>, vector<8x8xf32> -> vector<8x8xf32>
    %312 = arith.truncf %311 : vector<8x8xf32> to vector<8x8xbf16>
    %313 = vector.extract_strided_slice %281 {offsets = [0, 0, 0], sizes = [1, 8, 32], strides = [1, 1, 1]} : vector<4x8x32xbf16> to vector<1x8x32xbf16>
    %314 = vector.shape_cast %313 : vector<1x8x32xbf16> to vector<8x32xbf16>
    %cst_128 = arith.constant dense<0.000000e+00> : vector<8x32xf32>
    %315 = tpu.matmul %312, %314, %cst_128 {dimension_numbers = #tpu.dot_dimension_numbers<[1], [0], [0], [1], [0, 0, 1, 1], [], []>} : vector<8x8xbf16>, vector<8x32xbf16>, vector<8x32xf32> -> vector<8x32xf32>
    %316 = arith.addf %282, %315 : vector<8x32xf32>
    %317 = vector.extract_strided_slice %275 {offsets = [1, 0, 0], sizes = [1, 32, 8], strides = [1, 1, 1]} : vector<4x32x8xbf16> to vector<1x32x8xbf16>
    %318 = vector.shape_cast %317 : vector<1x32x8xbf16> to vector<32x8xbf16>
    %cst_129 = arith.constant dense<0.000000e+00> : vector<8x8xf32>
    %319 = tpu.matmul %273, %318, %cst_129 {dimension_numbers = #tpu.dot_dimension_numbers<[1], [0], [0], [1], [0, 0, 1, 1], [], []>} : vector<8x32xbf16>, vector<32x8xbf16>, vector<8x8xf32> -> vector<8x8xf32>
    %cst_130 = arith.constant 0.353553385 : f32
    %320 = vector.broadcast %cst_130 : f32 to vector<8x8xf32>
    %321 = arith.mulf %319, %320 : vector<8x8xf32>
    %322 = vector.extract_strided_slice %277 {offsets = [1, 0, 0], sizes = [1, 32, 8], strides = [1, 1, 1]} : vector<4x32x8xbf16> to vector<1x32x8xbf16>
    %323 = vector.shape_cast %322 : vector<1x32x8xbf16> to vector<32x8xbf16>
    %cst_131 = arith.constant dense<0.000000e+00> : vector<8x8xf32>
    %324 = tpu.matmul %273, %323, %cst_131 {dimension_numbers = #tpu.dot_dimension_numbers<[1], [0], [0], [1], [0, 0, 1, 1], [], []>} : vector<8x32xbf16>, vector<32x8xbf16>, vector<8x8xf32> -> vector<8x8xf32>
    %325 = vector.extract_strided_slice %279 {offsets = [1, 0, 0], sizes = [1, 32, 8], strides = [1, 1, 1]} : vector<4x32x8xbf16> to vector<1x32x8xbf16>
    %326 = vector.shape_cast %325 : vector<1x32x8xbf16> to vector<32x8xbf16>
    %cst_132 = arith.constant dense<0.000000e+00> : vector<8x8xf32>
    %327 = tpu.matmul %273, %326, %cst_132 {dimension_numbers = #tpu.dot_dimension_numbers<[1], [0], [0], [1], [0, 0, 1, 1], [], []>} : vector<8x32xbf16>, vector<32x8xbf16>, vector<8x8xf32> -> vector<8x8xf32>
    %328 = arith.truncf %321 : vector<8x8xf32> to vector<8x8xbf16>
    %329 = arith.truncf %324 : vector<8x8xf32> to vector<8x8xbf16>
    %cst_133 = arith.constant dense<0.000000e+00> : vector<8x8xf32>
    %330 = tpu.matmul %328, %329, %cst_133 {dimension_numbers = #tpu.dot_dimension_numbers<[1], [1], [0], [0], [0, 0, 1, 0], [], []>} : vector<8x8xbf16>, vector<8x8xbf16>, vector<8x8xf32> -> vector<8x8xf32>
    %cst_134 = arith.constant -1.000000e+30 : f32
    %331 = vector.broadcast %cst_134 : f32 to vector<8x8xf32>
    %332 = arith.select %4, %331, %330 : vector<8x8xi1>, vector<8x8xf32>
    %cst_135 = arith.constant dense<0xFF800000> : vector<8xf32>
    %333 = vector.multi_reduction <maximumf>, %332, %cst_135 [1] : vector<8x8xf32> to vector<8xf32>
    %334 = vector.shape_cast %333 : vector<8xf32> to vector<8x1xf32>
    %335 = vector.broadcast %334 : vector<8x1xf32> to vector<8x8xf32>
    %336 = arith.subf %332, %335 : vector<8x8xf32>
    %337 = math.exp %336 : vector<8x8xf32>
    %cst_136 = arith.constant dense<0.000000e+00> : vector<8xf32>
    %338 = vector.multi_reduction <add>, %337, %cst_136 [1] : vector<8x8xf32> to vector<8xf32>
    %339 = vector.shape_cast %338 : vector<8xf32> to vector<8x1xf32>
    %340 = tpu.reciprocal %339 {approx = true} : vector<8x1xf32> -> vector<8x1xf32>
    %341 = vector.broadcast %340 : vector<8x1xf32> to vector<8x8xf32>
    %342 = arith.mulf %337, %341 : vector<8x8xf32>
    %343 = arith.truncf %342 : vector<8x8xf32> to vector<8x8xbf16>
    %344 = arith.truncf %327 : vector<8x8xf32> to vector<8x8xbf16>
    %cst_137 = arith.constant dense<0.000000e+00> : vector<8x8xf32>
    %345 = tpu.matmul %343, %344, %cst_137 {dimension_numbers = #tpu.dot_dimension_numbers<[1], [0], [0], [1], [0, 0, 1, 1], [], []>} : vector<8x8xbf16>, vector<8x8xbf16>, vector<8x8xf32> -> vector<8x8xf32>
    %346 = arith.truncf %345 : vector<8x8xf32> to vector<8x8xbf16>
    %347 = vector.extract_strided_slice %281 {offsets = [1, 0, 0], sizes = [1, 8, 32], strides = [1, 1, 1]} : vector<4x8x32xbf16> to vector<1x8x32xbf16>
    %348 = vector.shape_cast %347 : vector<1x8x32xbf16> to vector<8x32xbf16>
    %cst_138 = arith.constant dense<0.000000e+00> : vector<8x32xf32>
    %349 = tpu.matmul %346, %348, %cst_138 {dimension_numbers = #tpu.dot_dimension_numbers<[1], [0], [0], [1], [0, 0, 1, 1], [], []>} : vector<8x8xbf16>, vector<8x32xbf16>, vector<8x32xf32> -> vector<8x32xf32>
    %350 = arith.addf %316, %349 : vector<8x32xf32>
    %351 = vector.extract_strided_slice %275 {offsets = [2, 0, 0], sizes = [1, 32, 8], strides = [1, 1, 1]} : vector<4x32x8xbf16> to vector<1x32x8xbf16>
    %352 = vector.shape_cast %351 : vector<1x32x8xbf16> to vector<32x8xbf16>
    %cst_139 = arith.constant dense<0.000000e+00> : vector<8x8xf32>
    %353 = tpu.matmul %273, %352, %cst_139 {dimension_numbers = #tpu.dot_dimension_numbers<[1], [0], [0], [1], [0, 0, 1, 1], [], []>} : vector<8x32xbf16>, vector<32x8xbf16>, vector<8x8xf32> -> vector<8x8xf32>
    %cst_140 = arith.constant 0.353553385 : f32
    %354 = vector.broadcast %cst_140 : f32 to vector<8x8xf32>
    %355 = arith.mulf %353, %354 : vector<8x8xf32>
    %356 = vector.extract_strided_slice %277 {offsets = [2, 0, 0], sizes = [1, 32, 8], strides = [1, 1, 1]} : vector<4x32x8xbf16> to vector<1x32x8xbf16>
    %357 = vector.shape_cast %356 : vector<1x32x8xbf16> to vector<32x8xbf16>
    %cst_141 = arith.constant dense<0.000000e+00> : vector<8x8xf32>
    %358 = tpu.matmul %273, %357, %cst_141 {dimension_numbers = #tpu.dot_dimension_numbers<[1], [0], [0], [1], [0, 0, 1, 1], [], []>} : vector<8x32xbf16>, vector<32x8xbf16>, vector<8x8xf32> -> vector<8x8xf32>
    %359 = vector.extract_strided_slice %279 {offsets = [2, 0, 0], sizes = [1, 32, 8], strides = [1, 1, 1]} : vector<4x32x8xbf16> to vector<1x32x8xbf16>
    %360 = vector.shape_cast %359 : vector<1x32x8xbf16> to vector<32x8xbf16>
    %cst_142 = arith.constant dense<0.000000e+00> : vector<8x8xf32>
    %361 = tpu.matmul %273, %360, %cst_142 {dimension_numbers = #tpu.dot_dimension_numbers<[1], [0], [0], [1], [0, 0, 1, 1], [], []>} : vector<8x32xbf16>, vector<32x8xbf16>, vector<8x8xf32> -> vector<8x8xf32>
    %362 = arith.truncf %355 : vector<8x8xf32> to vector<8x8xbf16>
    %363 = arith.truncf %358 : vector<8x8xf32> to vector<8x8xbf16>
    %cst_143 = arith.constant dense<0.000000e+00> : vector<8x8xf32>
    %364 = tpu.matmul %362, %363, %cst_143 {dimension_numbers = #tpu.dot_dimension_numbers<[1], [1], [0], [0], [0, 0, 1, 0], [], []>} : vector<8x8xbf16>, vector<8x8xbf16>, vector<8x8xf32> -> vector<8x8xf32>
    %cst_144 = arith.constant -1.000000e+30 : f32
    %365 = vector.broadcast %cst_144 : f32 to vector<8x8xf32>
    %366 = arith.select %4, %365, %364 : vector<8x8xi1>, vector<8x8xf32>
    %cst_145 = arith.constant dense<0xFF800000> : vector<8xf32>
    %367 = vector.multi_reduction <maximumf>, %366, %cst_145 [1] : vector<8x8xf32> to vector<8xf32>
    %368 = vector.shape_cast %367 : vector<8xf32> to vector<8x1xf32>
    %369 = vector.broadcast %368 : vector<8x1xf32> to vector<8x8xf32>
    %370 = arith.subf %366, %369 : vector<8x8xf32>
    %371 = math.exp %370 : vector<8x8xf32>
    %cst_146 = arith.constant dense<0.000000e+00> : vector<8xf32>
    %372 = vector.multi_reduction <add>, %371, %cst_146 [1] : vector<8x8xf32> to vector<8xf32>
    %373 = vector.shape_cast %372 : vector<8xf32> to vector<8x1xf32>
    %374 = tpu.reciprocal %373 {approx = true} : vector<8x1xf32> -> vector<8x1xf32>
    %375 = vector.broadcast %374 : vector<8x1xf32> to vector<8x8xf32>
    %376 = arith.mulf %371, %375 : vector<8x8xf32>
    %377 = arith.truncf %376 : vector<8x8xf32> to vector<8x8xbf16>
    %378 = arith.truncf %361 : vector<8x8xf32> to vector<8x8xbf16>
    %cst_147 = arith.constant dense<0.000000e+00> : vector<8x8xf32>
    %379 = tpu.matmul %377, %378, %cst_147 {dimension_numbers = #tpu.dot_dimension_numbers<[1], [0], [0], [1], [0, 0, 1, 1], [], []>} : vector<8x8xbf16>, vector<8x8xbf16>, vector<8x8xf32> -> vector<8x8xf32>
    %380 = arith.truncf %379 : vector<8x8xf32> to vector<8x8xbf16>
    %381 = vector.extract_strided_slice %281 {offsets = [2, 0, 0], sizes = [1, 8, 32], strides = [1, 1, 1]} : vector<4x8x32xbf16> to vector<1x8x32xbf16>
    %382 = vector.shape_cast %381 : vector<1x8x32xbf16> to vector<8x32xbf16>
    %cst_148 = arith.constant dense<0.000000e+00> : vector<8x32xf32>
    %383 = tpu.matmul %380, %382, %cst_148 {dimension_numbers = #tpu.dot_dimension_numbers<[1], [0], [0], [1], [0, 0, 1, 1], [], []>} : vector<8x8xbf16>, vector<8x32xbf16>, vector<8x32xf32> -> vector<8x32xf32>
    %384 = arith.addf %350, %383 : vector<8x32xf32>
    %385 = vector.extract_strided_slice %275 {offsets = [3, 0, 0], sizes = [1, 32, 8], strides = [1, 1, 1]} : vector<4x32x8xbf16> to vector<1x32x8xbf16>
    %386 = vector.shape_cast %385 : vector<1x32x8xbf16> to vector<32x8xbf16>
    %cst_149 = arith.constant dense<0.000000e+00> : vector<8x8xf32>
    %387 = tpu.matmul %273, %386, %cst_149 {dimension_numbers = #tpu.dot_dimension_numbers<[1], [0], [0], [1], [0, 0, 1, 1], [], []>} : vector<8x32xbf16>, vector<32x8xbf16>, vector<8x8xf32> -> vector<8x8xf32>
    %cst_150 = arith.constant 0.353553385 : f32
    %388 = vector.broadcast %cst_150 : f32 to vector<8x8xf32>
    %389 = arith.mulf %387, %388 : vector<8x8xf32>
    %390 = vector.extract_strided_slice %277 {offsets = [3, 0, 0], sizes = [1, 32, 8], strides = [1, 1, 1]} : vector<4x32x8xbf16> to vector<1x32x8xbf16>
    %391 = vector.shape_cast %390 : vector<1x32x8xbf16> to vector<32x8xbf16>
    %cst_151 = arith.constant dense<0.000000e+00> : vector<8x8xf32>
    %392 = tpu.matmul %273, %391, %cst_151 {dimension_numbers = #tpu.dot_dimension_numbers<[1], [0], [0], [1], [0, 0, 1, 1], [], []>} : vector<8x32xbf16>, vector<32x8xbf16>, vector<8x8xf32> -> vector<8x8xf32>
    %393 = vector.extract_strided_slice %279 {offsets = [3, 0, 0], sizes = [1, 32, 8], strides = [1, 1, 1]} : vector<4x32x8xbf16> to vector<1x32x8xbf16>
    %394 = vector.shape_cast %393 : vector<1x32x8xbf16> to vector<32x8xbf16>
    %cst_152 = arith.constant dense<0.000000e+00> : vector<8x8xf32>
    %395 = tpu.matmul %273, %394, %cst_152 {dimension_numbers = #tpu.dot_dimension_numbers<[1], [0], [0], [1], [0, 0, 1, 1], [], []>} : vector<8x32xbf16>, vector<32x8xbf16>, vector<8x8xf32> -> vector<8x8xf32>
    %396 = arith.truncf %389 : vector<8x8xf32> to vector<8x8xbf16>
    %397 = arith.truncf %392 : vector<8x8xf32> to vector<8x8xbf16>
    %cst_153 = arith.constant dense<0.000000e+00> : vector<8x8xf32>
    %398 = tpu.matmul %396, %397, %cst_153 {dimension_numbers = #tpu.dot_dimension_numbers<[1], [1], [0], [0], [0, 0, 1, 0], [], []>} : vector<8x8xbf16>, vector<8x8xbf16>, vector<8x8xf32> -> vector<8x8xf32>
    %cst_154 = arith.constant -1.000000e+30 : f32
    %399 = vector.broadcast %cst_154 : f32 to vector<8x8xf32>
    %400 = arith.select %4, %399, %398 : vector<8x8xi1>, vector<8x8xf32>
    %cst_155 = arith.constant dense<0xFF800000> : vector<8xf32>
    %401 = vector.multi_reduction <maximumf>, %400, %cst_155 [1] : vector<8x8xf32> to vector<8xf32>
    %402 = vector.shape_cast %401 : vector<8xf32> to vector<8x1xf32>
    %403 = vector.broadcast %402 : vector<8x1xf32> to vector<8x8xf32>
    %404 = arith.subf %400, %403 : vector<8x8xf32>
    %405 = math.exp %404 : vector<8x8xf32>
    %cst_156 = arith.constant dense<0.000000e+00> : vector<8xf32>
    %406 = vector.multi_reduction <add>, %405, %cst_156 [1] : vector<8x8xf32> to vector<8xf32>
    %407 = vector.shape_cast %406 : vector<8xf32> to vector<8x1xf32>
    %408 = tpu.reciprocal %407 {approx = true} : vector<8x1xf32> -> vector<8x1xf32>
    %409 = vector.broadcast %408 : vector<8x1xf32> to vector<8x8xf32>
    %410 = arith.mulf %405, %409 : vector<8x8xf32>
    %411 = arith.truncf %410 : vector<8x8xf32> to vector<8x8xbf16>
    %412 = arith.truncf %395 : vector<8x8xf32> to vector<8x8xbf16>
    %cst_157 = arith.constant dense<0.000000e+00> : vector<8x8xf32>
    %413 = tpu.matmul %411, %412, %cst_157 {dimension_numbers = #tpu.dot_dimension_numbers<[1], [0], [0], [1], [0, 0, 1, 1], [], []>} : vector<8x8xbf16>, vector<8x8xbf16>, vector<8x8xf32> -> vector<8x8xf32>
    %414 = arith.truncf %413 : vector<8x8xf32> to vector<8x8xbf16>
    %415 = vector.extract_strided_slice %281 {offsets = [3, 0, 0], sizes = [1, 8, 32], strides = [1, 1, 1]} : vector<4x8x32xbf16> to vector<1x8x32xbf16>
    %416 = vector.shape_cast %415 : vector<1x8x32xbf16> to vector<8x32xbf16>
    %cst_158 = arith.constant dense<0.000000e+00> : vector<8x32xf32>
    %417 = tpu.matmul %414, %416, %cst_158 {dimension_numbers = #tpu.dot_dimension_numbers<[1], [0], [0], [1], [0, 0, 1, 1], [], []>} : vector<8x8xbf16>, vector<8x32xbf16>, vector<8x32xf32> -> vector<8x32xf32>
    %418 = arith.addf %384, %417 : vector<8x32xf32>
    %419 = arith.addf %244, %418 : vector<8x32xf32>
    %c1_159 = arith.constant 1 : index
    %c0_160 = arith.constant 0 : index
    %420 = vector.load %arg8[%c1_159, %c0_160] : memref<2x32xf32, #tpu.memory_space<vmem>>, vector<1x32xf32>
    %421 = vector.shape_cast %420 : vector<1x32xf32> to vector<32xf32>
    %422 = vector.shape_cast %421 : vector<32xf32> to vector<1x32xf32>
    %423 = vector.broadcast %422 : vector<1x32xf32> to vector<8x32xf32>
    %424 = arith.addf %419, %423 : vector<8x32xf32>
    %c1_161 = arith.constant 1 : index
    %c0_162 = arith.constant 0 : index
    %425 = vector.load %arg9[%c1_161, %c0_162] : memref<2x32xf32, #tpu.memory_space<vmem>>, vector<1x32xf32>
    %426 = vector.shape_cast %425 : vector<1x32xf32> to vector<32xf32>
    %c1_163 = arith.constant 1 : index
    %c0_164 = arith.constant 0 : index
    %427 = vector.load %arg10[%c1_163, %c0_164] : memref<2x32xf32, #tpu.memory_space<vmem>>, vector<1x32xf32>
    %428 = vector.shape_cast %427 : vector<1x32xf32> to vector<32xf32>
    %cst_165 = arith.constant dense<0.000000e+00> : vector<8xf32>
    %429 = vector.multi_reduction <add>, %424, %cst_165 [1] : vector<8x32xf32> to vector<8xf32>
    %430 = vector.shape_cast %429 : vector<8xf32> to vector<8x1xf32>
    %cst_166 = arith.constant 3.200000e+01 : f32
    %431 = vector.broadcast %cst_166 : f32 to vector<8x1xf32>
    %432 = arith.divf %430, %431 : vector<8x1xf32>
    %433 = vector.broadcast %432 : vector<8x1xf32> to vector<8x32xf32>
    %434 = arith.subf %424, %433 : vector<8x32xf32>
    %435 = arith.mulf %434, %434 : vector<8x32xf32>
    %cst_167 = arith.constant dense<0.000000e+00> : vector<8xf32>
    %436 = vector.multi_reduction <add>, %435, %cst_167 [1] : vector<8x32xf32> to vector<8xf32>
    %437 = vector.shape_cast %436 : vector<8xf32> to vector<8x1xf32>
    %cst_168 = arith.constant 3.200000e+01 : f32
    %438 = vector.broadcast %cst_168 : f32 to vector<8x1xf32>
    %439 = arith.divf %437, %438 : vector<8x1xf32>
    %440 = vector.broadcast %432 : vector<8x1xf32> to vector<8x32xf32>
    %441 = arith.subf %424, %440 : vector<8x32xf32>
    %cst_169 = arith.constant 9.99999974E-6 : f32
    %442 = vector.broadcast %cst_169 : f32 to vector<8x1xf32>
    %443 = arith.addf %439, %442 : vector<8x1xf32>
    %444 = math.rsqrt %443 : vector<8x1xf32>
    %445 = vector.broadcast %444 : vector<8x1xf32> to vector<8x32xf32>
    %446 = arith.mulf %441, %445 : vector<8x32xf32>
    %447 = vector.shape_cast %426 : vector<32xf32> to vector<1x32xf32>
    %448 = vector.broadcast %447 : vector<1x32xf32> to vector<8x32xf32>
    %449 = arith.mulf %448, %446 : vector<8x32xf32>
    %450 = vector.shape_cast %428 : vector<32xf32> to vector<1x32xf32>
    %451 = vector.broadcast %450 : vector<1x32xf32> to vector<8x32xf32>
    %452 = arith.addf %449, %451 : vector<8x32xf32>
    %453 = arith.truncf %452 : vector<8x32xf32> to vector<8x32xbf16>
    %c1_170 = arith.constant 1 : index
    %c0_171 = arith.constant 0 : index
    %c0_172 = arith.constant 0 : index
    %454 = vector.load %arg11[%c1_170, %c0_171, %c0_172] : memref<2x32x128xbf16, #tpu.memory_space<vmem>>, vector<1x32x128xbf16>
    %455 = vector.shape_cast %454 : vector<1x32x128xbf16> to vector<32x128xbf16>
    %cst_173 = arith.constant dense<0.000000e+00> : vector<8x128xf32>
    %456 = tpu.matmul %453, %455, %cst_173 {dimension_numbers = #tpu.dot_dimension_numbers<[1], [0], [0], [1], [0, 0, 1, 1], [], []>} : vector<8x32xbf16>, vector<32x128xbf16>, vector<8x128xf32> -> vector<8x128xf32>
    %c1_174 = arith.constant 1 : index
    %c0_175 = arith.constant 0 : index
    %457 = vector.load %arg12[%c1_174, %c0_175] : memref<2x128xf32, #tpu.memory_space<vmem>>, vector<1x128xf32>
    %458 = vector.shape_cast %457 : vector<1x128xf32> to vector<128xf32>
    %459 = vector.shape_cast %458 : vector<128xf32> to vector<1x128xf32>
    %460 = vector.broadcast %459 : vector<1x128xf32> to vector<8x128xf32>
    %461 = arith.addf %456, %460 : vector<8x128xf32>
    %cst_176 = arith.constant 5.000000e-01 : f32
    %462 = vector.broadcast %cst_176 : f32 to vector<8x128xf32>
    %463 = arith.mulf %462, %461 : vector<8x128xf32>
    %cst_177 = arith.constant 4.471500e-02 : f32
    %464 = vector.broadcast %cst_177 : f32 to vector<8x128xf32>
    %465 = arith.mulf %464, %461 : vector<8x128xf32>
    %466 = arith.mulf %465, %461 : vector<8x128xf32>
    %467 = arith.mulf %466, %461 : vector<8x128xf32>
    %468 = arith.addf %461, %467 : vector<8x128xf32>
    %cst_178 = arith.constant 0.797884583 : f32
    %469 = vector.broadcast %cst_178 : f32 to vector<8x128xf32>
    %470 = arith.mulf %469, %468 : vector<8x128xf32>
    %471 = math.tanh %470 : vector<8x128xf32>
    %cst_179 = arith.constant 1.000000e+00 : f32
    %472 = vector.broadcast %cst_179 : f32 to vector<8x128xf32>
    %473 = arith.addf %472, %471 : vector<8x128xf32>
    %474 = arith.mulf %463, %473 : vector<8x128xf32>
    %475 = arith.truncf %474 : vector<8x128xf32> to vector<8x128xbf16>
    %c1_180 = arith.constant 1 : index
    %c0_181 = arith.constant 0 : index
    %c0_182 = arith.constant 0 : index
    %476 = vector.load %arg13[%c1_180, %c0_181, %c0_182] : memref<2x128x32xbf16, #tpu.memory_space<vmem>>, vector<1x128x32xbf16>
    %477 = vector.shape_cast %476 : vector<1x128x32xbf16> to vector<128x32xbf16>
    %cst_183 = arith.constant dense<0.000000e+00> : vector<8x32xf32>
    %478 = tpu.matmul %475, %477, %cst_183 {dimension_numbers = #tpu.dot_dimension_numbers<[1], [0], [0], [1], [0, 0, 1, 1], [], []>} : vector<8x128xbf16>, vector<128x32xbf16>, vector<8x32xf32> -> vector<8x32xf32>
    %c1_184 = arith.constant 1 : index
    %c0_185 = arith.constant 0 : index
    %479 = vector.load %arg14[%c1_184, %c0_185] : memref<2x32xf32, #tpu.memory_space<vmem>>, vector<1x32xf32>
    %480 = vector.shape_cast %479 : vector<1x32xf32> to vector<32xf32>
    %481 = vector.shape_cast %480 : vector<32xf32> to vector<1x32xf32>
    %482 = vector.broadcast %481 : vector<1x32xf32> to vector<8x32xf32>
    %483 = arith.addf %478, %482 : vector<8x32xf32>
    %484 = arith.addf %424, %483 : vector<8x32xf32>
    %c0_186 = arith.constant 0 : index
    %c0_187 = arith.constant 0 : index
    %485 = vector.load %arg15[%c0_186, %c0_187] : memref<1x32xf32, #tpu.memory_space<vmem>>, vector<1x32xf32>
    %486 = vector.shape_cast %485 : vector<1x32xf32> to vector<32xf32>
    %c0_188 = arith.constant 0 : index
    %c0_189 = arith.constant 0 : index
    %487 = vector.load %arg16[%c0_188, %c0_189] : memref<1x32xf32, #tpu.memory_space<vmem>>, vector<1x32xf32>
    %488 = vector.shape_cast %487 : vector<1x32xf32> to vector<32xf32>
    %cst_190 = arith.constant dense<0.000000e+00> : vector<8xf32>
    %489 = vector.multi_reduction <add>, %484, %cst_190 [1] : vector<8x32xf32> to vector<8xf32>
    %490 = vector.shape_cast %489 : vector<8xf32> to vector<8x1xf32>
    %cst_191 = arith.constant 3.200000e+01 : f32
    %491 = vector.broadcast %cst_191 : f32 to vector<8x1xf32>
    %492 = arith.divf %490, %491 : vector<8x1xf32>
    %493 = vector.broadcast %492 : vector<8x1xf32> to vector<8x32xf32>
    %494 = arith.subf %484, %493 : vector<8x32xf32>
    %495 = arith.mulf %494, %494 : vector<8x32xf32>
    %cst_192 = arith.constant dense<0.000000e+00> : vector<8xf32>
    %496 = vector.multi_reduction <add>, %495, %cst_192 [1] : vector<8x32xf32> to vector<8xf32>
    %497 = vector.shape_cast %496 : vector<8xf32> to vector<8x1xf32>
    %cst_193 = arith.constant 3.200000e+01 : f32
    %498 = vector.broadcast %cst_193 : f32 to vector<8x1xf32>
    %499 = arith.divf %497, %498 : vector<8x1xf32>
    %500 = vector.broadcast %492 : vector<8x1xf32> to vector<8x32xf32>
    %501 = arith.subf %484, %500 : vector<8x32xf32>
    %cst_194 = arith.constant 9.99999974E-6 : f32
    %502 = vector.broadcast %cst_194 : f32 to vector<8x1xf32>
    %503 = arith.addf %499, %502 : vector<8x1xf32>
    %504 = math.rsqrt %503 : vector<8x1xf32>
    %505 = vector.broadcast %504 : vector<8x1xf32> to vector<8x32xf32>
    %506 = arith.mulf %501, %505 : vector<8x32xf32>
    %507 = vector.shape_cast %486 : vector<32xf32> to vector<1x32xf32>
    %508 = vector.broadcast %507 : vector<1x32xf32> to vector<8x32xf32>
    %509 = arith.mulf %508, %506 : vector<8x32xf32>
    %510 = vector.shape_cast %488 : vector<32xf32> to vector<1x32xf32>
    %511 = vector.broadcast %510 : vector<1x32xf32> to vector<8x32xf32>
    %512 = arith.addf %509, %511 : vector<8x32xf32>
    %513 = arith.truncf %512 : vector<8x32xf32> to vector<8x32xbf16>
    %c0_195 = arith.constant 0 : index
    %c0_196 = arith.constant 0 : index
    %514 = vector.load %arg17[%c0_195, %c0_196] : memref<32x128xbf16, #tpu.memory_space<vmem>>, vector<32x128xbf16>
    %cst_197 = arith.constant dense<0.000000e+00> : vector<8x128xf32>
    %515 = tpu.matmul %513, %514, %cst_197 {dimension_numbers = #tpu.dot_dimension_numbers<[1], [0], [0], [1], [0, 0, 1, 1], [], []>} : vector<8x32xbf16>, vector<32x128xbf16>, vector<8x128xf32> -> vector<8x128xf32>
    %c0_198 = arith.constant 0 : index
    %c0_199 = arith.constant 0 : index
    %c0_200 = arith.constant 0 : index
    %516 = vector.load %arg18[%c0_198, %c0_199, %c0_200] : memref<1x8x128xf32, #tpu.memory_space<vmem>>, vector<1x8x128xf32>
    %517 = vector.shape_cast %516 : vector<1x8x128xf32> to vector<8x128xf32>
    %518 = vector.shape_cast %515 : vector<8x128xf32> to vector<1x8x128xf32>
    tpu.vector_store %arg18[%c0_198, %c0_199, %c0_200], %518 {strides = array<i32>} : memref<1x8x128xf32, #tpu.memory_space<vmem>>, vector<1x8x128xf32>,
    return
  }
  func.func @transform_0(%arg0: i32) -> (i32, i32, i32) {
    %c0_i32 = arith.constant 0 : i32
    %c0_i32_0 = arith.constant 0 : i32
    %c0_i32_1 = arith.constant 0 : i32
    return %arg0, %c0_i32, %c0_i32_0 : i32, i32, i32
  }
  func.func @transform_1(%arg0: i32) -> (i32, i32) {
    %c0_i32 = arith.constant 0 : i32
    %c0_i32_0 = arith.constant 0 : i32
    %c0_i32_1 = arith.constant 0 : i32
    return %c0_i32, %c0_i32_0 : i32, i32
  }
  func.func @transform_2(%arg0: i32) -> (i32, i32) {
    %c0_i32 = arith.constant 0 : i32
    %c0_i32_0 = arith.constant 0 : i32
    %c0_i32_1 = arith.constant 0 : i32
    return %c0_i32, %c0_i32_0 : i32, i32
  }
  func.func @transform_3(%arg0: i32) -> (i32, i32, i32, i32) {
    %c0_i32 = arith.constant 0 : i32
    %c0_i32_0 = arith.constant 0 : i32
    %c0_i32_1 = arith.constant 0 : i32
    %c0_i32_2 = arith.constant 0 : i32
    %c0_i32_3 = arith.constant 0 : i32
    return %c0_i32, %c0_i32_0, %c0_i32_1, %c0_i32_2 : i32, i32, i32, i32
  }
  func.func @transform_4(%arg0: i32) -> (i32, i32, i32, i32) {
    %c0_i32 = arith.constant 0 : i32
    %c0_i32_0 = arith.constant 0 : i32
    %c0_i32_1 = arith.constant 0 : i32
    %c0_i32_2 = arith.constant 0 : i32
    %c0_i32_3 = arith.constant 0 : i32
    return %c0_i32, %c0_i32_0, %c0_i32_1, %c0_i32_2 : i32, i32, i32, i32
  }
  func.func @transform_5(%arg0: i32) -> (i32, i32, i32, i32) {
    %c0_i32 = arith.constant 0 : i32
    %c0_i32_0 = arith.constant 0 : i32
    %c0_i32_1 = arith.constant 0 : i32
    %c0_i32_2 = arith.constant 0 : i32
    %c0_i32_3 = arith.constant 0 : i32
    return %c0_i32, %c0_i32_0, %c0_i32_1, %c0_i32_2 : i32, i32, i32, i32
  }
  func.func @transform_6(%arg0: i32) -> (i32, i32, i32, i32) {
    %c0_i32 = arith.constant 0 : i32
    %c0_i32_0 = arith.constant 0 : i32
    %c0_i32_1 = arith.constant 0 : i32
    %c0_i32_2 = arith.constant 0 : i32
    %c0_i32_3 = arith.constant 0 : i32
    return %c0_i32, %c0_i32_0, %c0_i32_1, %c0_i32_2 : i32, i32, i32, i32
  }
  func.func @transform_7(%arg0: i32) -> (i32, i32) {
    %c0_i32 = arith.constant 0 : i32
    %c0_i32_0 = arith.constant 0 : i32
    %c0_i32_1 = arith.constant 0 : i32
    return %c0_i32, %c0_i32_0 : i32, i32
  }
  func.func @transform_8(%arg0: i32) -> (i32, i32) {
    %c0_i32 = arith.constant 0 : i32
    %c0_i32_0 = arith.constant 0 : i32
    %c0_i32_1 = arith.constant 0 : i32
    return %c0_i32, %c0_i32_0 : i32, i32
  }
  func.func @transform_9(%arg0: i32) -> (i32, i32) {
    %c0_i32 = arith.constant 0 : i32
    %c0_i32_0 = arith.constant 0 : i32
    %c0_i32_1 = arith.constant 0 : i32
    return %c0_i32, %c0_i32_0 : i32, i32
  }
  func.func @transform_10(%arg0: i32) -> (i32, i32, i32) {
    %c0_i32 = arith.constant 0 : i32
    %c0_i32_0 = arith.constant 0 : i32
    %c0_i32_1 = arith.constant 0 : i32
    %c0_i32_2 = arith.constant 0 : i32
    return %c0_i32, %c0_i32_0, %c0_i32_1 : i32, i32, i32
  }
  func.func @transform_11(%arg0: i32) -> (i32, i32) {
    %c0_i32 = arith.constant 0 : i32
    %c0_i32_0 = arith.constant 0 : i32
    %c0_i32_1 = arith.constant 0 : i32
    return %c0_i32, %c0_i32_0 : i32, i32
  }
  func.func @transform_12(%arg0: i32) -> (i32, i32, i32) {
    %c0_i32 = arith.constant 0 : i32
    %c0_i32_0 = arith.constant 0 : i32
    %c0_i32_1 = arith.constant 0 : i32
    %c0_i32_2 = arith.constant 0 : i32
    return %c0_i32, %c0_i32_0, %c0_i32_1 : i32, i32, i32
  }
  func.func @transform_13(%arg0: i32) -> (i32, i32) {
    %c0_i32 = arith.constant 0 : i32
    %c0_i32_0 = arith.constant 0 : i32
    %c0_i32_1 = arith.constant 0 : i32
    return %c0_i32, %c0_i32_0 : i32, i32
  }
  func.func @transform_14(%arg0: i32) -> (i32, i32) {
    %c0_i32 = arith.constant 0 : i32
    %c0_i32_0 = arith.constant 0 : i32
    %c0_i32_1 = arith.constant 0 : i32
    return %c0_i32, %c0_i32_0 : i32, i32
  }
  func.func @transform_15(%arg0: i32) -> (i32, i32) {
    %c0_i32 = arith.constant 0 : i32
    %c0_i32_0 = arith.constant 0 : i32
    %c0_i32_1 = arith.constant 0 : i32
    return %c0_i32, %c0_i32_0 : i32, i32
  }
  func.func @transform_16(%arg0: i32) -> (i32, i32) {
    %c0_i32 = arith.constant 0 : i32
    %c0_i32_0 = arith.constant 0 : i32
    %c0_i32_1 = arith.constant 0 : i32
    return %c0_i32, %c0_i32_0 : i32, i32
  }
  func.func @transform_17(%arg0: i32) -> (i32, i32, i32) {
    %c0_i32 = arith.constant 0 : i32
    %c0_i32_0 = arith.constant 0 : i32
    %c0_i32_1 = arith.constant 0 : i32
    return %arg0, %c0_i32, %c0_i32_0 : i32, i32, i32
  }
}

</mosaic_0001>

<llo_original>
// kernel: tpu_custom_call.1
$region0: #{tpu_custom_call.1}
  #allocation0 [shape = 'u32[]', space=smem, size = 0x4, offset = 0x4, fixed_abs, tag = 'smem constant byte address 0x4 - core index']
  #allocation1 [shape = 'u32[72,128]{1,0:T(1,128)}', space=vmem, size = 0x9000, scoped, tag = 'internal scratch']
  %s0 = inlined_call_operand.vmem [shape: f32[2,8,32], index: 0, kind: input, shape index: {}]
  %s1 = inlined_call_operand.vmem [shape: f32[2,32], index: 1, kind: input, shape index: {}]
  %s2 = inlined_call_operand.vmem [shape: f32[2,32], index: 2, kind: input, shape index: {}]
  %s3 = inlined_call_operand.vmem [shape: bf16[2,4,32,8], index: 3, kind: input, shape index: {}]
  %s4 = inlined_call_operand.vmem [shape: bf16[2,4,32,8], index: 4, kind: input, shape index: {}]
  %s5 = inlined_call_operand.vmem [shape: bf16[2,4,32,8], index: 5, kind: input, shape index: {}]
  %s6 = inlined_call_operand.vmem [shape: bf16[2,4,8,32], index: 6, kind: input, shape index: {}]
  %s7 = inlined_call_operand.vmem [shape: f32[2,32], index: 7, kind: input, shape index: {}]
  %s8 = inlined_call_operand.vmem [shape: f32[2,32], index: 8, kind: input, shape index: {}]
  %s9 = inlined_call_operand.vmem [shape: f32[2,32], index: 9, kind: input, shape index: {}]
  %s10 = inlined_call_operand.vmem [shape: bf16[2,32,128], index: 10, kind: input, shape index: {}]
  %s11 = inlined_call_operand.vmem [shape: f32[2,128], index: 11, kind: input, shape index: {}]
  %s12 = inlined_call_operand.vmem [shape: bf16[2,128,32], index: 12, kind: input, shape index: {}]
  %s13 = inlined_call_operand.vmem [shape: f32[2,32], index: 13, kind: input, shape index: {}]
  %s14 = inlined_call_operand.vmem [shape: f32[1,32], index: 14, kind: input, shape index: {}]
  %s15 = inlined_call_operand.vmem [shape: f32[1,32], index: 15, kind: input, shape index: {}]
  %s16 = inlined_call_operand.vmem [shape: bf16[32,128], index: 16, kind: input, shape index: {}]
  %s17 = inlined_call_operand.hbm [shape: f32[2,8,128], index: 17, kind: output, shape index: {}]
  %s18 = sld [smem:[#allocation0]]
  $region101: #{tpu_custom_call.1} parent=0
    _
  %s20 = ssub.s32 1, %s18
  %s21 = scalar_select 0, %s20, %s18
  $region1: #{tpu_custom_call.1} parent=0
    #allocation2 [shape = 'u8[8192]{0}', space=vmem, size = 0x2000, scoped, tag = 'output window, operand 0']
    #allocation3 [shape = 's32[2]{0}', space=sflag, size = 0x8, scoped, tag = 'scoped memory for tpu_custom_call.1']
    %22 = vsyncpa [#allocation3], 0
    %s23 = scalar_lea.sflag [#allocation3], 1
    %24 = vsyncpa %s23, 0
    loop: start=0, step=1, limit=4
    $region2: #{tpu_custom_call.1} parent=1 // loop_pre_header
      _
    $region3: #{tpu_custom_call.1} parent=1 // loop_header
      %s26 = sphi 0, %s30
      %p27 = scmp.ge.s32.totalorder %s26, 4
      %s36 = sphi 0, %s38
      %s39 = sphi 0, %s36
      %s40 = sphi 0, %s39
      %s56 = sphi 0, %s40
      %s60 = sphi 0, %s60
      %s62 = sphi 0, %s60
      %s63 = sphi 0, %s62
      %s77 = sphi 0, %s63
      %s81 = sphi 0, %s81
      %s83 = sphi 0, %s81
      %s84 = sphi 0, %s83
      %s98 = sphi 0, %s84
      %s102 = sphi 0, %s102
      %s104 = sphi 0, %s102
      %s105 = sphi 0, %s104
      %s119 = sphi 0, %s105
      %s123 = sphi 0, %s123
      %s125 = sphi 0, %s123
      %s126 = sphi 0, %s125
      %s140 = sphi 0, %s126
      %s144 = sphi 0, %s144
      %s146 = sphi 0, %s144
      %s147 = sphi 0, %s146
      %s161 = sphi 0, %s147
      %s165 = sphi 0, %s165
      %s167 = sphi 0, %s165
      %s168 = sphi 0, %s167
      %s182 = sphi 0, %s168
      %s186 = sphi 0, %s186
      %s188 = sphi 0, %s186
      %s189 = sphi 0, %s188
      %s203 = sphi 0, %s189
      %s207 = sphi 0, %s207
      %s209 = sphi 0, %s207
      %s210 = sphi 0, %s209
      %s224 = sphi 0, %s210
      %s228 = sphi 0, %s228
      %s230 = sphi 0, %s228
      %s231 = sphi 0, %s230
      %s245 = sphi 0, %s231
      %s249 = sphi 0, %s249
      %s251 = sphi 0, %s249
      %s252 = sphi 0, %s251
      %s266 = sphi 0, %s252
      %s270 = sphi 0, %s270
      %s272 = sphi 0, %s270
      %s273 = sphi 0, %s272
      %s287 = sphi 0, %s273
      %s291 = sphi 0, %s291
      %s293 = sphi 0, %s291
      %s294 = sphi 0, %s293
      %s308 = sphi 0, %s294
      %s312 = sphi 0, %s312
      %s314 = sphi 0, %s312
      %s315 = sphi 0, %s314
      %s329 = sphi 0, %s315
      %s333 = sphi 0, %s333
      %s335 = sphi 0, %s333
      %s336 = sphi 0, %s335
      %s350 = sphi 0, %s336
      %s354 = sphi 0, %s354
      %s356 = sphi 0, %s354
      %s357 = sphi 0, %s356
      %s371 = sphi 0, %s357
      %s375 = sphi 0, %s375
      %s377 = sphi 0, %s375
      %s378 = sphi 0, %s377
      %s392 = sphi 0, %s378
      %s398 = sphi 0, %s400
      %s401 = sphi 0, %s398
      %s402 = sphi 0, %s401
      %s418 = sphi 0, %s402
    $region4: #{tpu_custom_call.1} parent=1 // loop_header_branch
      %29 = sbr.rel (%p27) target = $region8
    $region5: #{tpu_custom_call.1} parent=1 // loop_body
      %s31 = ssub.s32 %s26, 1
      %s32 = ssub.s32 %s26, 2
      %s33 = sadd.s32 %s26, 1
      %s34 = ssub.s32 %s26, %s33
      %p35 = scmp.eq.s32.totalorder %s34, 0
      %s37 = sadd.s32 %s36, 1
      %s38 = scalar_select %p35, %s36, %s37
      %p41 = pneg %p35
      %p42 = scmp.eq.s32.totalorder %s26, 1
      %p43 = por %p41, %p42
      %p44 = scmp.ne.s32.totalorder %s36, %s39
      %p45 = scmp.eq.s32.totalorder %s26, 0
      %p46 = por %p44, %p45
      %p47 = scmp.ne.s32.totalorder %s36, %s39
      %p48 = scmp.eq.s32.totalorder %s31, 1
      %p49 = por %p47, %p48
      %p50 = scmp.ne.s32.totalorder %s39, %s40
      %p51 = scmp.eq.s32.totalorder %s31, 0
      %p52 = por %p50, %p51
      %p53 = scmp.ne.s32.totalorder %s39, %s40
      %p54 = scmp.eq.s32.totalorder %s32, 1
      %p55 = por %p53, %p54
      %p57 = scmp.ne.s32.totalorder %s40, %s56
      %p58 = scmp.eq.s32.totalorder %s32, 0
      %p59 = por %p57, %p58
      %s61 = sadd.s32 %s60, 1
      %p64 = scmp.eq.s32.totalorder %s26, 1
      %p65 = scmp.ne.s32.totalorder %s60, %s62
      %p66 = scmp.eq.s32.totalorder %s26, 0
      %p67 = por %p65, %p66
      %p68 = scmp.ne.s32.totalorder %s60, %s62
      %p69 = scmp.eq.s32.totalorder %s31, 1
      %p70 = por %p68, %p69
      %p71 = scmp.ne.s32.totalorder %s62, %s63
      %p72 = scmp.eq.s32.totalorder %s31, 0
      %p73 = por %p71, %p72
      %p74 = scmp.ne.s32.totalorder %s62, %s63
      %p75 = scmp.eq.s32.totalorder %s32, 1
      %p76 = por %p74, %p75
      %p78 = scmp.ne.s32.totalorder %s63, %s77
      %p79 = scmp.eq.s32.totalorder %s32, 0
      %p80 = por %p78, %p79
      %s82 = sadd.s32 %s81, 1
      %p85 = scmp.eq.s32.totalorder %s26, 1
      %p86 = scmp.ne.s32.totalorder %s81, %s83
      %p87 = scmp.eq.s32.totalorder %s26, 0
      %p88 = por %p86, %p87
      %p89 = scmp.ne.s32.totalorder %s81, %s83
      %p90 = scmp.eq.s32.totalorder %s31, 1
      %p91 = por %p89, %p90
      %p92 = scmp.ne.s32.totalorder %s83, %s84
      %p93 = scmp.eq.s32.totalorder %s31, 0
      %p94 = por %p92, %p93
      %p95 = scmp.ne.s32.totalorder %s83, %s84
      %p96 = scmp.eq.s32.totalorder %s32, 1
      %p97 = por %p95, %p96
      %p99 = scmp.ne.s32.totalorder %s84, %s98
      %p100 = scmp.eq.s32.totalorder %s32, 0
      %p101 = por %p99, %p100
      %s103 = sadd.s32 %s102, 1
      %p106 = scmp.eq.s32.totalorder %s26, 1
      %p107 = scmp.ne.s32.totalorder %s102, %s104
      %p108 = scmp.eq.s32.totalorder %s26, 0
      %p109 = por %p107, %p108
      %p110 = scmp.ne.s32.totalorder %s102, %s104
      %p111 = scmp.eq.s32.totalorder %s31, 1
      %p112 = por %p110, %p111
      %p113 = scmp.ne.s32.totalorder %s104, %s105
      %p114 = scmp.eq.s32.totalorder %s31, 0
      %p115 = por %p113, %p114
      %p116 = scmp.ne.s32.totalorder %s104, %s105
      %p117 = scmp.eq.s32.totalorder %s32, 1
      %p118 = por %p116, %p117
      %p120 = scmp.ne.s32.totalorder %s105, %s119
      %p121 = scmp.eq.s32.totalorder %s32, 0
      %p122 = por %p120, %p121
      %s124 = sadd.s32 %s123, 1
      %p127 = scmp.eq.s32.totalorder %s26, 1
      %p128 = scmp.ne.s32.totalorder %s123, %s125
      %p129 = scmp.eq.s32.totalorder %s26, 0
      %p130 = por %p128, %p129
      %p131 = scmp.ne.s32.totalorder %s123, %s125
      %p132 = scmp.eq.s32.totalorder %s31, 1
      %p133 = por %p131, %p132
      %p134 = scmp.ne.s32.totalorder %s125, %s126
      %p135 = scmp.eq.s32.totalorder %s31, 0
      %p136 = por %p134, %p135
      %p137 = scmp.ne.s32.totalorder %s125, %s126
      %p138 = scmp.eq.s32.totalorder %s32, 1
      %p139 = por %p137, %p138
      %p141 = scmp.ne.s32.totalorder %s126, %s140
      %p142 = scmp.eq.s32.totalorder %s32, 0
      %p143 = por %p141, %p142
      %s145 = sadd.s32 %s144, 1
      %p148 = scmp.eq.s32.totalorder %s26, 1
      %p149 = scmp.ne.s32.totalorder %s144, %s146
      %p150 = scmp.eq.s32.totalorder %s26, 0
      %p151 = por %p149, %p150
      %p152 = scmp.ne.s32.totalorder %s144, %s146
      %p153 = scmp.eq.s32.totalorder %s31, 1
      %p154 = por %p152, %p153
      %p155 = scmp.ne.s32.totalorder %s146, %s147
      %p156 = scmp.eq.s32.totalorder %s31, 0
      %p157 = por %p155, %p156
      %p158 = scmp.ne.s32.totalorder %s146, %s147
      %p159 = scmp.eq.s32.totalorder %s32, 1
      %p160 = por %p158, %p159
      %p162 = scmp.ne.s32.totalorder %s147, %s161
      %p163 = scmp.eq.s32.totalorder %s32, 0
      %p164 = por %p162, %p163
      %s166 = sadd.s32 %s165, 1
      %p169 = scmp.eq.s32.totalorder %s26, 1
      %p170 = scmp.ne.s32.totalorder %s165, %s167
      %p171 = scmp.eq.s32.totalorder %s26, 0
      %p172 = por %p170, %p171
      %p173 = scmp.ne.s32.totalorder %s165, %s167
      %p174 = scmp.eq.s32.totalorder %s31, 1
      %p175 = por %p173, %p174
      %p176 = scmp.ne.s32.totalorder %s167, %s168
      %p177 = scmp.eq.s32.totalorder %s31, 0
      %p178 = por %p176, %p177
      %p179 = scmp.ne.s32.totalorder %s167, %s168
      %p180 = scmp.eq.s32.totalorder %s32, 1
      %p181 = por %p179, %p180
      %p183 = scmp.ne.s32.totalorder %s168, %s182
      %p184 = scmp.eq.s32.totalorder %s32, 0
      %p185 = por %p183, %p184
      %s187 = sadd.s32 %s186, 1
      %p190 = scmp.eq.s32.totalorder %s26, 1
      %p191 = scmp.ne.s32.totalorder %s186, %s188
      %p192 = scmp.eq.s32.totalorder %s26, 0
      %p193 = por %p191, %p192
      %p194 = scmp.ne.s32.totalorder %s186, %s188
      %p195 = scmp.eq.s32.totalorder %s31, 1
      %p196 = por %p194, %p195
      %p197 = scmp.ne.s32.totalorder %s188, %s189
      %p198 = scmp.eq.s32.totalorder %s31, 0
      %p199 = por %p197, %p198
      %p200 = scmp.ne.s32.totalorder %s188, %s189
      %p201 = scmp.eq.s32.totalorder %s32, 1
      %p202 = por %p200, %p201
      %p204 = scmp.ne.s32.totalorder %s189, %s203
      %p205 = scmp.eq.s32.totalorder %s32, 0
      %p206 = por %p204, %p205
      %s208 = sadd.s32 %s207, 1
      %p211 = scmp.eq.s32.totalorder %s26, 1
      %p212 = scmp.ne.s32.totalorder %s207, %s209
      %p213 = scmp.eq.s32.totalorder %s26, 0
      %p214 = por %p212, %p213
      %p215 = scmp.ne.s32.totalorder %s207, %s209
      %p216 = scmp.eq.s32.totalorder %s31, 1
      %p217 = por %p215, %p216
      %p218 = scmp.ne.s32.totalorder %s209, %s210
      %p219 = scmp.eq.s32.totalorder %s31, 0
      %p220 = por %p218, %p219
      %p221 = scmp.ne.s32.totalorder %s209, %s210
      %p222 = scmp.eq.s32.totalorder %s32, 1
      %p223 = por %p221, %p222
      %p225 = scmp.ne.s32.totalorder %s210, %s224
      %p226 = scmp.eq.s32.totalorder %s32, 0
      %p227 = por %p225, %p226
      %s229 = sadd.s32 %s228, 1
      %p232 = scmp.eq.s32.totalorder %s26, 1
      %p233 = scmp.ne.s32.totalorder %s228, %s230
      %p234 = scmp.eq.s32.totalorder %s26, 0
      %p235 = por %p233, %p234
      %p236 = scmp.ne.s32.totalorder %s228, %s230
      %p237 = scmp.eq.s32.totalorder %s31, 1
      %p238 = por %p236, %p237
      %p239 = scmp.ne.s32.totalorder %s230, %s231
      %p240 = scmp.eq.s32.totalorder %s31, 0
      %p241 = por %p239, %p240
      %p242 = scmp.ne.s32.totalorder %s230, %s231
      %p243 = scmp.eq.s32.totalorder %s32, 1
      %p244 = por %p242, %p243
      %p246 = scmp.ne.s32.totalorder %s231, %s245
      %p247 = scmp.eq.s32.totalorder %s32, 0
      %p248 = por %p246, %p247
      %s250 = sadd.s32 %s249, 1
      %p253 = scmp.eq.s32.totalorder %s26, 1
      %p254 = scmp.ne.s32.totalorder %s249, %s251
      %p255 = scmp.eq.s32.totalorder %s26, 0
      %p256 = por %p254, %p255
      %p257 = scmp.ne.s32.totalorder %s249, %s251
      %p258 = scmp.eq.s32.totalorder %s31, 1
      %p259 = por %p257, %p258
      %p260 = scmp.ne.s32.totalorder %s251, %s252
      %p261 = scmp.eq.s32.totalorder %s31, 0
      %p262 = por %p260, %p261
      %p263 = scmp.ne.s32.totalorder %s251, %s252
      %p264 = scmp.eq.s32.totalorder %s32, 1
      %p265 = por %p263, %p264
      %p267 = scmp.ne.s32.totalorder %s252, %s266
      %p268 = scmp.eq.s32.totalorder %s32, 0
      %p269 = por %p267, %p268
      %s271 = sadd.s32 %s270, 1
      %p274 = scmp.eq.s32.totalorder %s26, 1
      %p275 = scmp.ne.s32.totalorder %s270, %s272
      %p276 = scmp.eq.s32.totalorder %s26, 0
      %p277 = por %p275, %p276
      %p278 = scmp.ne.s32.totalorder %s270, %s272
      %p279 = scmp.eq.s32.totalorder %s31, 1
      %p280 = por %p278, %p279
      %p281 = scmp.ne.s32.totalorder %s272, %s273
      %p282 = scmp.eq.s32.totalorder %s31, 0
      %p283 = por %p281, %p282
      %p284 = scmp.ne.s32.totalorder %s272, %s273
      %p285 = scmp.eq.s32.totalorder %s32, 1
      %p286 = por %p284, %p285
      %p288 = scmp.ne.s32.totalorder %s273, %s287
      %p289 = scmp.eq.s32.totalorder %s32, 0
      %p290 = por %p288, %p289
      %s292 = sadd.s32 %s291, 1
      %p295 = scmp.eq.s32.totalorder %s26, 1
      %p296 = scmp.ne.s32.totalorder %s291, %s293
      %p297 = scmp.eq.s32.totalorder %s26, 0
      %p298 = por %p296, %p297
      %p299 = scmp.ne.s32.totalorder %s291, %s293
      %p300 = scmp.eq.s32.totalorder %s31, 1
      %p301 = por %p299, %p300
      %p302 = scmp.ne.s32.totalorder %s293, %s294
      %p303 = scmp.eq.s32.totalorder %s31, 0
      %p304 = por %p302, %p303
      %p305 = scmp.ne.s32.totalorder %s293, %s294
      %p306 = scmp.eq.s32.totalorder %s32, 1
      %p307 = por %p305, %p306
      %p309 = scmp.ne.s32.totalorder %s294, %s308
      %p310 = scmp.eq.s32.totalorder %s32, 0
      %p311 = por %p309, %p310
      %s313 = sadd.s32 %s312, 1
      %p316 = scmp.eq.s32.totalorder %s26, 1
      %p317 = scmp.ne.s32.totalorder %s312, %s314
      %p318 = scmp.eq.s32.totalorder %s26, 0
      %p319 = por %p317, %p318
      %p320 = scmp.ne.s32.totalorder %s312, %s314
      %p321 = scmp.eq.s32.totalorder %s31, 1
      %p322 = por %p320, %p321
      %p323 = scmp.ne.s32.totalorder %s314, %s315
      %p324 = scmp.eq.s32.totalorder %s31, 0
      %p325 = por %p323, %p324
      %p326 = scmp.ne.s32.totalorder %s314, %s315
      %p327 = scmp.eq.s32.totalorder %s32, 1
      %p328 = por %p326, %p327
      %p330 = scmp.ne.s32.totalorder %s315, %s329
      %p331 = scmp.eq.s32.totalorder %s32, 0
      %p332 = por %p330, %p331
      %s334 = sadd.s32 %s333, 1
      %p337 = scmp.eq.s32.totalorder %s26, 1
      %p338 = scmp.ne.s32.totalorder %s333, %s335
      %p339 = scmp.eq.s32.totalorder %s26, 0
      %p340 = por %p338, %p339
      %p341 = scmp.ne.s32.totalorder %s333, %s335
      %p342 = scmp.eq.s32.totalorder %s31, 1
      %p343 = por %p341, %p342
      %p344 = scmp.ne.s32.totalorder %s335, %s336
      %p345 = scmp.eq.s32.totalorder %s31, 0
      %p346 = por %p344, %p345
      %p347 = scmp.ne.s32.totalorder %s335, %s336
      %p348 = scmp.eq.s32.totalorder %s32, 1
      %p349 = por %p347, %p348
      %p351 = scmp.ne.s32.totalorder %s336, %s350
      %p352 = scmp.eq.s32.totalorder %s32, 0
      %p353 = por %p351, %p352
      %s355 = sadd.s32 %s354, 1
      %p358 = scmp.eq.s32.totalorder %s26, 1
      %p359 = scmp.ne.s32.totalorder %s354, %s356
      %p360 = scmp.eq.s32.totalorder %s26, 0
      %p361 = por %p359, %p360
      %p362 = scmp.ne.s32.totalorder %s354, %s356
      %p363 = scmp.eq.s32.totalorder %s31, 1
      %p364 = por %p362, %p363
      %p365 = scmp.ne.s32.totalorder %s356, %s357
      %p366 = scmp.eq.s32.totalorder %s31, 0
      %p367 = por %p365, %p366
      %p368 = scmp.ne.s32.totalorder %s356, %s357
      %p369 = scmp.eq.s32.totalorder %s32, 1
      %p370 = por %p368, %p369
      %p372 = scmp.ne.s32.totalorder %s357, %s371
      %p373 = scmp.eq.s32.totalorder %s32, 0
      %p374 = por %p372, %p373
      %s376 = sadd.s32 %s375, 1
      %p379 = scmp.eq.s32.totalorder %s26, 1
      %p380 = scmp.ne.s32.totalorder %s375, %s377
      %p381 = scmp.eq.s32.totalorder %s26, 0
      %p382 = por %p380, %p381
      %p383 = scmp.ne.s32.totalorder %s375, %s377
      %p384 = scmp.eq.s32.totalorder %s31, 1
      %p385 = por %p383, %p384
      %p386 = scmp.ne.s32.totalorder %s377, %s378
      %p387 = scmp.eq.s32.totalorder %s31, 0
      %p388 = por %p386, %p387
      %p389 = scmp.ne.s32.totalorder %s377, %s378
      %p390 = scmp.eq.s32.totalorder %s32, 1
      %p391 = por %p389, %p390
      %p393 = scmp.ne.s32.totalorder %s378, %s392
      %p394 = scmp.eq.s32.totalorder %s32, 0
      %p395 = por %p393, %p394
      %s396 = ssub.s32 %s26, %s33
      %p397 = scmp.eq.s32.totalorder %s396, 0
      %s399 = sadd.s32 %s398, 1
      %s400 = scalar_select %p397, %s398, %s399
      %p403 = pneg %p397
      %p404 = scmp.eq.s32.totalorder %s26, 1
      %p405 = por %p403, %p404
      %p406 = scmp.ne.s32.totalorder %s398, %s401
      %p407 = scmp.eq.s32.totalorder %s26, 0
      %p408 = por %p406, %p407
      %p409 = scmp.ne.s32.totalorder %s398, %s401
      %p410 = scmp.eq.s32.totalorder %s31, 1
      %p411 = por %p409, %p410
      %p412 = scmp.ne.s32.totalorder %s401, %s402
      %p413 = scmp.eq.s32.totalorder %s31, 0
      %p414 = por %p412, %p413
      %p415 = scmp.ne.s32.totalorder %s401, %s402
      %p416 = scmp.eq.s32.totalorder %s32, 1
      %p417 = por %p415, %p416
      %p419 = scmp.ne.s32.totalorder %s402, %s418
      %p420 = scmp.eq.s32.totalorder %s32, 0
      %p421 = por %p419, %p420
      %p422 = scmp.le.s32.totalorder 1, %s26
      %p423 = scmp.lt.s32.totalorder %s26, 3
      %p424 = pnand %p422, %p423
      %p425 = pneg %p424
      // Predicated region
      $region9: #{tpu_custom_call.1} parent=5 // pred_check
        _
      $region10: #{tpu_custom_call.1} parent=5 // pred_check_branch
        %427 = sbr.rel (%p424) target = $region12
      $region11: #{tpu_custom_call.1} parent=5 // pred_region
        %s428 = ssub.s32 %s26, 1
        // Predicated region
        $region13: #{tpu_custom_call.1} parent=11 // pred_check
          %p429 = pneg %p73
        $region14: #{tpu_custom_call.1} parent=11 // pred_check_branch
          %431 = sbr.rel (%p429) target = $region16
        $region15: #{tpu_custom_call.1} parent=11 // pred_region
          _
        $region16: #{tpu_custom_call.1} parent=11 // pred_fallthru
          _
        // Predicated region
        $region17: #{tpu_custom_call.1} parent=11 // pred_check
          %p432 = pneg %p94
        $region18: #{tpu_custom_call.1} parent=11 // pred_check_branch
          %434 = sbr.rel (%p432) target = $region20
        $region19: #{tpu_custom_call.1} parent=11 // pred_region
          _
        $region20: #{tpu_custom_call.1} parent=11 // pred_fallthru
          _
        // Predicated region
        $region21: #{tpu_custom_call.1} parent=11 // pred_check
          %p435 = pneg %p115
        $region22: #{tpu_custom_call.1} parent=11 // pred_check_branch
          %437 = sbr.rel (%p435) target = $region24
        $region23: #{tpu_custom_call.1} parent=11 // pred_region
          _
        $region24: #{tpu_custom_call.1} parent=11 // pred_fallthru
          _
        // Predicated region
        $region25: #{tpu_custom_call.1} parent=11 // pred_check
          %p438 = pneg %p136
        $region26: #{tpu_custom_call.1} parent=11 // pred_check_branch
          %440 = sbr.rel (%p438) target = $region28
        $region27: #{tpu_custom_call.1} parent=11 // pred_region
          _
        $region28: #{tpu_custom_call.1} parent=11 // pred_fallthru
          _
        // Predicated region
        $region29: #{tpu_custom_call.1} parent=11 // pred_check
          %p441 = pneg %p157
        $region30: #{tpu_custom_call.1} parent=11 // pred_check_branch
          %443 = sbr.rel (%p441) target = $region32
        $region31: #{tpu_custom_call.1} parent=11 // pred_region
          _
        $region32: #{tpu_custom_call.1} parent=11 // pred_fallthru
          _
        // Predicated region
        $region33: #{tpu_custom_call.1} parent=11 // pred_check
          %p444 = pneg %p178
        $region34: #{tpu_custom_call.1} parent=11 // pred_check_branch
          %446 = sbr.rel (%p444) target = $region36
        $region35: #{tpu_custom_call.1} parent=11 // pred_region
          _
        $region36: #{tpu_custom_call.1} parent=11 // pred_fallthru
          _
        // Predicated region
        $region37: #{tpu_custom_call.1} parent=11 // pred_check
          %p447 = pneg %p199
        $region38: #{tpu_custom_call.1} parent=11 // pred_check_branch
          %449 = sbr.rel (%p447) target = $region40
        $region39: #{tpu_custom_call.1} parent=11 // pred_region
          _
        $region40: #{tpu_custom_call.1} parent=11 // pred_fallthru
          _
        // Predicated region
        $region41: #{tpu_custom_call.1} parent=11 // pred_check
          %p450 = pneg %p220
        $region42: #{tpu_custom_call.1} parent=11 // pred_check_branch
          %452 = sbr.rel (%p450) target = $region44
        $region43: #{tpu_custom_call.1} parent=11 // pred_region
          _
        $region44: #{tpu_custom_call.1} parent=11 // pred_fallthru
          _
        // Predicated region
        $region45: #{tpu_custom_call.1} parent=11 // pred_check
          %p453 = pneg %p241
        $region46: #{tpu_custom_call.1} parent=11 // pred_check_branch
          %455 = sbr.rel (%p453) target = $region48
        $region47: #{tpu_custom_call.1} parent=11 // pred_region
          _
        $region48: #{tpu_custom_call.1} parent=11 // pred_fallthru
          _
        // Predicated region
        $region49: #{tpu_custom_call.1} parent=11 // pred_check
          %p456 = pneg %p262
        $region50: #{tpu_custom_call.1} parent=11 // pred_check_branch
          %458 = sbr.rel (%p456) target = $region52
        $region51: #{tpu_custom_call.1} parent=11 // pred_region
          _
        $region52: #{tpu_custom_call.1} parent=11 // pred_fallthru
          _
        // Predicated region
        $region53: #{tpu_custom_call.1} parent=11 // pred_check
          %p459 = pneg %p283
        $region54: #{tpu_custom_call.1} parent=11 // pred_check_branch
          %461 = sbr.rel (%p459) target = $region56
        $region55: #{tpu_custom_call.1} parent=11 // pred_region
          _
        $region56: #{tpu_custom_call.1} parent=11 // pred_fallthru
          _
        // Predicated region
        $region57: #{tpu_custom_call.1} parent=11 // pred_check
          %p462 = pneg %p304
        $region58: #{tpu_custom_call.1} parent=11 // pred_check_branch
          %464 = sbr.rel (%p462) target = $region60
        $region59: #{tpu_custom_call.1} parent=11 // pred_region
          _
        $region60: #{tpu_custom_call.1} parent=11 // pred_fallthru
          _
        // Predicated region
        $region61: #{tpu_custom_call.1} parent=11 // pred_check
          %p465 = pneg %p325
        $region62: #{tpu_custom_call.1} parent=11 // pred_check_branch
          %467 = sbr.rel (%p465) target = $region64
        $region63: #{tpu_custom_call.1} parent=11 // pred_region
          _
        $region64: #{tpu_custom_call.1} parent=11 // pred_fallthru
          _
        // Predicated region
        $region65: #{tpu_custom_call.1} parent=11 // pred_check
          %p468 = pneg %p346
        $region66: #{tpu_custom_call.1} parent=11 // pred_check_branch
          %470 = sbr.rel (%p468) target = $region68
        $region67: #{tpu_custom_call.1} parent=11 // pred_region
          _
        $region68: #{tpu_custom_call.1} parent=11 // pred_fallthru
          _
        // Predicated region
        $region69: #{tpu_custom_call.1} parent=11 // pred_check
          %p471 = pneg %p367
        $region70: #{tpu_custom_call.1} parent=11 // pred_check_branch
          %473 = sbr.rel (%p471) target = $region72
        $region71: #{tpu_custom_call.1} parent=11 // pred_region
          _
        $region72: #{tpu_custom_call.1} parent=11 // pred_fallthru
          _
        // Predicated region
        $region73: #{tpu_custom_call.1} parent=11 // pred_check
          %p474 = pneg %p388
        $region74: #{tpu_custom_call.1} parent=11 // pred_check_branch
          %476 = sbr.rel (%p474) target = $region76
        $region75: #{tpu_custom_call.1} parent=11 // pred_region
          _
        $region76: #{tpu_custom_call.1} parent=11 // pred_fallthru
          _
      $region12: #{tpu_custom_call.1} parent=5 // pred_fallthru
        _
      %p477 = scmp.lt.s32.totalorder %s26, 2
      // Predicated region
      $region77: #{tpu_custom_call.1} parent=5 // pred_check
        %p478 = pneg %p477
      $region78: #{tpu_custom_call.1} parent=5 // pred_check_branch
        %480 = sbr.rel (%p478) target = $region80
      $region79: #{tpu_custom_call.1} parent=5 // pred_region
        // Predicated region
        $region81: #{tpu_custom_call.1} parent=79 // pred_check
          %p481 = pneg %p46
        $region82: #{tpu_custom_call.1} parent=79 // pred_check_branch
          %483 = sbr.rel (%p481) target = $region84
        $region83: #{tpu_custom_call.1} parent=79 // pred_region
          %p484 = scmp.lt.s32.totalorder %s26, 1
          %s485 = scalar_select %p484, %s26, 1
          %s486 = smul.addr %s485, 8
          %s487 = scalar_lea.vmem %s0, %s486
        $region84: #{tpu_custom_call.1} parent=79 // pred_fallthru
          _
      $region80: #{tpu_custom_call.1} parent=5 // pred_fallthru
        _
      %p488 = scmp.le.s32.totalorder 1, %s26
      %p489 = scmp.lt.s32.totalorder %s26, 3
      %p490 = pnand %p488, %p489
      %p491 = pneg %p490
      // Predicated region
      $region85: #{tpu_custom_call.1} parent=5 // pred_check
        _
      $region86: #{tpu_custom_call.1} parent=5 // pred_check_branch
        %493 = sbr.rel (%p490) target = $region88
      $region87: #{tpu_custom_call.1} parent=5 // pred_region
        %s494 = ssub.s32 %s26, 1
        %p495 = scmp.lt.s32.totalorder %s31, 1
        %s496 = scalar_select %p495, %s31, 1
        %s497 = smul.addr %s496, 8
        %s498 = scalar_lea.vmem %s0, %s497
        %p499 = pneg %p52
        %p500 = pneg %p49
        %p501 = pneg %p73
        %p502 = pneg %p70
        %p503 = pneg %p94
        %p504 = pneg %p91
        %p505 = pneg %p115
        %p506 = pneg %p112
        %p507 = pneg %p136
        %p508 = pneg %p133
        %p509 = pneg %p157
        %p510 = pneg %p154
        %p511 = pneg %p178
        %p512 = pneg %p175
        %p513 = pneg %p199
        %p514 = pneg %p196
        %p515 = pneg %p220
        %p516 = pneg %p217
        %p517 = pneg %p241
        %p518 = pneg %p238
        %p519 = pneg %p262
        %p520 = pneg %p259
        %p521 = pneg %p283
        %p522 = pneg %p280
        %p523 = pneg %p304
        %p524 = pneg %p301
        %p525 = pneg %p325
        %p526 = pneg %p322
        %p527 = pneg %p346
        %p528 = pneg %p343
        %p529 = pneg %p367
        %p530 = pneg %p364
        %p531 = pneg %p388
        %p532 = pneg %p385
        %p533 = pneg %p414
        %p534 = pneg %p411
        %s535 = sand.u32 %s401, 1
        %s536 = scalar_lea.sflag [#allocation3], %s535
        %s537 = sand.u32 %s401, 1
        %s538 = smul.addr %s537, 8
        %s539 = scalar_lea.vmem [#allocation2], %s538
        %p540 = scmp.lt.s32.totalorder %s31, 1
        %s541 = scalar_select %p540, %s31, 1
        %s542 = smul.addr %s541, 8
        %s543 = scalar_lea.vmem %s0, %s542
        %v545 = vld [vmem:[%s543] sm:$0xff]
        %v546 = vlaneseq
        %v547 = vshrl.u32 %v546, 7
        %v548 = vlaneseq
        %v549 = vand.u32 %v548, 127
        %vm550 = vcmp.gt.s32.totalorder %v549, %v547
        %v551 = vld [vmem:[%s1] sm:$0x1]
        %v552 = vld [vmem:[%s2] sm:$0x1]
        %vm553 = vcmask 261120
        %v554 = vsel %vm553, %v545, 0.0
        %555 = vadd.xlane.f32.xlu0 %v554
        %v556 = vpop.xlane.xlu0 %555
        %v557 = vrcp.pop 32.0
        %v558 = vmul.f32 32.0, %v557
        %v559 = vsub.f32 1.0, %v558
        %v560 = vmul.f32 %v557, %v559
        %v561 = vadd.f32 %v557, %v560
        %vm562 = vweird.f32 %v557
        %v563 = vsel %vm562, %v557, %v561
        %v564 = vmul.f32 %v556, %v563
        %v565 = vsub.f32 %v545, %v564
        %v566 = vmul.f32 %v565, %v565
        %v567 = vsel %vm553, %v566, 0.0
        %568 = vadd.xlane.f32.xlu0 %v567
        %v569 = vpop.xlane.xlu0 %568
        %v570 = vmul.f32 %v569, %v563
        %v571 = vadd.f32 %v570, 1e-05
        %v572 = vrsqrt.pop %v571
        %v573 = vmul.f32 %v572, %v571
        %v574 = vmul.f32 %v573, %v572
        %v575 = vmul.f32 0.5, %v574
        %v576 = vsub.f32 1.5, %v575
        %v577 = vmul.f32 %v572, %v576
        %vm578 = vweird.f32 %v571
        %vm579 = vweird.f32 %v572
        %vm580 = vmor %vm578, %vm579
        %v581 = vsel %vm580, %v572, %v577
        %v582 = vmul.f32 %v565, %v581
        %v583 = vperm.slane %v551, 0
        %v584 = vmul.f32 %v583, %v582
        %v585 = vperm.slane %v552, 0
        %v586 = vadd.f32 %v584, %v585
        %v587 = vpack.c.bf16 %v586, %v586
        %v588 = vld [vmem:[%s3] sm:$0xf]
        %v589 = vld [vmem:[%s3 + $0x4] sm:$0xf]
        %v590 = vld [vmem:[%s3 + $0x8] sm:$0xf]
        %v591 = vld [vmem:[%s3 + $0xc] sm:$0xf]
        %v592 = vld [vmem:[%s3 + $0x10] sm:$0xf]
        %v593 = vld [vmem:[%s3 + $0x14] sm:$0xf]
        %v594 = vld [vmem:[%s3 + $0x18] sm:$0xf]
        %v595 = vld [vmem:[%s3 + $0x1c] sm:$0xf]
        %v596 = vld [vmem:[%s3 + $0x20] sm:$0xf]
        %v597 = vld [vmem:[%s3 + $0x24] sm:$0xf]
        %v598 = vld [vmem:[%s3 + $0x28] sm:$0xf]
        %v599 = vld [vmem:[%s3 + $0x2c] sm:$0xf]
        %v600 = vld [vmem:[%s3 + $0x30] sm:$0xf]
        %v601 = vld [vmem:[%s3 + $0x34] sm:$0xf]
        %v602 = vld [vmem:[%s3 + $0x38] sm:$0xf]
        %v603 = vld [vmem:[%s3 + $0x3c] sm:$0xf]
        %v604 = vld [vmem:[%s4] sm:$0xf]
        %v605 = vld [vmem:[%s4 + $0x4] sm:$0xf]
        %v606 = vld [vmem:[%s4 + $0x8] sm:$0xf]
        %v607 = vld [vmem:[%s4 + $0xc] sm:$0xf]
        %v608 = vld [vmem:[%s4 + $0x10] sm:$0xf]
        %v609 = vld [vmem:[%s4 + $0x14] sm:$0xf]
        %v610 = vld [vmem:[%s4 + $0x18] sm:$0xf]
        %v611 = vld [vmem:[%s4 + $0x1c] sm:$0xf]
        %v612 = vld [vmem:[%s4 + $0x20] sm:$0xf]
        %v613 = vld [vmem:[%s4 + $0x24] sm:$0xf]
        %v614 = vld [vmem:[%s4 + $0x28] sm:$0xf]
        %v615 = vld [vmem:[%s4 + $0x2c] sm:$0xf]
        %v616 = vld [vmem:[%s4 + $0x30] sm:$0xf]
        %v617 = vld [vmem:[%s4 + $0x34] sm:$0xf]
        %v618 = vld [vmem:[%s4 + $0x38] sm:$0xf]
        %v619 = vld [vmem:[%s4 + $0x3c] sm:$0xf]
        %v620 = vld [vmem:[%s5] sm:$0xf]
        %v621 = vld [vmem:[%s5 + $0x4] sm:$0xf]
        %v622 = vld [vmem:[%s5 + $0x8] sm:$0xf]
        %v623 = vld [vmem:[%s5 + $0xc] sm:$0xf]
        %v624 = vld [vmem:[%s5 + $0x10] sm:$0xf]
        %v625 = vld [vmem:[%s5 + $0x14] sm:$0xf]
        %v626 = vld [vmem:[%s5 + $0x18] sm:$0xf]
        %v627 = vld [vmem:[%s5 + $0x1c] sm:$0xf]
        %v628 = vld [vmem:[%s5 + $0x20] sm:$0xf]
        %v629 = vld [vmem:[%s5 + $0x24] sm:$0xf]
        %v630 = vld [vmem:[%s5 + $0x28] sm:$0xf]
        %v631 = vld [vmem:[%s5 + $0x2c] sm:$0xf]
        %v632 = vld [vmem:[%s5 + $0x30] sm:$0xf]
        %v633 = vld [vmem:[%s5 + $0x34] sm:$0xf]
        %v634 = vld [vmem:[%s5 + $0x38] sm:$0xf]
        %v635 = vld [vmem:[%s5 + $0x3c] sm:$0xf]
        %v636 = vld [vmem:[%s6] sm:$0xf]
        %v637 = vld [vmem:[%s6 + $0x4] sm:$0xf]
        %v638 = vld [vmem:[%s6 + $0x8] sm:$0xf]
        %v639 = vld [vmem:[%s6 + $0xc] sm:$0xf]
        %v644 = vunpack.c.l.b16 %v588
        %v645 = vunpack.c.l.b16 %v589
        %v646 = vunpack.c.l.b16 %v590
        %v647 = vunpack.c.l.b16 %v591
        %v648 = vpack.c.b16 %v645, %v644
        %v649 = vpack.c.b16 %v647, %v646
        %v653 = vsel %vm553, %v587, 0
        %655 = vmatpush.bf16.msra.mxu0 0
        %656 = vmatpush.bf16.msra.mxu0 0
        %657 = vmatpush.bf16.msra.mxu0 0
        %658 = vmatpush.bf16.msra.mxu0 0
        %659 = vmatpush.bf16.msra.mxu0 0
        %660 = vmatpush.bf16.msra.mxu0 0
        %661 = vmatpush.bf16.msra.mxu0 %v649
        %662 = vmatpush.bf16.msra.mxu0 %v648
        %663 = vmatmul.bf16.gmra.mxu0 %v653
        %v664 = vpop.f32.mrf.mxu0
        %v665 = vadd.f32 0.0, %v664
        %v666 = vpop.f32.mrf.mxu0
        %667 = vdwg.mxu0
        %v668 = vmul.f32 %v665, 0.35355338
        %v673 = vunpack.c.l.b16 %v604
        %v674 = vunpack.c.l.b16 %v605
        %v675 = vunpack.c.l.b16 %v606
        %v676 = vunpack.c.l.b16 %v607
        %v677 = vpack.c.b16 %v674, %v673
        %v678 = vpack.c.b16 %v676, %v675
        %681 = vmatpush.bf16.msra.mxu0 0
        %682 = vmatpush.bf16.msra.mxu0 0
        %683 = vmatpush.bf16.msra.mxu0 0
        %684 = vmatpush.bf16.msra.mxu0 0
        %685 = vmatpush.bf16.msra.mxu0 0
        %686 = vmatpush.bf16.msra.mxu0 0
        %687 = vmatpush.bf16.msra.mxu0 %v678
        %688 = vmatpush.bf16.msra.mxu0 %v677
        %689 = vmatmul.bf16.gmra.mxu0 %v653
        %v690 = vpop.f32.mrf.mxu0
        %v691 = vadd.f32 0.0, %v690
        %v692 = vpop.f32.mrf.mxu0
        %693 = vdwg.mxu0
        %v698 = vunpack.c.l.b16 %v620
        %v699 = vunpack.c.l.b16 %v621
        %v700 = vunpack.c.l.b16 %v622
        %v701 = vunpack.c.l.b16 %v623
        %v702 = vpack.c.b16 %v699, %v698
        %v703 = vpack.c.b16 %v701, %v700
        %706 = vmatpush.bf16.msra.mxu0 0
        %707 = vmatpush.bf16.msra.mxu0 0
        %708 = vmatpush.bf16.msra.mxu0 0
        %709 = vmatpush.bf16.msra.mxu0 0
        %710 = vmatpush.bf16.msra.mxu0 0
        %711 = vmatpush.bf16.msra.mxu0 0
        %712 = vmatpush.bf16.msra.mxu0 %v703
        %713 = vmatpush.bf16.msra.mxu0 %v702
        %714 = vmatmul.bf16.gmra.mxu0 %v653
        %v715 = vpop.f32.mrf.mxu0
        %v716 = vadd.f32 0.0, %v715
        %v717 = vpop.f32.mrf.mxu0
        %718 = vdwg.mxu0
        %v719 = vpack.c.bf16 %v668, %v668
        %v720 = vpack.c.bf16 %v691, %v691
        %vm721 = vcmask 64512
        %v723 = vsel %vm721, %v719, 0
        %v726 = vsel %vm721, %v720, 0
        %728 = vmatpush.bf16.xpose.msra.mxu0 0
        %729 = vmatpush.bf16.xpose.msra.mxu0 0
        %730 = vmatpush.bf16.xpose.msra.mxu0 0
        %731 = vmatpush.bf16.xpose.msra.mxu0 0
        %732 = vmatpush.bf16.xpose.msra.mxu0 0
        %733 = vmatpush.bf16.xpose.msra.mxu0 0
        %734 = vmatpush.bf16.xpose.msra.mxu0 0
        %735 = vmatpush.bf16.xpose.msra.mxu0 %v726
        %736 = vmatmul.bf16.gmra.mxu0 %v723
        %v737 = vpop.f32.mrf.mxu0
        %v738 = vadd.f32 0.0, %v737
        %v739 = vpop.f32.mrf.mxu0
        %740 = vdwg.mxu0
        %v741 = vsel %vm550, -1e+30, %v738
        %v742 = vsel %vm721, %v741, -inf
        %743 = vmax.xlane.f32.xlu0 %v742
        %v744 = vpop.xlane.xlu0 %743
        %v745 = vsub.f32 %v741, %v744
        %v746 = vmul.f32 %v745, 1.442695
        %v747 = vpow.pop %v746
        %v748 = vsel %vm721, %v747, 0.0
        %749 = vadd.xlane.f32.xlu0 %v748
        %v750 = vpop.xlane.xlu0 %749
        %v751 = vrcp.pop %v750
        %v752 = vmul.f32 %v747, %v751
        %v753 = vpack.c.bf16 %v752, %v752
        %v754 = vpack.c.bf16 %v716, %v716
        %v756 = vsel %vm721, %v753, 0
        %vm758 = vcmask 1043456
        %v760 = vsel %vm758, %v754, 0
        %762 = vmatpush.bf16.msra.mxu0 0
        %763 = vmatpush.bf16.msra.mxu0 0
        %764 = vmatpush.bf16.msra.mxu0 0
        %765 = vmatpush.bf16.msra.mxu0 0
        %766 = vmatpush.bf16.msra.mxu0 0
        %767 = vmatpush.bf16.msra.mxu0 0
        %768 = vmatpush.bf16.msra.mxu0 0
        %769 = vmatpush.bf16.msra.mxu0 %v760
        %770 = vmatmul.bf16.gmra.mxu0 %v756
        %v771 = vpop.f32.mrf.mxu0
        %v772 = vadd.f32 0.0, %v771
        %v773 = vpop.f32.mrf.mxu0
        %774 = vdwg.mxu0
        %v775 = vpack.c.bf16 %v772, %v772
        %v780 = vunpack.c.l.b16 %v592
        %v781 = vunpack.c.l.b16 %v593
        %v782 = vunpack.c.l.b16 %v594
        %v783 = vunpack.c.l.b16 %v595
        %v784 = vpack.c.b16 %v781, %v780
        %v785 = vpack.c.b16 %v783, %v782
        %788 = vmatpush.bf16.msra.mxu0 0
        %789 = vmatpush.bf16.msra.mxu0 0
        %790 = vmatpush.bf16.msra.mxu0 0
        %791 = vmatpush.bf16.msra.mxu0 0
        %792 = vmatpush.bf16.msra.mxu0 0
        %793 = vmatpush.bf16.msra.mxu0 0
        %794 = vmatpush.bf16.msra.mxu0 %v785
        %795 = vmatpush.bf16.msra.mxu0 %v784
        %796 = vmatmul.bf16.gmra.mxu0 %v653
        %v797 = vpop.f32.mrf.mxu0
        %v798 = vadd.f32 0.0, %v797
        %v799 = vpop.f32.mrf.mxu0
        %800 = vdwg.mxu0
        %v801 = vmul.f32 %v798, 0.35355338
        %v806 = vunpack.c.l.b16 %v608
        %v807 = vunpack.c.l.b16 %v609
        %v808 = vunpack.c.l.b16 %v610
        %v809 = vunpack.c.l.b16 %v611
        %v810 = vpack.c.b16 %v807, %v806
        %v811 = vpack.c.b16 %v809, %v808
        %814 = vmatpush.bf16.msra.mxu0 0
        %815 = vmatpush.bf16.msra.mxu0 0
        %816 = vmatpush.bf16.msra.mxu0 0
        %817 = vmatpush.bf16.msra.mxu0 0
        %818 = vmatpush.bf16.msra.mxu0 0
        %819 = vmatpush.bf16.msra.mxu0 0
        %820 = vmatpush.bf16.msra.mxu0 %v811
        %821 = vmatpush.bf16.msra.mxu0 %v810
        %822 = vmatmul.bf16.gmra.mxu0 %v653
        %v823 = vpop.f32.mrf.mxu0
        %v824 = vadd.f32 0.0, %v823
        %v825 = vpop.f32.mrf.mxu0
        %826 = vdwg.mxu0
        %v831 = vunpack.c.l.b16 %v624
        %v832 = vunpack.c.l.b16 %v625
        %v833 = vunpack.c.l.b16 %v626
        %v834 = vunpack.c.l.b16 %v627
        %v835 = vpack.c.b16 %v832, %v831
        %v836 = vpack.c.b16 %v834, %v833
        %839 = vmatpush.bf16.msra.mxu0 0
        %840 = vmatpush.bf16.msra.mxu0 0
        %841 = vmatpush.bf16.msra.mxu0 0
        %842 = vmatpush.bf16.msra.mxu0 0
        %843 = vmatpush.bf16.msra.mxu0 0
        %844 = vmatpush.bf16.msra.mxu0 0
        %845 = vmatpush.bf16.msra.mxu0 %v836
        %846 = vmatpush.bf16.msra.mxu0 %v835
        %847 = vmatmul.bf16.gmra.mxu0 %v653
        %v848 = vpop.f32.mrf.mxu0
        %v849 = vadd.f32 0.0, %v848
        %v850 = vpop.f32.mrf.mxu0
        %851 = vdwg.mxu0
        %v852 = vpack.c.bf16 %v801, %v801
        %v853 = vpack.c.bf16 %v824, %v824
        %v855 = vsel %vm721, %v852, 0
        %v858 = vsel %vm721, %v853, 0
        %860 = vmatpush.bf16.xpose.msra.mxu0 0
        %861 = vmatpush.bf16.xpose.msra.mxu0 0
        %862 = vmatpush.bf16.xpose.msra.mxu0 0
        %863 = vmatpush.bf16.xpose.msra.mxu0 0
        %864 = vmatpush.bf16.xpose.msra.mxu0 0
        %865 = vmatpush.bf16.xpose.msra.mxu0 0
        %866 = vmatpush.bf16.xpose.msra.mxu0 0
        %867 = vmatpush.bf16.xpose.msra.mxu0 %v858
        %868 = vmatmul.bf16.gmra.mxu0 %v855
        %v869 = vpop.f32.mrf.mxu0
        %v870 = vadd.f32 0.0, %v869
        %v871 = vpop.f32.mrf.mxu0
        %872 = vdwg.mxu0
        %v873 = vsel %vm550, -1e+30, %v870
        %v874 = vsel %vm721, %v873, -inf
        %875 = vmax.xlane.f32.xlu0 %v874
        %v876 = vpop.xlane.xlu0 %875
        %v877 = vsub.f32 %v873, %v876
        %v878 = vmul.f32 %v877, 1.442695
        %v879 = vpow.pop %v878
        %v880 = vsel %vm721, %v879, 0.0
        %881 = vadd.xlane.f32.xlu0 %v880
        %v882 = vpop.xlane.xlu0 %881
        %v883 = vrcp.pop %v882
        %v884 = vmul.f32 %v879, %v883
        %v885 = vpack.c.bf16 %v884, %v884
        %v886 = vpack.c.bf16 %v849, %v849
        %v888 = vsel %vm721, %v885, 0
        %v891 = vsel %vm758, %v886, 0
        %893 = vmatpush.bf16.msra.mxu0 0
        %894 = vmatpush.bf16.msra.mxu0 0
        %895 = vmatpush.bf16.msra.mxu0 0
        %896 = vmatpush.bf16.msra.mxu0 0
        %897 = vmatpush.bf16.msra.mxu0 0
        %898 = vmatpush.bf16.msra.mxu0 0
        %899 = vmatpush.bf16.msra.mxu0 0
        %900 = vmatpush.bf16.msra.mxu0 %v891
        %901 = vmatmul.bf16.gmra.mxu0 %v888
        %v902 = vpop.f32.mrf.mxu0
        %v903 = vadd.f32 0.0, %v902
        %v904 = vpop.f32.mrf.mxu0
        %905 = vdwg.mxu0
        %v906 = vpack.c.bf16 %v903, %v903
        %v908 = vsel %vm721, %v906, 0
        %v911 = vsel %vm758, %v637, 0
        %913 = vmatpush.bf16.msra.mxu0 0
        %914 = vmatpush.bf16.msra.mxu0 0
        %915 = vmatpush.bf16.msra.mxu0 0
        %916 = vmatpush.bf16.msra.mxu0 0
        %917 = vmatpush.bf16.msra.mxu0 0
        %918 = vmatpush.bf16.msra.mxu0 0
        %919 = vmatpush.bf16.msra.mxu0 0
        %920 = vmatpush.bf16.msra.mxu0 %v911
        %921 = vmatmul.bf16.gmra.mxu0 %v908
        %v922 = vpop.f32.mrf.mxu0
        %v923 = vadd.f32 0.0, %v922
        %v924 = vpop.f32.mrf.mxu0
        %925 = vdwg.mxu0
        %v927 = vsel %vm721, %v775, 0
        %v930 = vsel %vm758, %v636, 0
        %932 = vmatpush.bf16.msra.mxu0 0
        %933 = vmatpush.bf16.msra.mxu0 0
        %934 = vmatpush.bf16.msra.mxu0 0
        %935 = vmatpush.bf16.msra.mxu0 0
        %936 = vmatpush.bf16.msra.mxu0 0
        %937 = vmatpush.bf16.msra.mxu0 0
        %938 = vmatpush.bf16.msra.mxu0 0
        %939 = vmatpush.bf16.msra.mxu0 %v930
        %940 = vmatmul.bf16.gmra.mxu0 %v927
        %v941 = vpop.f32.mrf.mxu0
        %v942 = vadd.f32 %v923, %v941
        %v943 = vpop.f32.mrf.mxu0
        %944 = vdwg.mxu0
        %v949 = vunpack.c.l.b16 %v596
        %v950 = vunpack.c.l.b16 %v597
        %v951 = vunpack.c.l.b16 %v598
        %v952 = vunpack.c.l.b16 %v599
        %v953 = vpack.c.b16 %v950, %v949
        %v954 = vpack.c.b16 %v952, %v951
        %957 = vmatpush.bf16.msra.mxu0 0
        %958 = vmatpush.bf16.msra.mxu0 0
        %959 = vmatpush.bf16.msra.mxu0 0
        %960 = vmatpush.bf16.msra.mxu0 0
        %961 = vmatpush.bf16.msra.mxu0 0
        %962 = vmatpush.bf16.msra.mxu0 0
        %963 = vmatpush.bf16.msra.mxu0 %v954
        %964 = vmatpush.bf16.msra.mxu0 %v953
        %965 = vmatmul.bf16.gmra.mxu0 %v653
        %v966 = vpop.f32.mrf.mxu0
        %v967 = vadd.f32 0.0, %v966
        %v968 = vpop.f32.mrf.mxu0
        %969 = vdwg.mxu0
        %v970 = vmul.f32 %v967, 0.35355338
        %v975 = vunpack.c.l.b16 %v612
        %v976 = vunpack.c.l.b16 %v613
        %v977 = vunpack.c.l.b16 %v614
        %v978 = vunpack.c.l.b16 %v615
        %v979 = vpack.c.b16 %v976, %v975
        %v980 = vpack.c.b16 %v978, %v977
        %983 = vmatpush.bf16.msra.mxu0 0
        %984 = vmatpush.bf16.msra.mxu0 0
        %985 = vmatpush.bf16.msra.mxu0 0
        %986 = vmatpush.bf16.msra.mxu0 0
        %987 = vmatpush.bf16.msra.mxu0 0
        %988 = vmatpush.bf16.msra.mxu0 0
        %989 = vmatpush.bf16.msra.mxu0 %v980
        %990 = vmatpush.bf16.msra.mxu0 %v979
        %991 = vmatmul.bf16.gmra.mxu0 %v653
        %v992 = vpop.f32.mrf.mxu0
        %v993 = vadd.f32 0.0, %v992
        %v994 = vpop.f32.mrf.mxu0
        %995 = vdwg.mxu0
        %v1000 = vunpack.c.l.b16 %v628
        %v1001 = vunpack.c.l.b16 %v629
        %v1002 = vunpack.c.l.b16 %v630
        %v1003 = vunpack.c.l.b16 %v631
        %v1004 = vpack.c.b16 %v1001, %v1000
        %v1005 = vpack.c.b16 %v1003, %v1002
        %1008 = vmatpush.bf16.msra.mxu0 0
        %1009 = vmatpush.bf16.msra.mxu0 0
        %1010 = vmatpush.bf16.msra.mxu0 0
        %1011 = vmatpush.bf16.msra.mxu0 0
        %1012 = vmatpush.bf16.msra.mxu0 0
        %1013 = vmatpush.bf16.msra.mxu0 0
        %1014 = vmatpush.bf16.msra.mxu0 %v1005
        %1015 = vmatpush.bf16.msra.mxu0 %v1004
        %1016 = vmatmul.bf16.gmra.mxu0 %v653
        %v1017 = vpop.f32.mrf.mxu0
        %v1018 = vadd.f32 0.0, %v1017
        %v1019 = vpop.f32.mrf.mxu0
        %1020 = vdwg.mxu0
        %v1021 = vpack.c.bf16 %v970, %v970
        %v1022 = vpack.c.bf16 %v993, %v993
        %v1024 = vsel %vm721, %v1021, 0
        %v1027 = vsel %vm721, %v1022, 0
        %1029 = vmatpush.bf16.xpose.msra.mxu0 0
        %1030 = vmatpush.bf16.xpose.msra.mxu0 0
        %1031 = vmatpush.bf16.xpose.msra.mxu0 0
        %1032 = vmatpush.bf16.xpose.msra.mxu0 0
        %1033 = vmatpush.bf16.xpose.msra.mxu0 0
        %1034 = vmatpush.bf16.xpose.msra.mxu0 0
        %1035 = vmatpush.bf16.xpose.msra.mxu0 0
        %1036 = vmatpush.bf16.xpose.msra.mxu0 %v1027
        %1037 = vmatmul.bf16.gmra.mxu0 %v1024
        %v1038 = vpop.f32.mrf.mxu0
        %v1039 = vadd.f32 0.0, %v1038
        %v1040 = vpop.f32.mrf.mxu0
        %1041 = vdwg.mxu0
        %v1042 = vsel %vm550, -1e+30, %v1039
        %v1043 = vsel %vm721, %v1042, -inf
        %1044 = vmax.xlane.f32.xlu0 %v1043
        %v1045 = vpop.xlane.xlu0 %1044
        %v1046 = vsub.f32 %v1042, %v1045
        %v1047 = vmul.f32 %v1046, 1.442695
        %v1048 = vpow.pop %v1047
        %v1049 = vsel %vm721, %v1048, 0.0
        %1050 = vadd.xlane.f32.xlu0 %v1049
        %v1051 = vpop.xlane.xlu0 %1050
        %v1052 = vrcp.pop %v1051
        %v1053 = vmul.f32 %v1048, %v1052
        %v1054 = vpack.c.bf16 %v1053, %v1053
        %v1055 = vpack.c.bf16 %v1018, %v1018
        %v1057 = vsel %vm721, %v1054, 0
        %v1060 = vsel %vm758, %v1055, 0
        %1062 = vmatpush.bf16.msra.mxu0 0
        %1063 = vmatpush.bf16.msra.mxu0 0
        %1064 = vmatpush.bf16.msra.mxu0 0
        %1065 = vmatpush.bf16.msra.mxu0 0
        %1066 = vmatpush.bf16.msra.mxu0 0
        %1067 = vmatpush.bf16.msra.mxu0 0
        %1068 = vmatpush.bf16.msra.mxu0 0
        %1069 = vmatpush.bf16.msra.mxu0 %v1060
        %1070 = vmatmul.bf16.gmra.mxu0 %v1057
        %v1071 = vpop.f32.mrf.mxu0
        %v1072 = vadd.f32 0.0, %v1071
        %v1073 = vpop.f32.mrf.mxu0
        %1074 = vdwg.mxu0
        %v1075 = vpack.c.bf16 %v1072, %v1072
        %v1077 = vsel %vm721, %v1075, 0
        %v1080 = vsel %vm758, %v638, 0
        %1082 = vmatpush.bf16.msra.mxu0 0
        %1083 = vmatpush.bf16.msra.mxu0 0
        %1084 = vmatpush.bf16.msra.mxu0 0
        %1085 = vmatpush.bf16.msra.mxu0 0
        %1086 = vmatpush.bf16.msra.mxu0 0
        %1087 = vmatpush.bf16.msra.mxu0 0
        %1088 = vmatpush.bf16.msra.mxu0 0
        %1089 = vmatpush.bf16.msra.mxu0 %v1080
        %1090 = vmatmul.bf16.gmra.mxu0 %v1077
        %v1091 = vpop.f32.mrf.mxu0
        %v1092 = vadd.f32 0.0, %v1091
        %v1093 = vpop.f32.mrf.mxu0
        %1094 = vdwg.mxu0
        %v1095 = vadd.f32 %v942, %v1092
        %v1100 = vunpack.c.l.b16 %v600
        %v1101 = vunpack.c.l.b16 %v601
        %v1102 = vunpack.c.l.b16 %v602
        %v1103 = vunpack.c.l.b16 %v603
        %v1104 = vpack.c.b16 %v1101, %v1100
        %v1105 = vpack.c.b16 %v1103, %v1102
        %1108 = vmatpush.bf16.msra.mxu0 0
        %1109 = vmatpush.bf16.msra.mxu0 0
        %1110 = vmatpush.bf16.msra.mxu0 0
        %1111 = vmatpush.bf16.msra.mxu0 0
        %1112 = vmatpush.bf16.msra.mxu0 0
        %1113 = vmatpush.bf16.msra.mxu0 0
        %1114 = vmatpush.bf16.msra.mxu0 %v1105
        %1115 = vmatpush.bf16.msra.mxu0 %v1104
        %1116 = vmatmul.bf16.gmra.mxu0 %v653
        %v1117 = vpop.f32.mrf.mxu0
        %v1118 = vadd.f32 0.0, %v1117
        %v1119 = vpop.f32.mrf.mxu0
        %1120 = vdwg.mxu0
        %v1121 = vmul.f32 %v1118, 0.35355338
        %v1126 = vunpack.c.l.b16 %v616
        %v1127 = vunpack.c.l.b16 %v617
        %v1128 = vunpack.c.l.b16 %v618
        %v1129 = vunpack.c.l.b16 %v619
        %v1130 = vpack.c.b16 %v1127, %v1126
        %v1131 = vpack.c.b16 %v1129, %v1128
        %1134 = vmatpush.bf16.msra.mxu0 0
        %1135 = vmatpush.bf16.msra.mxu0 0
        %1136 = vmatpush.bf16.msra.mxu0 0
        %1137 = vmatpush.bf16.msra.mxu0 0
        %1138 = vmatpush.bf16.msra.mxu0 0
        %1139 = vmatpush.bf16.msra.mxu0 0
        %1140 = vmatpush.bf16.msra.mxu0 %v1131
        %1141 = vmatpush.bf16.msra.mxu0 %v1130
        %1142 = vmatmul.bf16.gmra.mxu0 %v653
        %v1143 = vpop.f32.mrf.mxu0
        %v1144 = vadd.f32 0.0, %v1143
        %v1145 = vpop.f32.mrf.mxu0
        %1146 = vdwg.mxu0
        %v1151 = vunpack.c.l.b16 %v632
        %v1152 = vunpack.c.l.b16 %v633
        %v1153 = vunpack.c.l.b16 %v634
        %v1154 = vunpack.c.l.b16 %v635
        %v1155 = vpack.c.b16 %v1152, %v1151
        %v1156 = vpack.c.b16 %v1154, %v1153
        %1159 = vmatpush.bf16.msra.mxu0 0
        %1160 = vmatpush.bf16.msra.mxu0 0
        %1161 = vmatpush.bf16.msra.mxu0 0
        %1162 = vmatpush.bf16.msra.mxu0 0
        %1163 = vmatpush.bf16.msra.mxu0 0
        %1164 = vmatpush.bf16.msra.mxu0 0
        %1165 = vmatpush.bf16.msra.mxu0 %v1156
        %1166 = vmatpush.bf16.msra.mxu0 %v1155
        %1167 = vmatmul.bf16.gmra.mxu0 %v653
        %v1168 = vpop.f32.mrf.mxu0
        %v1169 = vadd.f32 0.0, %v1168
        %v1170 = vpop.f32.mrf.mxu0
        %1171 = vdwg.mxu0
        %v1172 = vpack.c.bf16 %v1121, %v1121
        %v1173 = vpack.c.bf16 %v1144, %v1144
        %v1175 = vsel %vm721, %v1172, 0
        %v1178 = vsel %vm721, %v1173, 0
        %1180 = vmatpush.bf16.xpose.msra.mxu0 0
        %1181 = vmatpush.bf16.xpose.msra.mxu0 0
        %1182 = vmatpush.bf16.xpose.msra.mxu0 0
        %1183 = vmatpush.bf16.xpose.msra.mxu0 0
        %1184 = vmatpush.bf16.xpose.msra.mxu0 0
        %1185 = vmatpush.bf16.xpose.msra.mxu0 0
        %1186 = vmatpush.bf16.xpose.msra.mxu0 0
        %1187 = vmatpush.bf16.xpose.msra.mxu0 %v1178
        %1188 = vmatmul.bf16.gmra.mxu0 %v1175
        %v1189 = vpop.f32.mrf.mxu0
        %v1190 = vadd.f32 0.0, %v1189
        %v1191 = vpop.f32.mrf.mxu0
        %1192 = vdwg.mxu0
        %v1193 = vsel %vm550, -1e+30, %v1190
        %v1194 = vsel %vm721, %v1193, -inf
        %1195 = vmax.xlane.f32.xlu0 %v1194
        %v1196 = vpop.xlane.xlu0 %1195
        %v1197 = vsub.f32 %v1193, %v1196
        %v1198 = vmul.f32 %v1197, 1.442695
        %v1199 = vpow.pop %v1198
        %v1200 = vsel %vm721, %v1199, 0.0
        %1201 = vadd.xlane.f32.xlu0 %v1200
        %v1202 = vpop.xlane.xlu0 %1201
        %v1203 = vrcp.pop %v1202
        %v1204 = vmul.f32 %v1199, %v1203
        %v1205 = vpack.c.bf16 %v1204, %v1204
        %v1206 = vpack.c.bf16 %v1169, %v1169
        %v1208 = vsel %vm721, %v1205, 0
        %v1211 = vsel %vm758, %v1206, 0
        %1213 = vmatpush.bf16.msra.mxu0 0
        %1214 = vmatpush.bf16.msra.mxu0 0
        %1215 = vmatpush.bf16.msra.mxu0 0
        %1216 = vmatpush.bf16.msra.mxu0 0
        %1217 = vmatpush.bf16.msra.mxu0 0
        %1218 = vmatpush.bf16.msra.mxu0 0
        %1219 = vmatpush.bf16.msra.mxu0 0
        %1220 = vmatpush.bf16.msra.mxu0 %v1211
        %1221 = vmatmul.bf16.gmra.mxu0 %v1208
        %v1222 = vpop.f32.mrf.mxu0
        %v1223 = vadd.f32 0.0, %v1222
        %v1224 = vpop.f32.mrf.mxu0
        %1225 = vdwg.mxu0
        %v1226 = vpack.c.bf16 %v1223, %v1223
        %v1228 = vsel %vm721, %v1226, 0
        %v1231 = vsel %vm758, %v639, 0
        %1233 = vmatpush.bf16.msra.mxu0 0
        %1234 = vmatpush.bf16.msra.mxu0 0
        %1235 = vmatpush.bf16.msra.mxu0 0
        %1236 = vmatpush.bf16.msra.mxu0 0
        %1237 = vmatpush.bf16.msra.mxu0 0
        %1238 = vmatpush.bf16.msra.mxu0 0
        %1239 = vmatpush.bf16.msra.mxu0 0
        %1240 = vmatpush.bf16.msra.mxu0 %v1231
        %1241 = vmatmul.bf16.gmra.mxu0 %v1228
        %v1242 = vpop.f32.mrf.mxu0
        %v1243 = vadd.f32 0.0, %v1242
        %v1244 = vpop.f32.mrf.mxu0
        %1245 = vdwg.mxu0
        %v1246 = vadd.f32 %v1095, %v1243
        %v1247 = vadd.f32 %v545, %v1246
        %v1248 = vld [vmem:[%s7] sm:$0x1]
        %v1249 = vperm.slane %v1248, 0
        %v1250 = vadd.f32 %v1247, %v1249
        %v1251 = vld [vmem:[%s8] sm:$0x1]
        %v1252 = vld [vmem:[%s9] sm:$0x1]
        %v1253 = vsel %vm553, %v1250, 0.0
        %1254 = vadd.xlane.f32.xlu0 %v1253
        %v1255 = vpop.xlane.xlu0 %1254
        %v1256 = vmul.f32 %v1255, %v563
        %v1257 = vsub.f32 %v1250, %v1256
        %v1258 = vmul.f32 %v1257, %v1257
        %v1259 = vsel %vm553, %v1258, 0.0
        %1260 = vadd.xlane.f32.xlu0 %v1259
        %v1261 = vpop.xlane.xlu0 %1260
        %v1262 = vmul.f32 %v1261, %v563
        %v1263 = vadd.f32 %v1262, 1e-05
        %v1264 = vrsqrt.pop %v1263
        %v1265 = vmul.f32 %v1264, %v1263
        %v1266 = vmul.f32 %v1265, %v1264
        %v1267 = vmul.f32 0.5, %v1266
        %v1268 = vsub.f32 1.5, %v1267
        %v1269 = vmul.f32 %v1264, %v1268
        %vm1270 = vweird.f32 %v1263
        %vm1271 = vweird.f32 %v1264
        %vm1272 = vmor %vm1270, %vm1271
        %v1273 = vsel %vm1272, %v1264, %v1269
        %v1274 = vmul.f32 %v1257, %v1273
        %v1275 = vperm.slane %v1251, 0
        %v1276 = vmul.f32 %v1275, %v1274
        %v1277 = vperm.slane %v1252, 0
        %v1278 = vadd.f32 %v1276, %v1277
        %v1279 = vpack.c.bf16 %v1278, %v1278
        %v1280 = vld [vmem:[%s10] sm:$0xf]
        %v1281 = vld [vmem:[%s10 + $0x4] sm:$0xf]
        %v1282 = vld [vmem:[%s10 + $0x8] sm:$0xf]
        %v1283 = vld [vmem:[%s10 + $0xc] sm:$0xf]
        %v1284 = vld [vmem:[%s11] sm:$0x1]
        %v1285 = vperm.slane %v1284, 0
        %v1290 = vunpack.c.l.b16 %v1280
        %v1291 = vunpack.c.l.b16 %v1281
        %v1292 = vunpack.c.l.b16 %v1282
        %v1293 = vunpack.c.l.b16 %v1283
        %v1294 = vpack.c.b16 %v1291, %v1290
        %v1295 = vpack.c.b16 %v1293, %v1292
        %v1299 = vsel %vm553, %v1279, 0
        %1301 = vmatpush.bf16.msra.mxu0 0
        %1302 = vmatpush.bf16.msra.mxu0 0
        %1303 = vmatpush.bf16.msra.mxu0 0
        %1304 = vmatpush.bf16.msra.mxu0 0
        %1305 = vmatpush.bf16.msra.mxu0 0
        %1306 = vmatpush.bf16.msra.mxu0 0
        %1307 = vmatpush.bf16.msra.mxu0 %v1295
        %1308 = vmatpush.bf16.msra.mxu0 %v1294
        %1309 = vmatmul.bf16.gmra.mxu0 %v1299
        %v1310 = vpop.f32.mrf.mxu0
        %v1311 = vadd.f32 %v1285, %v1310
        %v1312 = vpop.f32.mrf.mxu0
        %1313 = vdwg.mxu0
        %v1314 = vmul.f32 %v1311, 0.5
        %v1315 = vmul.f32 %v1311, 0.044715
        %v1316 = vmul.f32 %v1315, %v1311
        %v1317 = vmul.f32 %v1316, %v1311
        %v1318 = vadd.f32 %v1311, %v1317
        %v1319 = vmul.f32 %v1318, 0.7978846
        %v1320 = vtanh.pop %v1319
        %v1321 = vadd.f32 %v1320, 1.0
        %v1322 = vmul.f32 %v1314, %v1321
        %v1323 = vpack.c.bf16 %v1322, %v1322
        %v1324 = vld [vmem:[%s12] sm:$0xf]
        %v1325 = vld [vmem:[%s12 + $0x4] sm:$0xf]
        %v1326 = vld [vmem:[%s12 + $0x8] sm:$0xf]
        %v1327 = vld [vmem:[%s12 + $0xc] sm:$0xf]
        %v1328 = vld [vmem:[%s12 + $0x10] sm:$0xf]
        %v1329 = vld [vmem:[%s12 + $0x14] sm:$0xf]
        %v1330 = vld [vmem:[%s12 + $0x18] sm:$0xf]
        %v1331 = vld [vmem:[%s12 + $0x1c] sm:$0xf]
        %v1332 = vld [vmem:[%s12 + $0x20] sm:$0xf]
        %v1333 = vld [vmem:[%s12 + $0x24] sm:$0xf]
        %v1334 = vld [vmem:[%s12 + $0x28] sm:$0xf]
        %v1335 = vld [vmem:[%s12 + $0x2c] sm:$0xf]
        %v1336 = vld [vmem:[%s12 + $0x30] sm:$0xf]
        %v1337 = vld [vmem:[%s12 + $0x34] sm:$0xf]
        %v1338 = vld [vmem:[%s12 + $0x38] sm:$0xf]
        %v1339 = vld [vmem:[%s12 + $0x3c] sm:$0xf]
        %v1340 = vld [vmem:[%s13] sm:$0x1]
        %v1341 = vperm.slane %v1340, 0
        %v1358 = vunpack.c.l.b16 %v1324
        %v1359 = vunpack.c.l.b16 %v1325
        %v1360 = vunpack.c.l.b16 %v1326
        %v1361 = vunpack.c.l.b16 %v1327
        %v1362 = vunpack.c.l.b16 %v1328
        %v1363 = vunpack.c.l.b16 %v1329
        %v1364 = vunpack.c.l.b16 %v1330
        %v1365 = vunpack.c.l.b16 %v1331
        %v1366 = vunpack.c.l.b16 %v1332
        %v1367 = vunpack.c.l.b16 %v1333
        %v1368 = vunpack.c.l.b16 %v1334
        %v1369 = vunpack.c.l.b16 %v1335
        %v1370 = vunpack.c.l.b16 %v1336
        %v1371 = vunpack.c.l.b16 %v1337
        %v1372 = vunpack.c.l.b16 %v1338
        %v1373 = vunpack.c.l.b16 %v1339
        %v1374 = vpack.c.b16 %v1359, %v1358
        %v1375 = vpack.c.b16 %v1361, %v1360
        %v1376 = vpack.c.b16 %v1363, %v1362
        %v1377 = vpack.c.b16 %v1365, %v1364
        %v1378 = vpack.c.b16 %v1367, %v1366
        %v1379 = vpack.c.b16 %v1369, %v1368
        %v1380 = vpack.c.b16 %v1371, %v1370
        %v1381 = vpack.c.b16 %v1373, %v1372
        %1390 = vmatpush.bf16.msra.mxu0 %v1381
        %1391 = vmatpush.bf16.msra.mxu0 %v1380
        %1392 = vmatpush.bf16.msra.mxu0 %v1379
        %1393 = vmatpush.bf16.msra.mxu0 %v1378
        %1394 = vmatpush.bf16.msra.mxu0 %v1377
        %1395 = vmatpush.bf16.msra.mxu0 %v1376
        %1396 = vmatpush.bf16.msra.mxu0 %v1375
        %1397 = vmatpush.bf16.msra.mxu0 %v1374
        %1398 = vmatmul.bf16.gmra.mxu0 %v1323
        %v1399 = vpop.f32.mrf.mxu0
        %v1400 = vadd.f32 %v1341, %v1399
        %v1401 = vpop.f32.mrf.mxu0
        %1402 = vdwg.mxu0
        %v1403 = vadd.f32 %v1250, %v1400
        %v1404 = vld [vmem:[%s1 + $0x1] sm:$0x1]
        %v1405 = vld [vmem:[%s2 + $0x1] sm:$0x1]
        %v1406 = vsel %vm553, %v1403, 0.0
        %1407 = vadd.xlane.f32.xlu0 %v1406
        %v1408 = vpop.xlane.xlu0 %1407
        %v1409 = vmul.f32 %v1408, %v563
        %v1410 = vsub.f32 %v1403, %v1409
        %v1411 = vmul.f32 %v1410, %v1410
        %v1412 = vsel %vm553, %v1411, 0.0
        %1413 = vadd.xlane.f32.xlu0 %v1412
        %v1414 = vpop.xlane.xlu0 %1413
        %v1415 = vmul.f32 %v1414, %v563
        %v1416 = vadd.f32 %v1415, 1e-05
        %v1417 = vrsqrt.pop %v1416
        %v1418 = vmul.f32 %v1417, %v1416
        %v1419 = vmul.f32 %v1418, %v1417
        %v1420 = vmul.f32 0.5, %v1419
        %v1421 = vsub.f32 1.5, %v1420
        %v1422 = vmul.f32 %v1417, %v1421
        %vm1423 = vweird.f32 %v1416
        %vm1424 = vweird.f32 %v1417
        %vm1425 = vmor %vm1423, %vm1424
        %v1426 = vsel %vm1425, %v1417, %v1422
        %v1427 = vmul.f32 %v1410, %v1426
        %v1428 = vperm.slane %v1404, 0
        %v1429 = vmul.f32 %v1428, %v1427
        %v1430 = vperm.slane %v1405, 0
        %v1431 = vadd.f32 %v1429, %v1430
        %v1432 = vpack.c.bf16 %v1431, %v1431
        %s1433 = scalar_lea.vmem %s3, 64
        %v1434 = vld [vmem:[%s1433] sm:$0xf]
        %v1435 = vld [vmem:[%s1433 + $0x4] sm:$0xf]
        %v1436 = vld [vmem:[%s1433 + $0x8] sm:$0xf]
        %v1437 = vld [vmem:[%s1433 + $0xc] sm:$0xf]
        %v1438 = vld [vmem:[%s1433 + $0x10] sm:$0xf]
        %v1439 = vld [vmem:[%s1433 + $0x14] sm:$0xf]
        %v1440 = vld [vmem:[%s1433 + $0x18] sm:$0xf]
        %v1441 = vld [vmem:[%s1433 + $0x1c] sm:$0xf]
        %v1442 = vld [vmem:[%s1433 + $0x20] sm:$0xf]
        %v1443 = vld [vmem:[%s1433 + $0x24] sm:$0xf]
        %v1444 = vld [vmem:[%s1433 + $0x28] sm:$0xf]
        %v1445 = vld [vmem:[%s1433 + $0x2c] sm:$0xf]
        %v1446 = vld [vmem:[%s1433 + $0x30] sm:$0xf]
        %v1447 = vld [vmem:[%s1433 + $0x34] sm:$0xf]
        %v1448 = vld [vmem:[%s1433 + $0x38] sm:$0xf]
        %v1449 = vld [vmem:[%s1433 + $0x3c] sm:$0xf]
        %s1450 = scalar_lea.vmem %s4, 64
        %v1451 = vld [vmem:[%s1450] sm:$0xf]
        %v1452 = vld [vmem:[%s1450 + $0x4] sm:$0xf]
        %v1453 = vld [vmem:[%s1450 + $0x8] sm:$0xf]
        %v1454 = vld [vmem:[%s1450 + $0xc] sm:$0xf]
        %v1455 = vld [vmem:[%s1450 + $0x10] sm:$0xf]
        %v1456 = vld [vmem:[%s1450 + $0x14] sm:$0xf]
        %v1457 = vld [vmem:[%s1450 + $0x18] sm:$0xf]
        %v1458 = vld [vmem:[%s1450 + $0x1c] sm:$0xf]
        %v1459 = vld [vmem:[%s1450 + $0x20] sm:$0xf]
        %v1460 = vld [vmem:[%s1450 + $0x24] sm:$0xf]
        %v1461 = vld [vmem:[%s1450 + $0x28] sm:$0xf]
        %v1462 = vld [vmem:[%s1450 + $0x2c] sm:$0xf]
        %v1463 = vld [vmem:[%s1450 + $0x30] sm:$0xf]
        %v1464 = vld [vmem:[%s1450 + $0x34] sm:$0xf]
        %v1465 = vld [vmem:[%s1450 + $0x38] sm:$0xf]
        %v1466 = vld [vmem:[%s1450 + $0x3c] sm:$0xf]
        %s1467 = scalar_lea.vmem %s5, 64
        %v1468 = vld [vmem:[%s1467] sm:$0xf]
        %v1469 = vld [vmem:[%s1467 + $0x4] sm:$0xf]
        %v1470 = vld [vmem:[%s1467 + $0x8] sm:$0xf]
        %v1471 = vld [vmem:[%s1467 + $0xc] sm:$0xf]
        %v1472 = vld [vmem:[%s1467 + $0x10] sm:$0xf]
        %v1473 = vld [vmem:[%s1467 + $0x14] sm:$0xf]
        %v1474 = vld [vmem:[%s1467 + $0x18] sm:$0xf]
        %v1475 = vld [vmem:[%s1467 + $0x1c] sm:$0xf]
        %v1476 = vld [vmem:[%s1467 + $0x20] sm:$0xf]
        %v1477 = vld [vmem:[%s1467 + $0x24] sm:$0xf]
        %v1478 = vld [vmem:[%s1467 + $0x28] sm:$0xf]
        %v1479 = vld [vmem:[%s1467 + $0x2c] sm:$0xf]
        %v1480 = vld [vmem:[%s1467 + $0x30] sm:$0xf]
        %v1481 = vld [vmem:[%s1467 + $0x34] sm:$0xf]
        %v1482 = vld [vmem:[%s1467 + $0x38] sm:$0xf]
        %v1483 = vld [vmem:[%s1467 + $0x3c] sm:$0xf]
        %s1484 = scalar_lea.vmem %s6, 16
        %v1485 = vld [vmem:[%s1484] sm:$0xf]
        %v1486 = vld [vmem:[%s1484 + $0x4] sm:$0xf]
        %v1487 = vld [vmem:[%s1484 + $0x8] sm:$0xf]
        %v1488 = vld [vmem:[%s1484 + $0xc] sm:$0xf]
        %v1493 = vunpack.c.l.b16 %v1434
        %v1494 = vunpack.c.l.b16 %v1435
        %v1495 = vunpack.c.l.b16 %v1436
        %v1496 = vunpack.c.l.b16 %v1437
        %v1497 = vpack.c.b16 %v1494, %v1493
        %v1498 = vpack.c.b16 %v1496, %v1495
        %v1502 = vsel %vm553, %v1432, 0
        %1504 = vmatpush.bf16.msra.mxu0 0
        %1505 = vmatpush.bf16.msra.mxu0 0
        %1506 = vmatpush.bf16.msra.mxu0 0
        %1507 = vmatpush.bf16.msra.mxu0 0
        %1508 = vmatpush.bf16.msra.mxu0 0
        %1509 = vmatpush.bf16.msra.mxu0 0
        %1510 = vmatpush.bf16.msra.mxu0 %v1498
        %1511 = vmatpush.bf16.msra.mxu0 %v1497
        %1512 = vmatmul.bf16.gmra.mxu0 %v1502
        %v1513 = vpop.f32.mrf.mxu0
        %v1514 = vadd.f32 0.0, %v1513
        %v1515 = vpop.f32.mrf.mxu0
        %1516 = vdwg.mxu0
        %v1517 = vmul.f32 %v1514, 0.35355338
        %v1522 = vunpack.c.l.b16 %v1451
        %v1523 = vunpack.c.l.b16 %v1452
        %v1524 = vunpack.c.l.b16 %v1453
        %v1525 = vunpack.c.l.b16 %v1454
        %v1526 = vpack.c.b16 %v1523, %v1522
        %v1527 = vpack.c.b16 %v1525, %v1524
        %1530 = vmatpush.bf16.msra.mxu0 0
        %1531 = vmatpush.bf16.msra.mxu0 0
        %1532 = vmatpush.bf16.msra.mxu0 0
        %1533 = vmatpush.bf16.msra.mxu0 0
        %1534 = vmatpush.bf16.msra.mxu0 0
        %1535 = vmatpush.bf16.msra.mxu0 0
        %1536 = vmatpush.bf16.msra.mxu0 %v1527
        %1537 = vmatpush.bf16.msra.mxu0 %v1526
        %1538 = vmatmul.bf16.gmra.mxu0 %v1502
        %v1539 = vpop.f32.mrf.mxu0
        %v1540 = vadd.f32 0.0, %v1539
        %v1541 = vpop.f32.mrf.mxu0
        %1542 = vdwg.mxu0
        %v1547 = vunpack.c.l.b16 %v1468
        %v1548 = vunpack.c.l.b16 %v1469
        %v1549 = vunpack.c.l.b16 %v1470
        %v1550 = vunpack.c.l.b16 %v1471
        %v1551 = vpack.c.b16 %v1548, %v1547
        %v1552 = vpack.c.b16 %v1550, %v1549
        %1555 = vmatpush.bf16.msra.mxu0 0
        %1556 = vmatpush.bf16.msra.mxu0 0
        %1557 = vmatpush.bf16.msra.mxu0 0
        %1558 = vmatpush.bf16.msra.mxu0 0
        %1559 = vmatpush.bf16.msra.mxu0 0
        %1560 = vmatpush.bf16.msra.mxu0 0
        %1561 = vmatpush.bf16.msra.mxu0 %v1552
        %1562 = vmatpush.bf16.msra.mxu0 %v1551
        %1563 = vmatmul.bf16.gmra.mxu0 %v1502
        %v1564 = vpop.f32.mrf.mxu0
        %v1565 = vadd.f32 0.0, %v1564
        %v1566 = vpop.f32.mrf.mxu0
        %1567 = vdwg.mxu0
        %v1568 = vpack.c.bf16 %v1517, %v1517
        %v1569 = vpack.c.bf16 %v1540, %v1540
        %v1571 = vsel %vm721, %v1568, 0
        %v1574 = vsel %vm721, %v1569, 0
        %1576 = vmatpush.bf16.xpose.msra.mxu0 0
        %1577 = vmatpush.bf16.xpose.msra.mxu0 0
        %1578 = vmatpush.bf16.xpose.msra.mxu0 0
        %1579 = vmatpush.bf16.xpose.msra.mxu0 0
        %1580 = vmatpush.bf16.xpose.msra.mxu0 0
        %1581 = vmatpush.bf16.xpose.msra.mxu0 0
        %1582 = vmatpush.bf16.xpose.msra.mxu0 0
        %1583 = vmatpush.bf16.xpose.msra.mxu0 %v1574
        %1584 = vmatmul.bf16.gmra.mxu0 %v1571
        %v1585 = vpop.f32.mrf.mxu0
        %v1586 = vadd.f32 0.0, %v1585
        %v1587 = vpop.f32.mrf.mxu0
        %1588 = vdwg.mxu0
        %v1589 = vsel %vm550, -1e+30, %v1586
        %v1590 = vsel %vm721, %v1589, -inf
        %1591 = vmax.xlane.f32.xlu0 %v1590
        %v1592 = vpop.xlane.xlu0 %1591
        %v1593 = vsub.f32 %v1589, %v1592
        %v1594 = vmul.f32 %v1593, 1.442695
        %v1595 = vpow.pop %v1594
        %v1596 = vsel %vm721, %v1595, 0.0
        %1597 = vadd.xlane.f32.xlu0 %v1596
        %v1598 = vpop.xlane.xlu0 %1597
        %v1599 = vrcp.pop %v1598
        %v1600 = vmul.f32 %v1595, %v1599
        %v1601 = vpack.c.bf16 %v1600, %v1600
        %v1602 = vpack.c.bf16 %v1565, %v1565
        %v1604 = vsel %vm721, %v1601, 0
        %v1607 = vsel %vm758, %v1602, 0
        %1609 = vmatpush.bf16.msra.mxu0 0
        %1610 = vmatpush.bf16.msra.mxu0 0
        %1611 = vmatpush.bf16.msra.mxu0 0
        %1612 = vmatpush.bf16.msra.mxu0 0
        %1613 = vmatpush.bf16.msra.mxu0 0
        %1614 = vmatpush.bf16.msra.mxu0 0
        %1615 = vmatpush.bf16.msra.mxu0 0
        %1616 = vmatpush.bf16.msra.mxu0 %v1607
        %1617 = vmatmul.bf16.gmra.mxu0 %v1604
        %v1618 = vpop.f32.mrf.mxu0
        %v1619 = vadd.f32 0.0, %v1618
        %v1620 = vpop.f32.mrf.mxu0
        %1621 = vdwg.mxu0
        %v1622 = vpack.c.bf16 %v1619, %v1619
        %v1627 = vunpack.c.l.b16 %v1438
        %v1628 = vunpack.c.l.b16 %v1439
        %v1629 = vunpack.c.l.b16 %v1440
        %v1630 = vunpack.c.l.b16 %v1441
        %v1631 = vpack.c.b16 %v1628, %v1627
        %v1632 = vpack.c.b16 %v1630, %v1629
        %1635 = vmatpush.bf16.msra.mxu0 0
        %1636 = vmatpush.bf16.msra.mxu0 0
        %1637 = vmatpush.bf16.msra.mxu0 0
        %1638 = vmatpush.bf16.msra.mxu0 0
        %1639 = vmatpush.bf16.msra.mxu0 0
        %1640 = vmatpush.bf16.msra.mxu0 0
        %1641 = vmatpush.bf16.msra.mxu0 %v1632
        %1642 = vmatpush.bf16.msra.mxu0 %v1631
        %1643 = vmatmul.bf16.gmra.mxu0 %v1502
        %v1644 = vpop.f32.mrf.mxu0
        %v1645 = vadd.f32 0.0, %v1644
        %v1646 = vpop.f32.mrf.mxu0
        %1647 = vdwg.mxu0
        %v1648 = vmul.f32 %v1645, 0.35355338
        %v1653 = vunpack.c.l.b16 %v1455
        %v1654 = vunpack.c.l.b16 %v1456
        %v1655 = vunpack.c.l.b16 %v1457
        %v1656 = vunpack.c.l.b16 %v1458
        %v1657 = vpack.c.b16 %v1654, %v1653
        %v1658 = vpack.c.b16 %v1656, %v1655
        %1661 = vmatpush.bf16.msra.mxu0 0
        %1662 = vmatpush.bf16.msra.mxu0 0
        %1663 = vmatpush.bf16.msra.mxu0 0
        %1664 = vmatpush.bf16.msra.mxu0 0
        %1665 = vmatpush.bf16.msra.mxu0 0
        %1666 = vmatpush.bf16.msra.mxu0 0
        %1667 = vmatpush.bf16.msra.mxu0 %v1658
        %1668 = vmatpush.bf16.msra.mxu0 %v1657
        %1669 = vmatmul.bf16.gmra.mxu0 %v1502
        %v1670 = vpop.f32.mrf.mxu0
        %v1671 = vadd.f32 0.0, %v1670
        %v1672 = vpop.f32.mrf.mxu0
        %1673 = vdwg.mxu0
        %v1678 = vunpack.c.l.b16 %v1472
        %v1679 = vunpack.c.l.b16 %v1473
        %v1680 = vunpack.c.l.b16 %v1474
        %v1681 = vunpack.c.l.b16 %v1475
        %v1682 = vpack.c.b16 %v1679, %v1678
        %v1683 = vpack.c.b16 %v1681, %v1680
        %1686 = vmatpush.bf16.msra.mxu0 0
        %1687 = vmatpush.bf16.msra.mxu0 0
        %1688 = vmatpush.bf16.msra.mxu0 0
        %1689 = vmatpush.bf16.msra.mxu0 0
        %1690 = vmatpush.bf16.msra.mxu0 0
        %1691 = vmatpush.bf16.msra.mxu0 0
        %1692 = vmatpush.bf16.msra.mxu0 %v1683
        %1693 = vmatpush.bf16.msra.mxu0 %v1682
        %1694 = vmatmul.bf16.gmra.mxu0 %v1502
        %v1695 = vpop.f32.mrf.mxu0
        %v1696 = vadd.f32 0.0, %v1695
        %v1697 = vpop.f32.mrf.mxu0
        %1698 = vdwg.mxu0
        %v1699 = vpack.c.bf16 %v1648, %v1648
        %v1700 = vpack.c.bf16 %v1671, %v1671
        %v1702 = vsel %vm721, %v1699, 0
        %v1705 = vsel %vm721, %v1700, 0
        %1707 = vmatpush.bf16.xpose.msra.mxu0 0
        %1708 = vmatpush.bf16.xpose.msra.mxu0 0
        %1709 = vmatpush.bf16.xpose.msra.mxu0 0
        %1710 = vmatpush.bf16.xpose.msra.mxu0 0
        %1711 = vmatpush.bf16.xpose.msra.mxu0 0
        %1712 = vmatpush.bf16.xpose.msra.mxu0 0
        %1713 = vmatpush.bf16.xpose.msra.mxu0 0
        %1714 = vmatpush.bf16.xpose.msra.mxu0 %v1705
        %1715 = vmatmul.bf16.gmra.mxu0 %v1702
        %v1716 = vpop.f32.mrf.mxu0
        %v1717 = vadd.f32 0.0, %v1716
        %v1718 = vpop.f32.mrf.mxu0
        %1719 = vdwg.mxu0
        %v1720 = vsel %vm550, -1e+30, %v1717
        %v1721 = vsel %vm721, %v1720, -inf
        %1722 = vmax.xlane.f32.xlu0 %v1721
        %v1723 = vpop.xlane.xlu0 %1722
        %v1724 = vsub.f32 %v1720, %v1723
        %v1725 = vmul.f32 %v1724, 1.442695
        %v1726 = vpow.pop %v1725
        %v1727 = vsel %vm721, %v1726, 0.0
        %1728 = vadd.xlane.f32.xlu0 %v1727
        %v1729 = vpop.xlane.xlu0 %1728
        %v1730 = vrcp.pop %v1729
        %v1731 = vmul.f32 %v1726, %v1730
        %v1732 = vpack.c.bf16 %v1731, %v1731
        %v1733 = vpack.c.bf16 %v1696, %v1696
        %v1735 = vsel %vm721, %v1732, 0
        %v1738 = vsel %vm758, %v1733, 0
        %1740 = vmatpush.bf16.msra.mxu0 0
        %1741 = vmatpush.bf16.msra.mxu0 0
        %1742 = vmatpush.bf16.msra.mxu0 0
        %1743 = vmatpush.bf16.msra.mxu0 0
        %1744 = vmatpush.bf16.msra.mxu0 0
        %1745 = vmatpush.bf16.msra.mxu0 0
        %1746 = vmatpush.bf16.msra.mxu0 0
        %1747 = vmatpush.bf16.msra.mxu0 %v1738
        %1748 = vmatmul.bf16.gmra.mxu0 %v1735
        %v1749 = vpop.f32.mrf.mxu0
        %v1750 = vadd.f32 0.0, %v1749
        %v1751 = vpop.f32.mrf.mxu0
        %1752 = vdwg.mxu0
        %v1753 = vpack.c.bf16 %v1750, %v1750
        %v1755 = vsel %vm721, %v1753, 0
        %v1758 = vsel %vm758, %v1486, 0
        %1760 = vmatpush.bf16.msra.mxu0 0
        %1761 = vmatpush.bf16.msra.mxu0 0
        %1762 = vmatpush.bf16.msra.mxu0 0
        %1763 = vmatpush.bf16.msra.mxu0 0
        %1764 = vmatpush.bf16.msra.mxu0 0
        %1765 = vmatpush.bf16.msra.mxu0 0
        %1766 = vmatpush.bf16.msra.mxu0 0
        %1767 = vmatpush.bf16.msra.mxu0 %v1758
        %1768 = vmatmul.bf16.gmra.mxu0 %v1755
        %v1769 = vpop.f32.mrf.mxu0
        %v1770 = vadd.f32 0.0, %v1769
        %v1771 = vpop.f32.mrf.mxu0
        %1772 = vdwg.mxu0
        %v1774 = vsel %vm721, %v1622, 0
        %v1777 = vsel %vm758, %v1485, 0
        %1779 = vmatpush.bf16.msra.mxu0 0
        %1780 = vmatpush.bf16.msra.mxu0 0
        %1781 = vmatpush.bf16.msra.mxu0 0
        %1782 = vmatpush.bf16.msra.mxu0 0
        %1783 = vmatpush.bf16.msra.mxu0 0
        %1784 = vmatpush.bf16.msra.mxu0 0
        %1785 = vmatpush.bf16.msra.mxu0 0
        %1786 = vmatpush.bf16.msra.mxu0 %v1777
        %1787 = vmatmul.bf16.gmra.mxu0 %v1774
        %v1788 = vpop.f32.mrf.mxu0
        %v1789 = vadd.f32 %v1770, %v1788
        %v1790 = vpop.f32.mrf.mxu0
        %1791 = vdwg.mxu0
        %v1796 = vunpack.c.l.b16 %v1442
        %v1797 = vunpack.c.l.b16 %v1443
        %v1798 = vunpack.c.l.b16 %v1444
        %v1799 = vunpack.c.l.b16 %v1445
        %v1800 = vpack.c.b16 %v1797, %v1796
        %v1801 = vpack.c.b16 %v1799, %v1798
        %1804 = vmatpush.bf16.msra.mxu0 0
        %1805 = vmatpush.bf16.msra.mxu0 0
        %1806 = vmatpush.bf16.msra.mxu0 0
        %1807 = vmatpush.bf16.msra.mxu0 0
        %1808 = vmatpush.bf16.msra.mxu0 0
        %1809 = vmatpush.bf16.msra.mxu0 0
        %1810 = vmatpush.bf16.msra.mxu0 %v1801
        %1811 = vmatpush.bf16.msra.mxu0 %v1800
        %1812 = vmatmul.bf16.gmra.mxu0 %v1502
        %v1813 = vpop.f32.mrf.mxu0
        %v1814 = vadd.f32 0.0, %v1813
        %v1815 = vpop.f32.mrf.mxu0
        %1816 = vdwg.mxu0
        %v1817 = vmul.f32 %v1814, 0.35355338
        %v1822 = vunpack.c.l.b16 %v1459
        %v1823 = vunpack.c.l.b16 %v1460
        %v1824 = vunpack.c.l.b16 %v1461
        %v1825 = vunpack.c.l.b16 %v1462
        %v1826 = vpack.c.b16 %v1823, %v1822
        %v1827 = vpack.c.b16 %v1825, %v1824
        %1830 = vmatpush.bf16.msra.mxu0 0
        %1831 = vmatpush.bf16.msra.mxu0 0
        %1832 = vmatpush.bf16.msra.mxu0 0
        %1833 = vmatpush.bf16.msra.mxu0 0
        %1834 = vmatpush.bf16.msra.mxu0 0
        %1835 = vmatpush.bf16.msra.mxu0 0
        %1836 = vmatpush.bf16.msra.mxu0 %v1827
        %1837 = vmatpush.bf16.msra.mxu0 %v1826
        %1838 = vmatmul.bf16.gmra.mxu0 %v1502
        %v1839 = vpop.f32.mrf.mxu0
        %v1840 = vadd.f32 0.0, %v1839
        %v1841 = vpop.f32.mrf.mxu0
        %1842 = vdwg.mxu0
        %v1847 = vunpack.c.l.b16 %v1476
        %v1848 = vunpack.c.l.b16 %v1477
        %v1849 = vunpack.c.l.b16 %v1478
        %v1850 = vunpack.c.l.b16 %v1479
        %v1851 = vpack.c.b16 %v1848, %v1847
        %v1852 = vpack.c.b16 %v1850, %v1849
        %1855 = vmatpush.bf16.msra.mxu0 0
        %1856 = vmatpush.bf16.msra.mxu0 0
        %1857 = vmatpush.bf16.msra.mxu0 0
        %1858 = vmatpush.bf16.msra.mxu0 0
        %1859 = vmatpush.bf16.msra.mxu0 0
        %1860 = vmatpush.bf16.msra.mxu0 0
        %1861 = vmatpush.bf16.msra.mxu0 %v1852
        %1862 = vmatpush.bf16.msra.mxu0 %v1851
        %1863 = vmatmul.bf16.gmra.mxu0 %v1502
        %v1864 = vpop.f32.mrf.mxu0
        %v1865 = vadd.f32 0.0, %v1864
        %v1866 = vpop.f32.mrf.mxu0
        %1867 = vdwg.mxu0
        %v1868 = vpack.c.bf16 %v1817, %v1817
        %v1869 = vpack.c.bf16 %v1840, %v1840
        %v1871 = vsel %vm721, %v1868, 0
        %v1874 = vsel %vm721, %v1869, 0
        %1876 = vmatpush.bf16.xpose.msra.mxu0 0
        %1877 = vmatpush.bf16.xpose.msra.mxu0 0
        %1878 = vmatpush.bf16.xpose.msra.mxu0 0
        %1879 = vmatpush.bf16.xpose.msra.mxu0 0
        %1880 = vmatpush.bf16.xpose.msra.mxu0 0
        %1881 = vmatpush.bf16.xpose.msra.mxu0 0
        %1882 = vmatpush.bf16.xpose.msra.mxu0 0
        %1883 = vmatpush.bf16.xpose.msra.mxu0 %v1874
        %1884 = vmatmul.bf16.gmra.mxu0 %v1871
        %v1885 = vpop.f32.mrf.mxu0
        %v1886 = vadd.f32 0.0, %v1885
        %v1887 = vpop.f32.mrf.mxu0
        %1888 = vdwg.mxu0
        %v1889 = vsel %vm550, -1e+30, %v1886
        %v1890 = vsel %vm721, %v1889, -inf
        %1891 = vmax.xlane.f32.xlu0 %v1890
        %v1892 = vpop.xlane.xlu0 %1891
        %v1893 = vsub.f32 %v1889, %v1892
        %v1894 = vmul.f32 %v1893, 1.442695
        %v1895 = vpow.pop %v1894
        %v1896 = vsel %vm721, %v1895, 0.0
        %1897 = vadd.xlane.f32.xlu0 %v1896
        %v1898 = vpop.xlane.xlu0 %1897
        %v1899 = vrcp.pop %v1898
        %v1900 = vmul.f32 %v1895, %v1899
        %v1901 = vpack.c.bf16 %v1900, %v1900
        %v1902 = vpack.c.bf16 %v1865, %v1865
        %v1904 = vsel %vm721, %v1901, 0
        %v1907 = vsel %vm758, %v1902, 0
        %1909 = vmatpush.bf16.msra.mxu0 0
        %1910 = vmatpush.bf16.msra.mxu0 0
        %1911 = vmatpush.bf16.msra.mxu0 0
        %1912 = vmatpush.bf16.msra.mxu0 0
        %1913 = vmatpush.bf16.msra.mxu0 0
        %1914 = vmatpush.bf16.msra.mxu0 0
        %1915 = vmatpush.bf16.msra.mxu0 0
        %1916 = vmatpush.bf16.msra.mxu0 %v1907
        %1917 = vmatmul.bf16.gmra.mxu0 %v1904
        %v1918 = vpop.f32.mrf.mxu0
        %v1919 = vadd.f32 0.0, %v1918
        %v1920 = vpop.f32.mrf.mxu0
        %1921 = vdwg.mxu0
        %v1922 = vpack.c.bf16 %v1919, %v1919
        %v1924 = vsel %vm721, %v1922, 0
        %v1927 = vsel %vm758, %v1487, 0
        %1929 = vmatpush.bf16.msra.mxu0 0
        %1930 = vmatpush.bf16.msra.mxu0 0
        %1931 = vmatpush.bf16.msra.mxu0 0
        %1932 = vmatpush.bf16.msra.mxu0 0
        %1933 = vmatpush.bf16.msra.mxu0 0
        %1934 = vmatpush.bf16.msra.mxu0 0
        %1935 = vmatpush.bf16.msra.mxu0 0
        %1936 = vmatpush.bf16.msra.mxu0 %v1927
        %1937 = vmatmul.bf16.gmra.mxu0 %v1924
        %v1938 = vpop.f32.mrf.mxu0
        %v1939 = vadd.f32 0.0, %v1938
        %v1940 = vpop.f32.mrf.mxu0
        %1941 = vdwg.mxu0
        %v1942 = vadd.f32 %v1789, %v1939
        %v1947 = vunpack.c.l.b16 %v1446
        %v1948 = vunpack.c.l.b16 %v1447
        %v1949 = vunpack.c.l.b16 %v1448
        %v1950 = vunpack.c.l.b16 %v1449
        %v1951 = vpack.c.b16 %v1948, %v1947
        %v1952 = vpack.c.b16 %v1950, %v1949
        %1955 = vmatpush.bf16.msra.mxu0 0
        %1956 = vmatpush.bf16.msra.mxu0 0
        %1957 = vmatpush.bf16.msra.mxu0 0
        %1958 = vmatpush.bf16.msra.mxu0 0
        %1959 = vmatpush.bf16.msra.mxu0 0
        %1960 = vmatpush.bf16.msra.mxu0 0
        %1961 = vmatpush.bf16.msra.mxu0 %v1952
        %1962 = vmatpush.bf16.msra.mxu0 %v1951
        %1963 = vmatmul.bf16.gmra.mxu0 %v1502
        %v1964 = vpop.f32.mrf.mxu0
        %v1965 = vadd.f32 0.0, %v1964
        %v1966 = vpop.f32.mrf.mxu0
        %1967 = vdwg.mxu0
        %v1968 = vmul.f32 %v1965, 0.35355338
        %v1973 = vunpack.c.l.b16 %v1463
        %v1974 = vunpack.c.l.b16 %v1464
        %v1975 = vunpack.c.l.b16 %v1465
        %v1976 = vunpack.c.l.b16 %v1466
        %v1977 = vpack.c.b16 %v1974, %v1973
        %v1978 = vpack.c.b16 %v1976, %v1975
        %1981 = vmatpush.bf16.msra.mxu0 0
        %1982 = vmatpush.bf16.msra.mxu0 0
        %1983 = vmatpush.bf16.msra.mxu0 0
        %1984 = vmatpush.bf16.msra.mxu0 0
        %1985 = vmatpush.bf16.msra.mxu0 0
        %1986 = vmatpush.bf16.msra.mxu0 0
        %1987 = vmatpush.bf16.msra.mxu0 %v1978
        %1988 = vmatpush.bf16.msra.mxu0 %v1977
        %1989 = vmatmul.bf16.gmra.mxu0 %v1502
        %v1990 = vpop.f32.mrf.mxu0
        %v1991 = vadd.f32 0.0, %v1990
        %v1992 = vpop.f32.mrf.mxu0
        %1993 = vdwg.mxu0
        %v1998 = vunpack.c.l.b16 %v1480
        %v1999 = vunpack.c.l.b16 %v1481
        %v2000 = vunpack.c.l.b16 %v1482
        %v2001 = vunpack.c.l.b16 %v1483
        %v2002 = vpack.c.b16 %v1999, %v1998
        %v2003 = vpack.c.b16 %v2001, %v2000
        %2006 = vmatpush.bf16.msra.mxu0 0
        %2007 = vmatpush.bf16.msra.mxu0 0
        %2008 = vmatpush.bf16.msra.mxu0 0
        %2009 = vmatpush.bf16.msra.mxu0 0
        %2010 = vmatpush.bf16.msra.mxu0 0
        %2011 = vmatpush.bf16.msra.mxu0 0
        %2012 = vmatpush.bf16.msra.mxu0 %v2003
        %2013 = vmatpush.bf16.msra.mxu0 %v2002
        %2014 = vmatmul.bf16.gmra.mxu0 %v1502
        %v2015 = vpop.f32.mrf.mxu0
        %v2016 = vadd.f32 0.0, %v2015
        %v2017 = vpop.f32.mrf.mxu0
        %2018 = vdwg.mxu0
        %v2019 = vpack.c.bf16 %v1968, %v1968
        %v2020 = vpack.c.bf16 %v1991, %v1991
        %v2022 = vsel %vm721, %v2019, 0
        %v2025 = vsel %vm721, %v2020, 0
        %2027 = vmatpush.bf16.xpose.msra.mxu0 0
        %2028 = vmatpush.bf16.xpose.msra.mxu0 0
        %2029 = vmatpush.bf16.xpose.msra.mxu0 0
        %2030 = vmatpush.bf16.xpose.msra.mxu0 0
        %2031 = vmatpush.bf16.xpose.msra.mxu0 0
        %2032 = vmatpush.bf16.xpose.msra.mxu0 0
        %2033 = vmatpush.bf16.xpose.msra.mxu0 0
        %2034 = vmatpush.bf16.xpose.msra.mxu0 %v2025
        %2035 = vmatmul.bf16.gmra.mxu0 %v2022
        %v2036 = vpop.f32.mrf.mxu0
        %v2037 = vadd.f32 0.0, %v2036
        %v2038 = vpop.f32.mrf.mxu0
        %2039 = vdwg.mxu0
        %v2040 = vsel %vm550, -1e+30, %v2037
        %v2041 = vsel %vm721, %v2040, -inf
        %2042 = vmax.xlane.f32.xlu0 %v2041
        %v2043 = vpop.xlane.xlu0 %2042
        %v2044 = vsub.f32 %v2040, %v2043
        %v2045 = vmul.f32 %v2044, 1.442695
        %v2046 = vpow.pop %v2045
        %v2047 = vsel %vm721, %v2046, 0.0
        %2048 = vadd.xlane.f32.xlu0 %v2047
        %v2049 = vpop.xlane.xlu0 %2048
        %v2050 = vrcp.pop %v2049
        %v2051 = vmul.f32 %v2046, %v2050
        %v2052 = vpack.c.bf16 %v2051, %v2051
        %v2053 = vpack.c.bf16 %v2016, %v2016
        %v2055 = vsel %vm721, %v2052, 0
        %v2058 = vsel %vm758, %v2053, 0
        %2060 = vmatpush.bf16.msra.mxu0 0
        %2061 = vmatpush.bf16.msra.mxu0 0
        %2062 = vmatpush.bf16.msra.mxu0 0
        %2063 = vmatpush.bf16.msra.mxu0 0
        %2064 = vmatpush.bf16.msra.mxu0 0
        %2065 = vmatpush.bf16.msra.mxu0 0
        %2066 = vmatpush.bf16.msra.mxu0 0
        %2067 = vmatpush.bf16.msra.mxu0 %v2058
        %2068 = vmatmul.bf16.gmra.mxu0 %v2055
        %v2069 = vpop.f32.mrf.mxu0
        %v2070 = vadd.f32 0.0, %v2069
        %v2071 = vpop.f32.mrf.mxu0
        %2072 = vdwg.mxu0
        %v2073 = vpack.c.bf16 %v2070, %v2070
        %v2075 = vsel %vm721, %v2073, 0
        %v2078 = vsel %vm758, %v1488, 0
        %2080 = vmatpush.bf16.msra.mxu0 0
        %2081 = vmatpush.bf16.msra.mxu0 0
        %2082 = vmatpush.bf16.msra.mxu0 0
        %2083 = vmatpush.bf16.msra.mxu0 0
        %2084 = vmatpush.bf16.msra.mxu0 0
        %2085 = vmatpush.bf16.msra.mxu0 0
        %2086 = vmatpush.bf16.msra.mxu0 0
        %2087 = vmatpush.bf16.msra.mxu0 %v2078
        %2088 = vmatmul.bf16.gmra.mxu0 %v2075
        %v2089 = vpop.f32.mrf.mxu0
        %v2090 = vadd.f32 0.0, %v2089
        %v2091 = vpop.f32.mrf.mxu0
        %2092 = vdwg.mxu0
        %v2093 = vadd.f32 %v1942, %v2090
        %v2094 = vadd.f32 %v1403, %v2093
        %v2095 = vld [vmem:[%s7 + $0x1] sm:$0x1]
        %v2096 = vperm.slane %v2095, 0
        %v2097 = vadd.f32 %v2094, %v2096
        %v2098 = vld [vmem:[%s8 + $0x1] sm:$0x1]
        %v2099 = vld [vmem:[%s9 + $0x1] sm:$0x1]
        %v2100 = vsel %vm553, %v2097, 0.0
        %2101 = vadd.xlane.f32.xlu0 %v2100
        %v2102 = vpop.xlane.xlu0 %2101
        %v2103 = vmul.f32 %v2102, %v563
        %v2104 = vsub.f32 %v2097, %v2103
        %v2105 = vmul.f32 %v2104, %v2104
        %v2106 = vsel %vm553, %v2105, 0.0
        %2107 = vadd.xlane.f32.xlu0 %v2106
        %v2108 = vpop.xlane.xlu0 %2107
        %v2109 = vmul.f32 %v2108, %v563
        %v2110 = vadd.f32 %v2109, 1e-05
        %v2111 = vrsqrt.pop %v2110
        %v2112 = vmul.f32 %v2111, %v2110
        %v2113 = vmul.f32 %v2112, %v2111
        %v2114 = vmul.f32 0.5, %v2113
        %v2115 = vsub.f32 1.5, %v2114
        %v2116 = vmul.f32 %v2111, %v2115
        %vm2117 = vweird.f32 %v2110
        %vm2118 = vweird.f32 %v2111
        %vm2119 = vmor %vm2117, %vm2118
        %v2120 = vsel %vm2119, %v2111, %v2116
        %v2121 = vmul.f32 %v2104, %v2120
        %v2122 = vperm.slane %v2098, 0
        %v2123 = vmul.f32 %v2122, %v2121
        %v2124 = vperm.slane %v2099, 0
        %v2125 = vadd.f32 %v2123, %v2124
        %v2126 = vpack.c.bf16 %v2125, %v2125
        %s2127 = scalar_lea.vmem %s10, 16
        %v2128 = vld [vmem:[%s2127] sm:$0xf]
        %v2129 = vld [vmem:[%s2127 + $0x4] sm:$0xf]
        %v2130 = vld [vmem:[%s2127 + $0x8] sm:$0xf]
        %v2131 = vld [vmem:[%s2127 + $0xc] sm:$0xf]
        %v2132 = vld [vmem:[%s11 + $0x1] sm:$0x1]
        %v2133 = vperm.slane %v2132, 0
        %v2138 = vunpack.c.l.b16 %v2128
        %v2139 = vunpack.c.l.b16 %v2129
        %v2140 = vunpack.c.l.b16 %v2130
        %v2141 = vunpack.c.l.b16 %v2131
        %v2142 = vpack.c.b16 %v2139, %v2138
        %v2143 = vpack.c.b16 %v2141, %v2140
        %v2147 = vsel %vm553, %v2126, 0
        %2149 = vmatpush.bf16.msra.mxu0 0
        %2150 = vmatpush.bf16.msra.mxu0 0
        %2151 = vmatpush.bf16.msra.mxu0 0
        %2152 = vmatpush.bf16.msra.mxu0 0
        %2153 = vmatpush.bf16.msra.mxu0 0
        %2154 = vmatpush.bf16.msra.mxu0 0
        %2155 = vmatpush.bf16.msra.mxu0 %v2143
        %2156 = vmatpush.bf16.msra.mxu0 %v2142
        %2157 = vmatmul.bf16.gmra.mxu0 %v2147
        %v2158 = vpop.f32.mrf.mxu0
        %v2159 = vadd.f32 %v2133, %v2158
        %v2160 = vpop.f32.mrf.mxu0
        %2161 = vdwg.mxu0
        %v2162 = vmul.f32 %v2159, 0.5
        %v2163 = vmul.f32 %v2159, 0.044715
        %v2164 = vmul.f32 %v2163, %v2159
        %v2165 = vmul.f32 %v2164, %v2159
        %v2166 = vadd.f32 %v2159, %v2165
        %v2167 = vmul.f32 %v2166, 0.7978846
        %v2168 = vtanh.pop %v2167
        %v2169 = vadd.f32 %v2168, 1.0
        %v2170 = vmul.f32 %v2162, %v2169
        %v2171 = vpack.c.bf16 %v2170, %v2170
        %s2172 = scalar_lea.vmem %s12, 64
        %v2173 = vld [vmem:[%s2172] sm:$0xf]
        %v2174 = vld [vmem:[%s2172 + $0x4] sm:$0xf]
        %v2175 = vld [vmem:[%s2172 + $0x8] sm:$0xf]
        %v2176 = vld [vmem:[%s2172 + $0xc] sm:$0xf]
        %v2177 = vld [vmem:[%s2172 + $0x10] sm:$0xf]
        %v2178 = vld [vmem:[%s2172 + $0x14] sm:$0xf]
        %v2179 = vld [vmem:[%s2172 + $0x18] sm:$0xf]
        %v2180 = vld [vmem:[%s2172 + $0x1c] sm:$0xf]
        %v2181 = vld [vmem:[%s2172 + $0x20] sm:$0xf]
        %v2182 = vld [vmem:[%s2172 + $0x24] sm:$0xf]
        %v2183 = vld [vmem:[%s2172 + $0x28] sm:$0xf]
        %v2184 = vld [vmem:[%s2172 + $0x2c] sm:$0xf]
        %v2185 = vld [vmem:[%s2172 + $0x30] sm:$0xf]
        %v2186 = vld [vmem:[%s2172 + $0x34] sm:$0xf]
        %v2187 = vld [vmem:[%s2172 + $0x38] sm:$0xf]
        %v2188 = vld [vmem:[%s2172 + $0x3c] sm:$0xf]
        %v2189 = vld [vmem:[%s13 + $0x1] sm:$0x1]
        %v2190 = vperm.slane %v2189, 0
        %v2207 = vunpack.c.l.b16 %v2173
        %v2208 = vunpack.c.l.b16 %v2174
        %v2209 = vunpack.c.l.b16 %v2175
        %v2210 = vunpack.c.l.b16 %v2176
        %v2211 = vunpack.c.l.b16 %v2177
        %v2212 = vunpack.c.l.b16 %v2178
        %v2213 = vunpack.c.l.b16 %v2179
        %v2214 = vunpack.c.l.b16 %v2180
        %v2215 = vunpack.c.l.b16 %v2181
        %v2216 = vunpack.c.l.b16 %v2182
        %v2217 = vunpack.c.l.b16 %v2183
        %v2218 = vunpack.c.l.b16 %v2184
        %v2219 = vunpack.c.l.b16 %v2185
        %v2220 = vunpack.c.l.b16 %v2186
        %v2221 = vunpack.c.l.b16 %v2187
        %v2222 = vunpack.c.l.b16 %v2188
        %v2223 = vpack.c.b16 %v2208, %v2207
        %v2224 = vpack.c.b16 %v2210, %v2209
        %v2225 = vpack.c.b16 %v2212, %v2211
        %v2226 = vpack.c.b16 %v2214, %v2213
        %v2227 = vpack.c.b16 %v2216, %v2215
        %v2228 = vpack.c.b16 %v2218, %v2217
        %v2229 = vpack.c.b16 %v2220, %v2219
        %v2230 = vpack.c.b16 %v2222, %v2221
        %2239 = vmatpush.bf16.msra.mxu0 %v2230
        %2240 = vmatpush.bf16.msra.mxu0 %v2229
        %2241 = vmatpush.bf16.msra.mxu0 %v2228
        %2242 = vmatpush.bf16.msra.mxu0 %v2227
        %2243 = vmatpush.bf16.msra.mxu0 %v2226
        %2244 = vmatpush.bf16.msra.mxu0 %v2225
        %2245 = vmatpush.bf16.msra.mxu0 %v2224
        %2246 = vmatpush.bf16.msra.mxu0 %v2223
        %2247 = vmatmul.bf16.gmra.mxu0 %v2171
        %v2248 = vpop.f32.mrf.mxu0
        %v2249 = vadd.f32 %v2190, %v2248
        %v2250 = vpop.f32.mrf.mxu0
        %2251 = vdwg.mxu0
        %v2252 = vadd.f32 %v2097, %v2249
        %v2253 = vld [vmem:[%s14] sm:$0x1]
        %v2254 = vld [vmem:[%s15] sm:$0x1]
        %v2255 = vsel %vm553, %v2252, 0.0
        %2256 = vadd.xlane.f32.xlu0 %v2255
        %v2257 = vpop.xlane.xlu0 %2256
        %v2258 = vmul.f32 %v2257, %v563
        %v2259 = vsub.f32 %v2252, %v2258
        %v2260 = vmul.f32 %v2259, %v2259
        %v2261 = vsel %vm553, %v2260, 0.0
        %2262 = vadd.xlane.f32.xlu0 %v2261
        %v2263 = vpop.xlane.xlu0 %2262
        %v2264 = vmul.f32 %v2263, %v563
        %v2265 = vadd.f32 %v2264, 1e-05
        %v2266 = vrsqrt.pop %v2265
        %v2267 = vmul.f32 %v2266, %v2265
        %v2268 = vmul.f32 %v2267, %v2266
        %v2269 = vmul.f32 0.5, %v2268
        %v2270 = vsub.f32 1.5, %v2269
        %v2271 = vmul.f32 %v2266, %v2270
        %vm2272 = vweird.f32 %v2265
        %vm2273 = vweird.f32 %v2266
        %vm2274 = vmor %vm2272, %vm2273
        %v2275 = vsel %vm2274, %v2266, %v2271
        %v2276 = vmul.f32 %v2259, %v2275
        %v2278 = vperm.slane %v2253, 0
        %v2280 = vmul.f32 %v2278, %v2276
        %v2282 = vperm.slane %v2254, 0
        %v2284 = vadd.f32 %v2280, %v2282
        %v2285 = vpack.c.bf16 %v2284, %v2284
        %v2286 = vld [vmem:[%s16] sm:$0xf]
        %v2287 = vld [vmem:[%s16 + $0x4] sm:$0xf]
        %v2288 = vld [vmem:[%s16 + $0x8] sm:$0xf]
        %v2289 = vld [vmem:[%s16 + $0xc] sm:$0xf]
        %v2294 = vunpack.c.l.b16 %v2286
        %v2295 = vunpack.c.l.b16 %v2287
        %v2296 = vunpack.c.l.b16 %v2288
        %v2297 = vunpack.c.l.b16 %v2289
        %v2298 = vpack.c.b16 %v2295, %v2294
        %v2299 = vpack.c.b16 %v2297, %v2296
        %v2303 = vsel %vm553, %v2285, 0
        %2305 = vmatpush.bf16.msra.mxu0 0
        %2306 = vmatpush.bf16.msra.mxu0 0
        %2307 = vmatpush.bf16.msra.mxu0 0
        %2308 = vmatpush.bf16.msra.mxu0 0
        %2309 = vmatpush.bf16.msra.mxu0 0
        %2310 = vmatpush.bf16.msra.mxu0 0
        %2311 = vmatpush.bf16.msra.mxu0 %v2299
        %2312 = vmatpush.bf16.msra.mxu0 %v2298
        %2313 = vmatmul.bf16.gmra.mxu0 %v2303
        %v2314 = vpop.f32.mrf.mxu0
        %v2315 = vadd.f32 0.0, %v2314
        %v2316 = vpop.f32.mrf.mxu0
        %2317 = vdwg.mxu0
        %2318 = vst [vmem:[%s539] sm:$0xff] %v2315
        %s2319 = sand.u32 %s401, 1
        %s2320 = scalar_lea.sflag [#allocation3], %s2319
        %s2321 = sand.u32 %s401, 1
        %s2322 = smul.addr %s2321, 8
        %s2323 = scalar_lea.vmem [#allocation2], %s2322
        // Predicated region
        $region89: #{tpu_custom_call.1} parent=87 // pred_check
          %p2324 = pneg %p411
        $region90: #{tpu_custom_call.1} parent=87 // pred_check_branch
          %2326 = sbr.rel (%p2324) target = $region92
        $region91: #{tpu_custom_call.1} parent=87 // pred_region
          %2328 = vsyncadd %s2320, 0
          %s2329 = smul.addr %s31, 8
          %s2330 = scalar_lea.hbm %s17, %s2329
          %s2332 = sshll.u32 %s2323, 4
          %s2333 = int_to_ptr.vmem [resolvable:$true] %s2332
          %s2334 = sshll.u32 %s2330, 4
          %s2335 = int_to_ptr.hbm [resolvable:$true] %s2334
          %2337 = dma.vmem_to_hbm [thread:$0]  %s2333, 128, %s2335, %s2320
        $region92: #{tpu_custom_call.1} parent=87 // pred_fallthru
          _
      $region88: #{tpu_custom_call.1} parent=5 // pred_fallthru
        _
      %p2338 = scmp.le.s32.totalorder 2, %s26
      // Predicated region
      $region93: #{tpu_custom_call.1} parent=5 // pred_check
        %p2339 = pneg %p2338
      $region94: #{tpu_custom_call.1} parent=5 // pred_check_branch
        %2341 = sbr.rel (%p2339) target = $region96
      $region95: #{tpu_custom_call.1} parent=5 // pred_region
        %s2342 = ssub.s32 %s26, 2
        // Predicated region
        $region97: #{tpu_custom_call.1} parent=95 // pred_check
          %p2343 = pneg %p417
        $region98: #{tpu_custom_call.1} parent=95 // pred_check_branch
          %2345 = sbr.rel (%p2343) target = $region100
        $region99: #{tpu_custom_call.1} parent=95 // pred_region
          %s2346 = sand.u32 %s402, 1
          %s2347 = scalar_lea.sflag [#allocation3], %s2346
          %s2348 = sand.u32 %s402, 1
          %s2349 = smul.addr %s2348, 8
          %s2350 = scalar_lea.vmem [#allocation2], %s2349
          %2352 = dma.done %s2347, 128
        $region100: #{tpu_custom_call.1} parent=95 // pred_fallthru
          _
      $region96: #{tpu_custom_call.1} parent=5 // pred_fallthru
        _
    $region6: #{tpu_custom_call.1} parent=1 // loop_footer
      %s30 = sadd.s32 1, %s26
    $region7: #{tpu_custom_call.1} parent=1 // loop_footer_branch
      %25 = sbr.rel target = $region3
    $region8: #{tpu_custom_call.1} parent=1 // loop_exit
      _
    %2353 = vsyncpa [#allocation3], 1
    %s2354 = scalar_lea.sflag [#allocation3], 1
    %2355 = vsyncpa %s2354, 1

</llo_original>
